<compile_context>
chip_gen: v7x
topology: tpu7x:2x2x1
jax: 0.10.0
libtpu: 0.0.40
codegen_flags: <defaults>
</compile_context>

<pallas_src>
import functools

import jax
import jax.numpy as jnp
from jax.experimental import pallas as pl
from jax.experimental.pallas import tpu as pltpu

BN_EPS = 1e-5
_LANE = 128
_ROW_ALIGN = 16                    # bf16 sublane packing => row tiles % 16 == 0
_MAX_TILE_ROWS = 2048
_VMEM_BUDGET = 40 * 1024 * 1024    # conservative across v5e/v6e/v7x (64 MiB / TC)

_SINGLE_BUFFER_OK = None           # tri-state: None = untested, True/False = cached


def _round_up(x, m):
    return (x + m - 1) // m * m


# ---------------------------------------------------------------------------
# Kernels
# ---------------------------------------------------------------------------
def _fused_mlp_kernel(x_ref, wh_ref, bh_ref, gamma_ref, beta_ref, wo_ref, bo_ref,
                      out_ref, h_ref, zsum_ref, zsqsum_ref,
                      *, num_layers, n_rows, tile_rows):
    """One (sweep s, row-tile i) grid step of the fused MLP.

    grid = (num_layers, num_tiles); the tile axis is innermost (fastest).
      sweep s < num_layers-1 : recompute layers 0..s-1 (finalized stats) and
                               accumulate batch stats of layer s.
      sweep s == num_layers-1: apply every BN+ReLU and the output Linear.
    Only layers l <= s run in sweep s; everything else is skipped via pl.when.
    """
    s = pl.program_id(0)
    i = pl.program_id(1)
    last = num_layers - 1
    n_hidden = num_layers - 1
    inv_n = jnp.float32(1.0 / n_rows)

    @pl.when(jnp.logical_and(s == 0, i == 0))
    def _init():
        zsum_ref[...] = jnp.zeros_like(zsum_ref)
        zsqsum_ref[...] = jnp.zeros_like(zsqsum_ref)
        # Defensive zero of the (held) output buffer: the out index_map keeps block
        # (0,0) resident until the final sweep, so nothing is flushed early — but if
        # the writeback policy ever changes, this guarantees no garbage reaches HBM.
        out_ref[...] = jnp.zeros_like(out_ref)

    for l in range(n_hidden):
        src_ref = x_ref if l == 0 else h_ref   # static choice per unrolled layer

        # ---- sweep l: accumulate layer-l batch statistics (no BN apply yet) ----
        @pl.when(s == l)
        def _stats(l=l, src_ref=src_ref):
            z = jnp.dot(src_ref[...], wh_ref[l],
                        preferred_element_type=jnp.float32) + bh_ref[l]
            row_ids = i * tile_rows + jax.lax.broadcasted_iota(
                jnp.int32, (tile_rows, 1), 0)
            zm = jnp.where(row_ids < n_rows, z, 0.0)       # exclude batch padding
            zsum_ref[l] = zsum_ref[l] + jnp.sum(zm, axis=0, keepdims=True)
            zsqsum_ref[l] = zsqsum_ref[l] + jnp.sum(zm * zm, axis=0, keepdims=True)

        # ---- stats finalized in an earlier sweep: folded BN scale/shift + ReLU ----
        @pl.when(s > l)
        def _apply(l=l, src_ref=src_ref):
            z = jnp.dot(src_ref[...], wh_ref[l],
                        preferred_element_type=jnp.float32) + bh_ref[l]
            mean = zsum_ref[l] * inv_n
            var = jnp.maximum(zsqsum_ref[l] * inv_n - mean * mean, 0.0)
            rstd = jax.lax.rsqrt(var + BN_EPS)
            scale = rstd * gamma_ref[l]                     # (1, d_pad)
            shift = beta_ref[l] - mean * scale              # (1, d_pad)
            h_ref[...] = jnp.maximum(z * scale + shift, 0.0).astype(h_ref.dtype)

    # ---- final sweep: output Linear epilogue on the last hidden activation ----
    @pl.when(s == last)
    def _final():
        y = jnp.dot(h_ref[...], wo_ref[...],
                    preferred_element_type=jnp.float32) + bo_ref[...]
        out_ref[...] = y.astype(out_ref.dtype)


def _linear_kernel(x_ref, w_ref, b_ref, out_ref):
    """num_layers == 1 specialization: plain y = x @ W + b."""
    out_ref[...] = (jnp.dot(x_ref[...], w_ref[...],
                            preferred_element_type=jnp.float32)
                    + b_ref[...]).astype(out_ref.dtype)


# ---------------------------------------------------------------------------
# BlockSpec helpers / pallas_call wrappers
# ---------------------------------------------------------------------------
def _resident_spec(block_shape, single_buffer):
    """Constant-index (VMEM-resident) operand; optionally single-buffered."""
    index_map = lambda *_: (0,) * len(block_shape)
    if single_buffer:
        return pl.BlockSpec(block_shape, index_map,
                            pipeline_mode=pl.Buffered(buffer_count=1))
    return pl.BlockSpec(block_shape, index_map)


@functools.partial(jax.jit, static_argnames=(
    "num_layers", "n_rows", "tile_rows", "single_buffer", "vmem_limit"))
def _mlp_fused_pallas(x_pad, wh, bh, gamma, beta, wo, bo, *,
                      num_layers, n_rows, tile_rows, single_buffer, vmem_limit):
    n_pad, d_pad = x_pad.shape
    out_pad = wo.shape[1]
    n_hid = wh.shape[0]
    num_tiles = n_pad // tile_rows
    last = num_layers - 1

    kernel = functools.partial(_fused_mlp_kernel, num_layers=num_layers,
                               n_rows=n_rows, tile_rows=tile_rows)

    grid_spec = pltpu.PrefetchScalarGridSpec(
        num_scalar_prefetch=0,
        grid=(num_layers, num_tiles),
        in_specs=[
            # x tile streams every step (recompute scheme reads it each sweep).
            pl.BlockSpec((tile_rows, d_pad), lambda s, i: (i, 0)),
            # Resident params: constant index, single-buffered when supported.
            _resident_spec((n_hid, d_pad, d_pad), single_buffer),   # hidden W
            _resident_spec((n_hid, 1, d_pad), single_buffer),       # hidden b
            _resident_spec((n_hid, 1, d_pad), single_buffer),       # BN gamma
            _resident_spec((n_hid, 1, d_pad), single_buffer),       # BN beta
            _resident_spec((d_pad, out_pad), single_buffer),        # output W
            _resident_spec((1, out_pad), single_buffer),            # output b
        ],
        # Output block only advances (and therefore only flushes) during the final
        # sweep; earlier sweeps hold block (0,0), which is zero-initialized.
        out_specs=pl.BlockSpec(
            (tile_rows, out_pad),
            lambda s, i: (jnp.where(s == last, i, 0), 0)),
        scratch_shapes=[
            pltpu.VMEM((tile_rows, d_pad), x_pad.dtype),    # running activation h
            pltpu.VMEM((n_hid, 1, d_pad), jnp.float32),     # per-layer sum(z)
            pltpu.VMEM((n_hid, 1, d_pad), jnp.float32),     # per-layer sum(z*z)
        ],
    )

    return pl.pallas_call(
        kernel,
        out_shape=jax.ShapeDtypeStruct((n_pad, out_pad), jnp.float32),
        grid_spec=grid_spec,
        # Both axes are order-dependent (stats accumulation across row tiles and
        # sweep ordering) so they must be "arbitrary".
        compiler_params=pltpu.CompilerParams(
            dimension_semantics=("arbitrary", "arbitrary"),
            vmem_limit_bytes=vmem_limit),
    )(x_pad, wh, bh, gamma, beta, wo, bo)


@functools.partial(jax.jit, static_argnames=("tile_rows", "single_buffer", "vmem_limit"))
def _linear_pallas(x_pad, w, b, *, tile_rows, single_buffer, vmem_limit):
    n_pad, d_pad = x_pad.shape
    out_pad = w.shape[1]
    num_tiles = n_pad // tile_rows

    grid_spec = pltpu.PrefetchScalarGridSpec(
        num_scalar_prefetch=0,
        grid=(num_tiles,),
        in_specs=[
            pl.BlockSpec((tile_rows, d_pad), lambda i: (i, 0)),
            _resident_spec((d_pad, out_pad), single_buffer),
            _resident_spec((1, out_pad), single_buffer),
        ],
        out_specs=pl.BlockSpec((tile_rows, out_pad), lambda i: (i, 0)),
    )
    return pl.pallas_call(
        _linear_kernel,
        out_shape=jax.ShapeDtypeStruct((n_pad, out_pad), jnp.float32),
        grid_spec=grid_spec,
        compiler_params=pltpu.CompilerParams(
            dimension_semantics=("parallel",),
            vmem_limit_bytes=vmem_limit),
    )(x_pad, w, b)


def _call_with_fallback(fn, *args, **kwargs):
    """Prefer single-buffered resident params (pl.Buffered(1) halves their VMEM);
    fall back to default double-buffering if this Pallas build rejects it."""
    global _SINGLE_BUFFER_OK
    if _SINGLE_BUFFER_OK in (None, True):
        try:
            out = fn(*args, single_buffer=True, **kwargs)
            _SINGLE_BUFFER_OK = True
            return out
        except Exception:
            if _SINGLE_BUFFER_OK is True:
                raise
            _SINGLE_BUFFER_OK = False
    return fn(*args, single_buffer=False, **kwargs)


# ---------------------------------------------------------------------------
# Tiling / VMEM planning
# ---------------------------------------------------------------------------
def _plan_tiles(n_rows, d_pad, out_pad, n_hid, el_bytes, tile_rows=None):
    """Pick a row-tile size that keeps the working set inside a v7x-safe VMEM
    budget and avoids a mostly-padded last tile. Returns (tile_rows, n_pad, vmem)."""
    resident = ((n_hid * d_pad * d_pad + 3 * n_hid * d_pad) * el_bytes
                + d_pad * out_pad * el_bytes + out_pad * 4)
    stats = 2 * n_hid * d_pad * 4
    # per-row: x (double-buffered), out (double-buffered, f32), h scratch.
    per_row = 3 * d_pad * el_bytes + 2 * out_pad * 4
    avail = _VMEM_BUDGET - resident - stats - (2 << 20)
    cap = max(_ROW_ALIGN, min(_MAX_TILE_ROWS, avail // max(per_row, 1)))
    if tile_rows is None:
        cap_aligned = max(_ROW_ALIGN, (cap // _ROW_ALIGN) * _ROW_ALIGN)
        num_tiles = -(-n_rows // cap_aligned)
        tile_rows = _round_up(-(-n_rows // num_tiles), _ROW_ALIGN)
    else:
        tile_rows = _round_up(max(int(tile_rows), _ROW_ALIGN), _ROW_ALIGN)
    n_pad = _round_up(n_rows, tile_rows)
    # Advisory scoped-VMEM limit (worst case: params double-buffered).
    worst = resident * 2 + stats + tile_rows * per_row + (4 << 20)
    vmem_limit = int(min(max(worst, 16 << 20), 60 << 20))
    return tile_rows, n_pad, vmem_limit


# ---------------------------------------------------------------------------
# Parameter construction / packing
# ---------------------------------------------------------------------------
def init_mlp_params(key, num_layers, input_dim, hidden_dim, output_dim):
    """Deterministic params mimicking PyTorch nn.Linear init bounds.
    Weights stored as (in_features, out_features) so kernels compute x @ W + b."""
    if num_layers < 1:
        raise ValueError("number of layers should be positive!")
    params = {"linears": [], "bn": []}
    dims = ([input_dim, output_dim] if num_layers == 1 else
            [input_dim] + [hidden_dim] * (num_layers - 1) + [output_dim])
    for li in range(num_layers):
        fan_in, fan_out = dims[li], dims[li + 1]
        key, kw, kb = jax.random.split(key, 3)
        bound = 1.0 / float(jnp.sqrt(fan_in))
        w = jax.random.uniform(kw, (fan_in, fan_out), jnp.float32, -bound, bound)
        b = jax.random.uniform(kb, (1, fan_out), jnp.float32, -bound, bound)
        params["linears"].append((w, b))
    for _ in range(max(num_layers - 1, 0)):
        params["bn"].append((jnp.ones((1, hidden_dim), jnp.float32),
                             jnp.zeros((1, hidden_dim), jnp.float32)))
    return params


def _pack_params(params, num_layers, d_pad, out_pad, compute_dtype):
    """Zero-pad all params to lane-dense (multiple-of-128) shapes and stack the
    hidden layers so the kernel keeps them resident with one DMA each.
    gamma is zero-padded, so padded feature lanes stay exactly 0 after BN."""
    n_hid = num_layers - 1
    wh = jnp.zeros((n_hid, d_pad, d_pad), compute_dtype)
    bh = jnp.zeros((n_hid, 1, d_pad), jnp.float32)
    gm = jnp.zeros((n_hid, 1, d_pad), jnp.float32)
    bt = jnp.zeros((n_hid, 1, d_pad), jnp.float32)
    for l in range(n_hid):
        w, b = params["linears"][l]
        g, be = params["bn"][l]
        wh = wh.at[l, :w.shape[0], :w.shape[1]].set(w.astype(compute_dtype))
        bh = bh.at[l, :, :b.shape[1]].set(b)
        gm = gm.at[l, :, :g.shape[1]].set(g)
        bt = bt.at[l, :, :be.shape[1]].set(be)
    w, b = params["linears"][num_layers - 1]
    wo = jnp.zeros((d_pad, out_pad), compute_dtype).at[:w.shape[0], :w.shape[1]].set(
        w.astype(compute_dtype))
    bo = jnp.zeros((1, out_pad), jnp.float32).at[:, :b.shape[1]].set(b)
    return wh, bh, gm, bt, wo, bo


# ---------------------------------------------------------------------------
# Forward (matches MLP.forward: BN is applied over all leading dims flattened)
# ---------------------------------------------------------------------------
def mlp_forward(params, x, num_layers, *, tile_rows=None, compute_dtype=jnp.bfloat16):
    """Forward pass matching the PyTorch MLP (BatchNorm1d in training mode).
    compute_dtype is used for x / weight MXU operands (f32 accumulation, f32 BN
    statistics); pass jnp.float32 for bit-faithful f32 math."""
    if num_layers < 1:
        raise ValueError("number of layers should be positive!")
    compute_dtype = jnp.dtype(compute_dtype)
    lead = x.shape[:-1]
    input_dim = x.shape[-1]
    output_dim = params["linears"][num_layers - 1][0].shape[1]
    out_pad = _round_up(output_dim, _LANE)
    x2d = x.reshape(-1, input_dim)
    n_rows = x2d.shape[0]

    if num_layers == 1:
        # Pure linear path: no dummy BN/weight arrays, smaller resident footprint.
        d_pad = _round_up(input_dim, _LANE)
        tile_rows, n_pad, vmem_limit = _plan_tiles(
            n_rows, d_pad, out_pad, 0, compute_dtype.itemsize, tile_rows)
        x_pad = jnp.zeros((n_pad, d_pad), compute_dtype).at[
            :n_rows, :input_dim].set(x2d.astype(compute_dtype))
        w, b = params["linears"][0]
        w_pad = jnp.zeros((d_pad, out_pad), compute_dtype).at[
            :input_dim, :output_dim].set(w.astype(compute_dtype))
        b_pad = jnp.zeros((1, out_pad), jnp.float32).at[:, :output_dim].set(b)
        out = _call_with_fallback(_linear_pallas, x_pad, w_pad, b_pad,
                                  tile_rows=tile_rows, vmem_limit=vmem_limit)
        return out[:n_rows, :output_dim].reshape(*lead, output_dim)

    hidden_dim = params["linears"][0][0].shape[1]
    d_pad = _round_up(max(input_dim, hidden_dim), _LANE)
    n_hid = num_layers - 1
    tile_rows, n_pad, vmem_limit = _plan_tiles(
        n_rows, d_pad, out_pad, n_hid, compute_dtype.itemsize, tile_rows)
    x_pad = jnp.zeros((n_pad, d_pad), compute_dtype).at[
        :n_rows, :input_dim].set(x2d.astype(compute_dtype))
    wh, bh, gamma, beta, wo, bo = _pack_params(params, num_layers, d_pad, out_pad,
                                               compute_dtype)
    out = _call_with_fallback(_mlp_fused_pallas, x_pad, wh, bh, gamma, beta, wo, bo,
                              num_layers=num_layers, n_rows=n_rows,
                              tile_rows=tile_rows, vmem_limit=vmem_limit)
    return out[:n_rows, :output_dim].reshape(*lead, output_dim)


# ---------------------------------------------------------------------------
# Pure-JAX reference (compute_dtype mirrors the kernel's MXU-operand dtype)
# ---------------------------------------------------------------------------
def mlp_reference(params, x, num_layers, compute_dtype=jnp.float32):
    lead = x.shape[:-1]
    h = x.reshape(-1, x.shape[-1]).astype(compute_dtype)
    for layer in range(num_layers - 1):
        w, b = params["linears"][layer]
        gamma, beta = params["bn"][layer]
        z = jnp.dot(h, w.astype(compute_dtype),
                    preferred_element_type=jnp.float32) + b
        mean = jnp.mean(z, axis=0, keepdims=True)
        var = jnp.mean((z - mean) ** 2, axis=0, keepdims=True)
        z = (z - mean) / jnp.sqrt(var + BN_EPS) * gamma + beta
        h = jnp.maximum(z, 0.0).astype(compute_dtype)
    w, b = params["linears"][num_layers - 1]
    y = jnp.dot(h, w.astype(compute_dtype), preferred_element_type=jnp.float32) + b
    return y.reshape(*lead, w.shape[1])


if __name__ == "__main__":
    key = jax.random.PRNGKey(0)
    num_layers, input_dim, hidden_dim, output_dim = 3, 16, 32, 8

    # Test 1: f32 compute path, single row tile -> tight match vs pure-f32 reference.
    key, kx, kp = jax.random.split(key, 3)
    params = init_mlp_params(kp, num_layers, input_dim, hidden_dim, output_dim)
    x1 = jax.random.normal(kx, (16, input_dim), jnp.float32)
    out1 = jax.block_until_ready(
        mlp_forward(params, x1, num_layers, compute_dtype=jnp.float32))
    ref1 = mlp_reference(params, x1, num_layers)
    assert out1.shape == (16, output_dim), out1.shape
    assert jnp.allclose(out1, ref1, atol=1e-3, rtol=1e-3), "mismatch (test 1)"

    # Test 2: default bf16 MXU path, multi-tile batch with row padding
    # (exercises cross-tile BN statistics and the padding mask).
    key, kx2 = jax.random.split(key)
    x2 = jax.random.normal(kx2, (37, input_dim), jnp.float32)
    out2 = jax.block_until_ready(mlp_forward(params, x2, num_layers, tile_rows=16))
    ref2_bf16 = mlp_reference(params, x2, num_layers, compute_dtype=jnp.bfloat16)
    ref2_f32 = mlp_reference(params, x2, num_layers)
    assert jnp.allclose(out2, ref2_bf16, atol=1e-2, rtol=1e-2), "mismatch (test 2 bf16)"
    assert jnp.allclose(out2, ref2_f32, atol=1e-1, rtol=1e-1), "mismatch (test 2 f32)"

    # Test 3: num_layers == 2 (single hidden layer), f32.
    key, kx3, kp3 = jax.random.split(key, 3)
    params2 = init_mlp_params(kp3, 2, input_dim, hidden_dim, output_dim)
    x3 = jax.random.normal(kx3, (24, input_dim), jnp.float32)
    out3 = jax.block_until_ready(
        mlp_forward(params2, x3, 2, compute_dtype=jnp.float32))
    ref3 = mlp_reference(params2, x3, 2)
    assert jnp.allclose(out3, ref3, atol=1e-3, rtol=1e-3), "mismatch (test 3)"

    # Test 4: num_layers == 1 (pure linear path) with extra leading dims.
    key, kx4, kp4 = jax.random.split(key, 3)
    params1 = init_mlp_params(kp4, 1, input_dim, hidden_dim, output_dim)
    x4 = jax.random.normal(kx4, (2, 5, input_dim), jnp.float32)
    out4 = jax.block_until_ready(
        mlp_forward(params1, x4, 1, compute_dtype=jnp.float32))
    ref4 = mlp_reference(params1, x4, 1)
    assert out4.shape == (2, 5, output_dim), out4.shape
    assert jnp.allclose(out4, ref4, atol=1e-3, rtol=1e-3), "mismatch (test 4)"

    print("KERNEL_OK")
</pallas_src>

<mosaic_0001>
module attributes {stable_mosaic.version = 11 : i64} {
  func.func @_fused_mlp_kernel(%arg0: i32, %arg1: i32, %arg2: memref<16x128xf32, #tpu.memory_space<vmem>>, %arg3: memref<2x128x128xf32, #tpu.memory_space<vmem>>, %arg4: memref<2x1x128xf32, #tpu.memory_space<vmem>>, %arg5: memref<2x1x128xf32, #tpu.memory_space<vmem>>, %arg6: memref<2x1x128xf32, #tpu.memory_space<vmem>>, %arg7: memref<128x128xf32, #tpu.memory_space<vmem>>, %arg8: memref<1x128xf32, #tpu.memory_space<vmem>>, %arg9: memref<16x128xf32, #tpu.memory_space<vmem>>, %arg10: memref<16x128xf32, #tpu.memory_space<vmem>>, %arg11: memref<2x1x128xf32, #tpu.memory_space<vmem>>, %arg12: memref<2x1x128xf32, #tpu.memory_space<vmem>>) attributes {dimension_semantics = [#tpu.dimension_semantics<arbitrary>, #tpu.dimension_semantics<arbitrary>], iteration_bounds = array<i64: 3, 1>, scalar_prefetch = 0 : i64, scratch_operands = 3 : i64, tpu.core_type = #tpu.core_type<tc>, window_params = [{transform_indices = @transform_0, window_bounds = array<i64: 16, 128>}, {pipeline_mode = #tpu.pipeline_mode<synchronous>, transform_indices = @transform_1, window_bounds = array<i64: 2, 128, 128>}, {pipeline_mode = #tpu.pipeline_mode<synchronous>, transform_indices = @transform_2, window_bounds = array<i64: 2, 1, 128>}, {pipeline_mode = #tpu.pipeline_mode<synchronous>, transform_indices = @transform_3, window_bounds = array<i64: 2, 1, 128>}, {pipeline_mode = #tpu.pipeline_mode<synchronous>, transform_indices = @transform_4, window_bounds = array<i64: 2, 1, 128>}, {pipeline_mode = #tpu.pipeline_mode<synchronous>, transform_indices = @transform_5, window_bounds = array<i64: 128, 128>}, {pipeline_mode = #tpu.pipeline_mode<synchronous>, transform_indices = @transform_6, window_bounds = array<i64: 1, 128>}, {transform_indices = @transform_7, window_bounds = array<i64: 16, 128>}]} {
    %c0_i32 = arith.constant 0 : i32
    %0 = arith.cmpi eq, %arg0, %c0_i32 : i32
    %c0_i32_0 = arith.constant 0 : i32
    %1 = arith.cmpi eq, %arg1, %c0_i32_0 : i32
    %2 = arith.andi %0, %1 : i1
    %3 = arith.extui %2 : i1 to i32
    %c0_i32_1 = arith.constant 0 : i32
    %4 = arith.cmpi ne, %3, %c0_i32_1 : i32
    scf.if %4 {
      %cst_11 = arith.constant 0.000000e+00 : f32
      %20 = vector.broadcast %cst_11 : f32 to vector<2x1x128xf32>
      %c0 = arith.constant 0 : index
      %c0_12 = arith.constant 0 : index
      %c0_13 = arith.constant 0 : index
      %21 = vector.load %arg11[%c0, %c0_12, %c0_13] : memref<2x1x128xf32, #tpu.memory_space<vmem>>, vector<2x1x128xf32>
      tpu.vector_store %arg11[%c0, %c0_12, %c0_13], %20 {strides = array<i32>} : memref<2x1x128xf32, #tpu.memory_space<vmem>>, vector<2x1x128xf32>,
      %cst_14 = arith.constant 0.000000e+00 : f32
      %22 = vector.broadcast %cst_14 : f32 to vector<2x1x128xf32>
      %c0_15 = arith.constant 0 : index
      %c0_16 = arith.constant 0 : index
      %c0_17 = arith.constant 0 : index
      %23 = vector.load %arg12[%c0_15, %c0_16, %c0_17] : memref<2x1x128xf32, #tpu.memory_space<vmem>>, vector<2x1x128xf32>
      tpu.vector_store %arg12[%c0_15, %c0_16, %c0_17], %22 {strides = array<i32>} : memref<2x1x128xf32, #tpu.memory_space<vmem>>, vector<2x1x128xf32>,
      %cst_18 = arith.constant 0.000000e+00 : f32
      %24 = vector.broadcast %cst_18 : f32 to vector<16x128xf32>
      %c0_19 = arith.constant 0 : index
      %c0_20 = arith.constant 0 : index
      %25 = vector.load %arg9[%c0_19, %c0_20] : memref<16x128xf32, #tpu.memory_space<vmem>>, vector<16x128xf32>
      tpu.vector_store %arg9[%c0_19, %c0_20], %24 {strides = array<i32>} : memref<16x128xf32, #tpu.memory_space<vmem>>, vector<16x128xf32>,
    } else {
    }
    %c0_i32_2 = arith.constant 0 : i32
    %5 = arith.cmpi eq, %arg0, %c0_i32_2 : i32
    %6 = arith.extui %5 : i1 to i32
    %c0_i32_3 = arith.constant 0 : i32
    %7 = arith.cmpi ne, %6, %c0_i32_3 : i32
    scf.if %7 {
      %c0 = arith.constant 0 : index
      %c0_11 = arith.constant 0 : index
      %20 = vector.load %arg2[%c0, %c0_11] : memref<16x128xf32, #tpu.memory_space<vmem>>, vector<16x128xf32>
      %c0_12 = arith.constant 0 : index
      %c0_13 = arith.constant 0 : index
      %c0_14 = arith.constant 0 : index
      %21 = vector.load %arg3[%c0_12, %c0_13, %c0_14] : memref<2x128x128xf32, #tpu.memory_space<vmem>>, vector<1x128x128xf32>
      %22 = vector.shape_cast %21 : vector<1x128x128xf32> to vector<128x128xf32>
      %cst_15 = arith.constant dense<0.000000e+00> : vector<16x128xf32>
      %23 = tpu.matmul %20, %22, %cst_15 {dimension_numbers = #tpu.dot_dimension_numbers<[1], [0], [0], [1], [0, 0, 1, 1], [], []>} : vector<16x128xf32>, vector<128x128xf32>, vector<16x128xf32> -> vector<16x128xf32>
      %c0_16 = arith.constant 0 : index
      %c0_17 = arith.constant 0 : index
      %c0_18 = arith.constant 0 : index
      %24 = vector.load %arg4[%c0_16, %c0_17, %c0_18] : memref<2x1x128xf32, #tpu.memory_space<vmem>>, vector<1x1x128xf32>
      %25 = vector.shape_cast %24 : vector<1x1x128xf32> to vector<1x128xf32>
      %26 = vector.broadcast %25 : vector<1x128xf32> to vector<16x128xf32>
      %27 = arith.addf %23, %26 : vector<16x128xf32>
      %c16_i32 = arith.constant 16 : i32
      %28 = arith.muli %arg1, %c16_i32 : i32
      %29 = tpu.iota {dimensions = array<i32: 0>} : vector<16x1xi32>
      %30 = vector.broadcast %28 : i32 to vector<16x1xi32>
      %31 = arith.addi %30, %29 : vector<16x1xi32>
      %c16_i32_19 = arith.constant 16 : i32
      %32 = vector.broadcast %c16_i32_19 : i32 to vector<16x1xi32>
      %33 = arith.cmpi slt, %31, %32 : vector<16x1xi32>
      %cst_20 = arith.constant 0.000000e+00 : f32
      %34 = vector.shape_cast %33 : vector<16x1xi1> to vector<16x1xi1>
      %35 = vector.broadcast %34 : vector<16x1xi1> to vector<16x128xi1>
      %36 = vector.broadcast %cst_20 : f32 to vector<16x128xf32>
      %37 = arith.select %35, %27, %36 : vector<16x128xi1>, vector<16x128xf32>
      %c0_21 = arith.constant 0 : index
      %c0_22 = arith.constant 0 : index
      %c0_23 = arith.constant 0 : index
      %38 = vector.load %arg11[%c0_21, %c0_22, %c0_23] : memref<2x1x128xf32, #tpu.memory_space<vmem>>, vector<1x1x128xf32>
      %39 = vector.shape_cast %38 : vector<1x1x128xf32> to vector<1x128xf32>
      %cst_24 = arith.constant dense<0.000000e+00> : vector<128xf32>
      %40 = vector.multi_reduction <add>, %37, %cst_24 [0] : vector<16x128xf32> to vector<128xf32>
      %41 = vector.shape_cast %40 : vector<128xf32> to vector<1x128xf32>
      %42 = arith.addf %39, %41 : vector<1x128xf32>
      %c0_25 = arith.constant 0 : index
      %c0_26 = arith.constant 0 : index
      %c0_27 = arith.constant 0 : index
      %43 = vector.load %arg11[%c0_25, %c0_26, %c0_27] : memref<2x1x128xf32, #tpu.memory_space<vmem>>, vector<1x1x128xf32>
      %44 = vector.shape_cast %43 : vector<1x1x128xf32> to vector<1x128xf32>
      %45 = vector.shape_cast %42 : vector<1x128xf32> to vector<1x1x128xf32>
      tpu.vector_store %arg11[%c0_25, %c0_26, %c0_27], %45 {strides = array<i32>} : memref<2x1x128xf32, #tpu.memory_space<vmem>>, vector<1x1x128xf32>,
      %c0_28 = arith.constant 0 : index
      %c0_29 = arith.constant 0 : index
      %c0_30 = arith.constant 0 : index
      %46 = vector.load %arg12[%c0_28, %c0_29, %c0_30] : memref<2x1x128xf32, #tpu.memory_space<vmem>>, vector<1x1x128xf32>
      %47 = vector.shape_cast %46 : vector<1x1x128xf32> to vector<1x128xf32>
      %48 = arith.mulf %37, %37 : vector<16x128xf32>
      %cst_31 = arith.constant dense<0.000000e+00> : vector<128xf32>
      %49 = vector.multi_reduction <add>, %48, %cst_31 [0] : vector<16x128xf32> to vector<128xf32>
      %50 = vector.shape_cast %49 : vector<128xf32> to vector<1x128xf32>
      %51 = arith.addf %47, %50 : vector<1x128xf32>
      %c0_32 = arith.constant 0 : index
      %c0_33 = arith.constant 0 : index
      %c0_34 = arith.constant 0 : index
      %52 = vector.load %arg12[%c0_32, %c0_33, %c0_34] : memref<2x1x128xf32, #tpu.memory_space<vmem>>, vector<1x1x128xf32>
      %53 = vector.shape_cast %52 : vector<1x1x128xf32> to vector<1x128xf32>
      %54 = vector.shape_cast %51 : vector<1x128xf32> to vector<1x1x128xf32>
      tpu.vector_store %arg12[%c0_32, %c0_33, %c0_34], %54 {strides = array<i32>} : memref<2x1x128xf32, #tpu.memory_space<vmem>>, vector<1x1x128xf32>,
    } else {
    }
    %c0_i32_4 = arith.constant 0 : i32
    %8 = arith.cmpi sgt, %arg0, %c0_i32_4 : i32
    %9 = arith.extui %8 : i1 to i32
    %cst = arith.constant 6.250000e-02 : f32
    %c0_i32_5 = arith.constant 0 : i32
    %10 = arith.cmpi ne, %9, %c0_i32_5 : i32
    scf.if %10 {
      %c0 = arith.constant 0 : index
      %c0_11 = arith.constant 0 : index
      %20 = vector.load %arg2[%c0, %c0_11] : memref<16x128xf32, #tpu.memory_space<vmem>>, vector<16x128xf32>
      %c0_12 = arith.constant 0 : index
      %c0_13 = arith.constant 0 : index
      %c0_14 = arith.constant 0 : index
      %21 = vector.load %arg3[%c0_12, %c0_13, %c0_14] : memref<2x128x128xf32, #tpu.memory_space<vmem>>, vector<1x128x128xf32>
      %22 = vector.shape_cast %21 : vector<1x128x128xf32> to vector<128x128xf32>
      %cst_15 = arith.constant dense<0.000000e+00> : vector<16x128xf32>
      %23 = tpu.matmul %20, %22, %cst_15 {dimension_numbers = #tpu.dot_dimension_numbers<[1], [0], [0], [1], [0, 0, 1, 1], [], []>} : vector<16x128xf32>, vector<128x128xf32>, vector<16x128xf32> -> vector<16x128xf32>
      %c0_16 = arith.constant 0 : index
      %c0_17 = arith.constant 0 : index
      %c0_18 = arith.constant 0 : index
      %24 = vector.load %arg4[%c0_16, %c0_17, %c0_18] : memref<2x1x128xf32, #tpu.memory_space<vmem>>, vector<1x1x128xf32>
      %25 = vector.shape_cast %24 : vector<1x1x128xf32> to vector<1x128xf32>
      %26 = vector.broadcast %25 : vector<1x128xf32> to vector<16x128xf32>
      %27 = arith.addf %23, %26 : vector<16x128xf32>
      %c0_19 = arith.constant 0 : index
      %c0_20 = arith.constant 0 : index
      %c0_21 = arith.constant 0 : index
      %28 = vector.load %arg11[%c0_19, %c0_20, %c0_21] : memref<2x1x128xf32, #tpu.memory_space<vmem>>, vector<1x1x128xf32>
      %29 = vector.shape_cast %28 : vector<1x1x128xf32> to vector<1x128xf32>
      %30 = vector.broadcast %cst : f32 to vector<1x128xf32>
      %31 = arith.mulf %29, %30 : vector<1x128xf32>
      %c0_22 = arith.constant 0 : index
      %c0_23 = arith.constant 0 : index
      %c0_24 = arith.constant 0 : index
      %32 = vector.load %arg12[%c0_22, %c0_23, %c0_24] : memref<2x1x128xf32, #tpu.memory_space<vmem>>, vector<1x1x128xf32>
      %33 = vector.shape_cast %32 : vector<1x1x128xf32> to vector<1x128xf32>
      %34 = vector.broadcast %cst : f32 to vector<1x128xf32>
      %35 = arith.mulf %33, %34 : vector<1x128xf32>
      %36 = arith.mulf %31, %31 : vector<1x128xf32>
      %37 = arith.subf %35, %36 : vector<1x128xf32>
      %cst_25 = arith.constant 0.000000e+00 : f32
      %38 = vector.broadcast %cst_25 : f32 to vector<1x128xf32>
      %39 = arith.maximumf %37, %38 : vector<1x128xf32>
      %cst_26 = arith.constant 9.99999974E-6 : f32
      %40 = vector.broadcast %cst_26 : f32 to vector<1x128xf32>
      %41 = arith.addf %39, %40 : vector<1x128xf32>
      %42 = math.rsqrt %41 : vector<1x128xf32>
      %c0_27 = arith.constant 0 : index
      %c0_28 = arith.constant 0 : index
      %c0_29 = arith.constant 0 : index
      %43 = vector.load %arg5[%c0_27, %c0_28, %c0_29] : memref<2x1x128xf32, #tpu.memory_space<vmem>>, vector<1x1x128xf32>
      %44 = vector.shape_cast %43 : vector<1x1x128xf32> to vector<1x128xf32>
      %45 = arith.mulf %42, %44 : vector<1x128xf32>
      %c0_30 = arith.constant 0 : index
      %c0_31 = arith.constant 0 : index
      %c0_32 = arith.constant 0 : index
      %46 = vector.load %arg6[%c0_30, %c0_31, %c0_32] : memref<2x1x128xf32, #tpu.memory_space<vmem>>, vector<1x1x128xf32>
      %47 = vector.shape_cast %46 : vector<1x1x128xf32> to vector<1x128xf32>
      %48 = arith.mulf %31, %45 : vector<1x128xf32>
      %49 = arith.subf %47, %48 : vector<1x128xf32>
      %50 = vector.broadcast %45 : vector<1x128xf32> to vector<16x128xf32>
      %51 = arith.mulf %27, %50 : vector<16x128xf32>
      %52 = vector.broadcast %49 : vector<1x128xf32> to vector<16x128xf32>
      %53 = arith.addf %51, %52 : vector<16x128xf32>
      %cst_33 = arith.constant 0.000000e+00 : f32
      %54 = vector.broadcast %cst_33 : f32 to vector<16x128xf32>
      %55 = arith.maximumf %53, %54 : vector<16x128xf32>
      %c0_34 = arith.constant 0 : index
      %c0_35 = arith.constant 0 : index
      %56 = vector.load %arg10[%c0_34, %c0_35] : memref<16x128xf32, #tpu.memory_space<vmem>>, vector<16x128xf32>
      tpu.vector_store %arg10[%c0_34, %c0_35], %55 {strides = array<i32>} : memref<16x128xf32, #tpu.memory_space<vmem>>, vector<16x128xf32>,
    } else {
    }
    %c1_i32 = arith.constant 1 : i32
    %11 = arith.cmpi eq, %arg0, %c1_i32 : i32
    %12 = arith.extui %11 : i1 to i32
    %c0_i32_6 = arith.constant 0 : i32
    %13 = arith.cmpi ne, %12, %c0_i32_6 : i32
    scf.if %13 {
      %c0 = arith.constant 0 : index
      %c0_11 = arith.constant 0 : index
      %20 = vector.load %arg10[%c0, %c0_11] : memref<16x128xf32, #tpu.memory_space<vmem>>, vector<16x128xf32>
      %c1 = arith.constant 1 : index
      %c0_12 = arith.constant 0 : index
      %c0_13 = arith.constant 0 : index
      %21 = vector.load %arg3[%c1, %c0_12, %c0_13] : memref<2x128x128xf32, #tpu.memory_space<vmem>>, vector<1x128x128xf32>
      %22 = vector.shape_cast %21 : vector<1x128x128xf32> to vector<128x128xf32>
      %cst_14 = arith.constant dense<0.000000e+00> : vector<16x128xf32>
      %23 = tpu.matmul %20, %22, %cst_14 {dimension_numbers = #tpu.dot_dimension_numbers<[1], [0], [0], [1], [0, 0, 1, 1], [], []>} : vector<16x128xf32>, vector<128x128xf32>, vector<16x128xf32> -> vector<16x128xf32>
      %c1_15 = arith.constant 1 : index
      %c0_16 = arith.constant 0 : index
      %c0_17 = arith.constant 0 : index
      %24 = vector.load %arg4[%c1_15, %c0_16, %c0_17] : memref<2x1x128xf32, #tpu.memory_space<vmem>>, vector<1x1x128xf32>
      %25 = vector.shape_cast %24 : vector<1x1x128xf32> to vector<1x128xf32>
      %26 = vector.broadcast %25 : vector<1x128xf32> to vector<16x128xf32>
      %27 = arith.addf %23, %26 : vector<16x128xf32>
      %c16_i32 = arith.constant 16 : i32
      %28 = arith.muli %arg1, %c16_i32 : i32
      %29 = tpu.iota {dimensions = array<i32: 0>} : vector<16x1xi32>
      %30 = vector.broadcast %28 : i32 to vector<16x1xi32>
      %31 = arith.addi %30, %29 : vector<16x1xi32>
      %c16_i32_18 = arith.constant 16 : i32
      %32 = vector.broadcast %c16_i32_18 : i32 to vector<16x1xi32>
      %33 = arith.cmpi slt, %31, %32 : vector<16x1xi32>
      %cst_19 = arith.constant 0.000000e+00 : f32
      %34 = vector.shape_cast %33 : vector<16x1xi1> to vector<16x1xi1>
      %35 = vector.broadcast %34 : vector<16x1xi1> to vector<16x128xi1>
      %36 = vector.broadcast %cst_19 : f32 to vector<16x128xf32>
      %37 = arith.select %35, %27, %36 : vector<16x128xi1>, vector<16x128xf32>
      %c1_20 = arith.constant 1 : index
      %c0_21 = arith.constant 0 : index
      %c0_22 = arith.constant 0 : index
      %38 = vector.load %arg11[%c1_20, %c0_21, %c0_22] : memref<2x1x128xf32, #tpu.memory_space<vmem>>, vector<1x1x128xf32>
      %39 = vector.shape_cast %38 : vector<1x1x128xf32> to vector<1x128xf32>
      %cst_23 = arith.constant dense<0.000000e+00> : vector<128xf32>
      %40 = vector.multi_reduction <add>, %37, %cst_23 [0] : vector<16x128xf32> to vector<128xf32>
      %41 = vector.shape_cast %40 : vector<128xf32> to vector<1x128xf32>
      %42 = arith.addf %39, %41 : vector<1x128xf32>
      %c1_24 = arith.constant 1 : index
      %c0_25 = arith.constant 0 : index
      %c0_26 = arith.constant 0 : index
      %43 = vector.load %arg11[%c1_24, %c0_25, %c0_26] : memref<2x1x128xf32, #tpu.memory_space<vmem>>, vector<1x1x128xf32>
      %44 = vector.shape_cast %43 : vector<1x1x128xf32> to vector<1x128xf32>
      %45 = vector.shape_cast %42 : vector<1x128xf32> to vector<1x1x128xf32>
      tpu.vector_store %arg11[%c1_24, %c0_25, %c0_26], %45 {strides = array<i32>} : memref<2x1x128xf32, #tpu.memory_space<vmem>>, vector<1x1x128xf32>,
      %c1_27 = arith.constant 1 : index
      %c0_28 = arith.constant 0 : index
      %c0_29 = arith.constant 0 : index
      %46 = vector.load %arg12[%c1_27, %c0_28, %c0_29] : memref<2x1x128xf32, #tpu.memory_space<vmem>>, vector<1x1x128xf32>
      %47 = vector.shape_cast %46 : vector<1x1x128xf32> to vector<1x128xf32>
      %48 = arith.mulf %37, %37 : vector<16x128xf32>
      %cst_30 = arith.constant dense<0.000000e+00> : vector<128xf32>
      %49 = vector.multi_reduction <add>, %48, %cst_30 [0] : vector<16x128xf32> to vector<128xf32>
      %50 = vector.shape_cast %49 : vector<128xf32> to vector<1x128xf32>
      %51 = arith.addf %47, %50 : vector<1x128xf32>
      %c1_31 = arith.constant 1 : index
      %c0_32 = arith.constant 0 : index
      %c0_33 = arith.constant 0 : index
      %52 = vector.load %arg12[%c1_31, %c0_32, %c0_33] : memref<2x1x128xf32, #tpu.memory_space<vmem>>, vector<1x1x128xf32>
      %53 = vector.shape_cast %52 : vector<1x1x128xf32> to vector<1x128xf32>
      %54 = vector.shape_cast %51 : vector<1x128xf32> to vector<1x1x128xf32>
      tpu.vector_store %arg12[%c1_31, %c0_32, %c0_33], %54 {strides = array<i32>} : memref<2x1x128xf32, #tpu.memory_space<vmem>>, vector<1x1x128xf32>,
    } else {
    }
    %c1_i32_7 = arith.constant 1 : i32
    %14 = arith.cmpi sgt, %arg0, %c1_i32_7 : i32
    %15 = arith.extui %14 : i1 to i32
    %cst_8 = arith.constant 6.250000e-02 : f32
    %c0_i32_9 = arith.constant 0 : i32
    %16 = arith.cmpi ne, %15, %c0_i32_9 : i32
    scf.if %16 {
      %c0 = arith.constant 0 : index
      %c0_11 = arith.constant 0 : index
      %20 = vector.load %arg10[%c0, %c0_11] : memref<16x128xf32, #tpu.memory_space<vmem>>, vector<16x128xf32>
      %c1 = arith.constant 1 : index
      %c0_12 = arith.constant 0 : index
      %c0_13 = arith.constant 0 : index
      %21 = vector.load %arg3[%c1, %c0_12, %c0_13] : memref<2x128x128xf32, #tpu.memory_space<vmem>>, vector<1x128x128xf32>
      %22 = vector.shape_cast %21 : vector<1x128x128xf32> to vector<128x128xf32>
      %cst_14 = arith.constant dense<0.000000e+00> : vector<16x128xf32>
      %23 = tpu.matmul %20, %22, %cst_14 {dimension_numbers = #tpu.dot_dimension_numbers<[1], [0], [0], [1], [0, 0, 1, 1], [], []>} : vector<16x128xf32>, vector<128x128xf32>, vector<16x128xf32> -> vector<16x128xf32>
      %c1_15 = arith.constant 1 : index
      %c0_16 = arith.constant 0 : index
      %c0_17 = arith.constant 0 : index
      %24 = vector.load %arg4[%c1_15, %c0_16, %c0_17] : memref<2x1x128xf32, #tpu.memory_space<vmem>>, vector<1x1x128xf32>
      %25 = vector.shape_cast %24 : vector<1x1x128xf32> to vector<1x128xf32>
      %26 = vector.broadcast %25 : vector<1x128xf32> to vector<16x128xf32>
      %27 = arith.addf %23, %26 : vector<16x128xf32>
      %c1_18 = arith.constant 1 : index
      %c0_19 = arith.constant 0 : index
      %c0_20 = arith.constant 0 : index
      %28 = vector.load %arg11[%c1_18, %c0_19, %c0_20] : memref<2x1x128xf32, #tpu.memory_space<vmem>>, vector<1x1x128xf32>
      %29 = vector.shape_cast %28 : vector<1x1x128xf32> to vector<1x128xf32>
      %30 = vector.broadcast %cst_8 : f32 to vector<1x128xf32>
      %31 = arith.mulf %29, %30 : vector<1x128xf32>
      %c1_21 = arith.constant 1 : index
      %c0_22 = arith.constant 0 : index
      %c0_23 = arith.constant 0 : index
      %32 = vector.load %arg12[%c1_21, %c0_22, %c0_23] : memref<2x1x128xf32, #tpu.memory_space<vmem>>, vector<1x1x128xf32>
      %33 = vector.shape_cast %32 : vector<1x1x128xf32> to vector<1x128xf32>
      %34 = vector.broadcast %cst_8 : f32 to vector<1x128xf32>
      %35 = arith.mulf %33, %34 : vector<1x128xf32>
      %36 = arith.mulf %31, %31 : vector<1x128xf32>
      %37 = arith.subf %35, %36 : vector<1x128xf32>
      %cst_24 = arith.constant 0.000000e+00 : f32
      %38 = vector.broadcast %cst_24 : f32 to vector<1x128xf32>
      %39 = arith.maximumf %37, %38 : vector<1x128xf32>
      %cst_25 = arith.constant 9.99999974E-6 : f32
      %40 = vector.broadcast %cst_25 : f32 to vector<1x128xf32>
      %41 = arith.addf %39, %40 : vector<1x128xf32>
      %42 = math.rsqrt %41 : vector<1x128xf32>
      %c1_26 = arith.constant 1 : index
      %c0_27 = arith.constant 0 : index
      %c0_28 = arith.constant 0 : index
      %43 = vector.load %arg5[%c1_26, %c0_27, %c0_28] : memref<2x1x128xf32, #tpu.memory_space<vmem>>, vector<1x1x128xf32>
      %44 = vector.shape_cast %43 : vector<1x1x128xf32> to vector<1x128xf32>
      %45 = arith.mulf %42, %44 : vector<1x128xf32>
      %c1_29 = arith.constant 1 : index
      %c0_30 = arith.constant 0 : index
      %c0_31 = arith.constant 0 : index
      %46 = vector.load %arg6[%c1_29, %c0_30, %c0_31] : memref<2x1x128xf32, #tpu.memory_space<vmem>>, vector<1x1x128xf32>
      %47 = vector.shape_cast %46 : vector<1x1x128xf32> to vector<1x128xf32>
      %48 = arith.mulf %31, %45 : vector<1x128xf32>
      %49 = arith.subf %47, %48 : vector<1x128xf32>
      %50 = vector.broadcast %45 : vector<1x128xf32> to vector<16x128xf32>
      %51 = arith.mulf %27, %50 : vector<16x128xf32>
      %52 = vector.broadcast %49 : vector<1x128xf32> to vector<16x128xf32>
      %53 = arith.addf %51, %52 : vector<16x128xf32>
      %cst_32 = arith.constant 0.000000e+00 : f32
      %54 = vector.broadcast %cst_32 : f32 to vector<16x128xf32>
      %55 = arith.maximumf %53, %54 : vector<16x128xf32>
      %c0_33 = arith.constant 0 : index
      %c0_34 = arith.constant 0 : index
      %56 = vector.load %arg10[%c0_33, %c0_34] : memref<16x128xf32, #tpu.memory_space<vmem>>, vector<16x128xf32>
      tpu.vector_store %arg10[%c0_33, %c0_34], %55 {strides = array<i32>} : memref<16x128xf32, #tpu.memory_space<vmem>>, vector<16x128xf32>,
    } else {
    }
    %c2_i32 = arith.constant 2 : i32
    %17 = arith.cmpi eq, %arg0, %c2_i32 : i32
    %18 = arith.extui %17 : i1 to i32
    %c0_i32_10 = arith.constant 0 : i32
    %19 = arith.cmpi ne, %18, %c0_i32_10 : i32
    scf.if %19 {
      %c0 = arith.constant 0 : index
      %c0_11 = arith.constant 0 : index
      %20 = vector.load %arg10[%c0, %c0_11] : memref<16x128xf32, #tpu.memory_space<vmem>>, vector<16x128xf32>
      %c0_12 = arith.constant 0 : index
      %c0_13 = arith.constant 0 : index
      %21 = vector.load %arg7[%c0_12, %c0_13] : memref<128x128xf32, #tpu.memory_space<vmem>>, vector<128x128xf32>
      %cst_14 = arith.constant dense<0.000000e+00> : vector<16x128xf32>
      %22 = tpu.matmul %20, %21, %cst_14 {dimension_numbers = #tpu.dot_dimension_numbers<[1], [0], [0], [1], [0, 0, 1, 1], [], []>} : vector<16x128xf32>, vector<128x128xf32>, vector<16x128xf32> -> vector<16x128xf32>
      %c0_15 = arith.constant 0 : index
      %c0_16 = arith.constant 0 : index
      %23 = vector.load %arg8[%c0_15, %c0_16] : memref<1x128xf32, #tpu.memory_space<vmem>>, vector<1x128xf32>
      %24 = vector.broadcast %23 : vector<1x128xf32> to vector<16x128xf32>
      %25 = arith.addf %22, %24 : vector<16x128xf32>
      %c0_17 = arith.constant 0 : index
      %c0_18 = arith.constant 0 : index
      %26 = vector.load %arg9[%c0_17, %c0_18] : memref<16x128xf32, #tpu.memory_space<vmem>>, vector<16x128xf32>
      tpu.vector_store %arg9[%c0_17, %c0_18], %25 {strides = array<i32>} : memref<16x128xf32, #tpu.memory_space<vmem>>, vector<16x128xf32>,
    } else {
    }
    return
  }
  func.func @transform_0(%arg0: i32, %arg1: i32) -> (i32, i32) {
    %c0_i32 = arith.constant 0 : i32
    %c0_i32_0 = arith.constant 0 : i32
    return %arg1, %c0_i32 : i32, i32
  }
  func.func @transform_1(%arg0: i32, %arg1: i32) -> (i32, i32, i32) {
    %c0_i32 = arith.constant 0 : i32
    %c0_i32_0 = arith.constant 0 : i32
    %c0_i32_1 = arith.constant 0 : i32
    %c0_i32_2 = arith.constant 0 : i32
    return %c0_i32, %c0_i32_0, %c0_i32_1 : i32, i32, i32
  }
  func.func @transform_2(%arg0: i32, %arg1: i32) -> (i32, i32, i32) {
    %c0_i32 = arith.constant 0 : i32
    %c0_i32_0 = arith.constant 0 : i32
    %c0_i32_1 = arith.constant 0 : i32
    %c0_i32_2 = arith.constant 0 : i32
    return %c0_i32, %c0_i32_0, %c0_i32_1 : i32, i32, i32
  }
  func.func @transform_3(%arg0: i32, %arg1: i32) -> (i32, i32, i32) {
    %c0_i32 = arith.constant 0 : i32
    %c0_i32_0 = arith.constant 0 : i32
    %c0_i32_1 = arith.constant 0 : i32
    %c0_i32_2 = arith.constant 0 : i32
    return %c0_i32, %c0_i32_0, %c0_i32_1 : i32, i32, i32
  }
  func.func @transform_4(%arg0: i32, %arg1: i32) -> (i32, i32, i32) {
    %c0_i32 = arith.constant 0 : i32
    %c0_i32_0 = arith.constant 0 : i32
    %c0_i32_1 = arith.constant 0 : i32
    %c0_i32_2 = arith.constant 0 : i32
    return %c0_i32, %c0_i32_0, %c0_i32_1 : i32, i32, i32
  }
  func.func @transform_5(%arg0: i32, %arg1: i32) -> (i32, i32) {
    %c0_i32 = arith.constant 0 : i32
    %c0_i32_0 = arith.constant 0 : i32
    %c0_i32_1 = arith.constant 0 : i32
    return %c0_i32, %c0_i32_0 : i32, i32
  }
  func.func @transform_6(%arg0: i32, %arg1: i32) -> (i32, i32) {
    %c0_i32 = arith.constant 0 : i32
    %c0_i32_0 = arith.constant 0 : i32
    %c0_i32_1 = arith.constant 0 : i32
    return %c0_i32, %c0_i32_0 : i32, i32
  }
  func.func @transform_7(%arg0: i32, %arg1: i32) -> (i32, i32) {
    %c2_i32 = arith.constant 2 : i32
    %0 = arith.cmpi eq, %arg0, %c2_i32 : i32
    %c0_i32 = arith.constant 0 : i32
    %1 = arith.select %0, %arg1, %c0_i32 : i32
    %c0_i32_0 = arith.constant 0 : i32
    %c0_i32_1 = arith.constant 0 : i32
    return %1, %c0_i32_0 : i32, i32
  }
}

module attributes {stable_mosaic.version = 11 : i64} {
  func.func @_fused_mlp_kernel(%arg0: i32, %arg1: i32, %arg2: memref<16x128xf32, #tpu.memory_space<vmem>>, %arg3: memref<2x128x128xf32, #tpu.memory_space<vmem>>, %arg4: memref<2x1x128xf32, #tpu.memory_space<vmem>>, %arg5: memref<2x1x128xf32, #tpu.memory_space<vmem>>, %arg6: memref<2x1x128xf32, #tpu.memory_space<vmem>>, %arg7: memref<128x128xf32, #tpu.memory_space<vmem>>, %arg8: memref<1x128xf32, #tpu.memory_space<vmem>>, %arg9: memref<16x128xf32, #tpu.memory_space<vmem>>, %arg10: memref<16x128xf32, #tpu.memory_space<vmem>>, %arg11: memref<2x1x128xf32, #tpu.memory_space<vmem>>, %arg12: memref<2x1x128xf32, #tpu.memory_space<vmem>>) attributes {dimension_semantics = [#tpu.dimension_semantics<arbitrary>, #tpu.dimension_semantics<arbitrary>], iteration_bounds = array<i64: 3, 1>, scalar_prefetch = 0 : i64, scratch_operands = 3 : i64, tpu.core_type = #tpu.core_type<tc>, window_params = [{transform_indices = @transform_0, window_bounds = array<i64: 16, 128>}, {pipeline_mode = #tpu.pipeline_mode<synchronous>, transform_indices = @transform_1, window_bounds = array<i64: 2, 128, 128>}, {pipeline_mode = #tpu.pipeline_mode<synchronous>, transform_indices = @transform_2, window_bounds = array<i64: 2, 1, 128>}, {pipeline_mode = #tpu.pipeline_mode<synchronous>, transform_indices = @transform_3, window_bounds = array<i64: 2, 1, 128>}, {pipeline_mode = #tpu.pipeline_mode<synchronous>, transform_indices = @transform_4, window_bounds = array<i64: 2, 1, 128>}, {pipeline_mode = #tpu.pipeline_mode<synchronous>, transform_indices = @transform_5, window_bounds = array<i64: 128, 128>}, {pipeline_mode = #tpu.pipeline_mode<synchronous>, transform_indices = @transform_6, window_bounds = array<i64: 1, 128>}, {transform_indices = @transform_7, window_bounds = array<i64: 16, 128>}]} {
    %c0_i32 = arith.constant 0 : i32
    %0 = arith.cmpi eq, %arg0, %c0_i32 : i32
    %c0_i32_0 = arith.constant 0 : i32
    %1 = arith.cmpi eq, %arg1, %c0_i32_0 : i32
    %2 = arith.andi %0, %1 : i1
    %3 = arith.extui %2 : i1 to i32
    %c0_i32_1 = arith.constant 0 : i32
    %4 = arith.cmpi ne, %3, %c0_i32_1 : i32
    scf.if %4 {
      %cst_11 = arith.constant 0.000000e+00 : f32
      %20 = vector.broadcast %cst_11 : f32 to vector<2x1x128xf32>
      %c0 = arith.constant 0 : index
      %c0_12 = arith.constant 0 : index
      %c0_13 = arith.constant 0 : index
      %21 = vector.load %arg11[%c0, %c0_12, %c0_13] : memref<2x1x128xf32, #tpu.memory_space<vmem>>, vector<2x1x128xf32>
      tpu.vector_store %arg11[%c0, %c0_12, %c0_13], %20 {strides = array<i32>} : memref<2x1x128xf32, #tpu.memory_space<vmem>>, vector<2x1x128xf32>,
      %cst_14 = arith.constant 0.000000e+00 : f32
      %22 = vector.broadcast %cst_14 : f32 to vector<2x1x128xf32>
      %c0_15 = arith.constant 0 : index
      %c0_16 = arith.constant 0 : index
      %c0_17 = arith.constant 0 : index
      %23 = vector.load %arg12[%c0_15, %c0_16, %c0_17] : memref<2x1x128xf32, #tpu.memory_space<vmem>>, vector<2x1x128xf32>
      tpu.vector_store %arg12[%c0_15, %c0_16, %c0_17], %22 {strides = array<i32>} : memref<2x1x128xf32, #tpu.memory_space<vmem>>, vector<2x1x128xf32>,
      %cst_18 = arith.constant 0.000000e+00 : f32
      %24 = vector.broadcast %cst_18 : f32 to vector<16x128xf32>
      %c0_19 = arith.constant 0 : index
      %c0_20 = arith.constant 0 : index
      %25 = vector.load %arg9[%c0_19, %c0_20] : memref<16x128xf32, #tpu.memory_space<vmem>>, vector<16x128xf32>
      tpu.vector_store %arg9[%c0_19, %c0_20], %24 {strides = array<i32>} : memref<16x128xf32, #tpu.memory_space<vmem>>, vector<16x128xf32>,
    } else {
    }
    %c0_i32_2 = arith.constant 0 : i32
    %5 = arith.cmpi eq, %arg0, %c0_i32_2 : i32
    %6 = arith.extui %5 : i1 to i32
    %c0_i32_3 = arith.constant 0 : i32
    %7 = arith.cmpi ne, %6, %c0_i32_3 : i32
    scf.if %7 {
      %c0 = arith.constant 0 : index
      %c0_11 = arith.constant 0 : index
      %20 = vector.load %arg2[%c0, %c0_11] : memref<16x128xf32, #tpu.memory_space<vmem>>, vector<16x128xf32>
      %c0_12 = arith.constant 0 : index
      %c0_13 = arith.constant 0 : index
      %c0_14 = arith.constant 0 : index
      %21 = vector.load %arg3[%c0_12, %c0_13, %c0_14] : memref<2x128x128xf32, #tpu.memory_space<vmem>>, vector<1x128x128xf32>
      %22 = vector.shape_cast %21 : vector<1x128x128xf32> to vector<128x128xf32>
      %cst_15 = arith.constant dense<0.000000e+00> : vector<16x128xf32>
      %23 = tpu.matmul %20, %22, %cst_15 {dimension_numbers = #tpu.dot_dimension_numbers<[1], [0], [0], [1], [0, 0, 1, 1], [], []>} : vector<16x128xf32>, vector<128x128xf32>, vector<16x128xf32> -> vector<16x128xf32>
      %c0_16 = arith.constant 0 : index
      %c0_17 = arith.constant 0 : index
      %c0_18 = arith.constant 0 : index
      %24 = vector.load %arg4[%c0_16, %c0_17, %c0_18] : memref<2x1x128xf32, #tpu.memory_space<vmem>>, vector<1x1x128xf32>
      %25 = vector.shape_cast %24 : vector<1x1x128xf32> to vector<1x128xf32>
      %26 = vector.broadcast %25 : vector<1x128xf32> to vector<16x128xf32>
      %27 = arith.addf %23, %26 : vector<16x128xf32>
      %c16_i32 = arith.constant 16 : i32
      %28 = arith.muli %arg1, %c16_i32 : i32
      %29 = tpu.iota {dimensions = array<i32: 0>} : vector<16x1xi32>
      %30 = vector.broadcast %28 : i32 to vector<16x1xi32>
      %31 = arith.addi %30, %29 : vector<16x1xi32>
      %c16_i32_19 = arith.constant 16 : i32
      %32 = vector.broadcast %c16_i32_19 : i32 to vector<16x1xi32>
      %33 = arith.cmpi slt, %31, %32 : vector<16x1xi32>
      %cst_20 = arith.constant 0.000000e+00 : f32
      %34 = vector.shape_cast %33 : vector<16x1xi1> to vector<16x1xi1>
      %35 = vector.broadcast %34 : vector<16x1xi1> to vector<16x128xi1>
      %36 = vector.broadcast %cst_20 : f32 to vector<16x128xf32>
      %37 = arith.select %35, %27, %36 : vector<16x128xi1>, vector<16x128xf32>
      %c0_21 = arith.constant 0 : index
      %c0_22 = arith.constant 0 : index
      %c0_23 = arith.constant 0 : index
      %38 = vector.load %arg11[%c0_21, %c0_22, %c0_23] : memref<2x1x128xf32, #tpu.memory_space<vmem>>, vector<1x1x128xf32>
      %39 = vector.shape_cast %38 : vector<1x1x128xf32> to vector<1x128xf32>
      %cst_24 = arith.constant dense<0.000000e+00> : vector<128xf32>
      %40 = vector.multi_reduction <add>, %37, %cst_24 [0] : vector<16x128xf32> to vector<128xf32>
      %41 = vector.shape_cast %40 : vector<128xf32> to vector<1x128xf32>
      %42 = arith.addf %39, %41 : vector<1x128xf32>
      %c0_25 = arith.constant 0 : index
      %c0_26 = arith.constant 0 : index
      %c0_27 = arith.constant 0 : index
      %43 = vector.load %arg11[%c0_25, %c0_26, %c0_27] : memref<2x1x128xf32, #tpu.memory_space<vmem>>, vector<1x1x128xf32>
      %44 = vector.shape_cast %43 : vector<1x1x128xf32> to vector<1x128xf32>
      %45 = vector.shape_cast %42 : vector<1x128xf32> to vector<1x1x128xf32>
      tpu.vector_store %arg11[%c0_25, %c0_26, %c0_27], %45 {strides = array<i32>} : memref<2x1x128xf32, #tpu.memory_space<vmem>>, vector<1x1x128xf32>,
      %c0_28 = arith.constant 0 : index
      %c0_29 = arith.constant 0 : index
      %c0_30 = arith.constant 0 : index
      %46 = vector.load %arg12[%c0_28, %c0_29, %c0_30] : memref<2x1x128xf32, #tpu.memory_space<vmem>>, vector<1x1x128xf32>
      %47 = vector.shape_cast %46 : vector<1x1x128xf32> to vector<1x128xf32>
      %48 = arith.mulf %37, %37 : vector<16x128xf32>
      %cst_31 = arith.constant dense<0.000000e+00> : vector<128xf32>
      %49 = vector.multi_reduction <add>, %48, %cst_31 [0] : vector<16x128xf32> to vector<128xf32>
      %50 = vector.shape_cast %49 : vector<128xf32> to vector<1x128xf32>
      %51 = arith.addf %47, %50 : vector<1x128xf32>
      %c0_32 = arith.constant 0 : index
      %c0_33 = arith.constant 0 : index
      %c0_34 = arith.constant 0 : index
      %52 = vector.load %arg12[%c0_32, %c0_33, %c0_34] : memref<2x1x128xf32, #tpu.memory_space<vmem>>, vector<1x1x128xf32>
      %53 = vector.shape_cast %52 : vector<1x1x128xf32> to vector<1x128xf32>
      %54 = vector.shape_cast %51 : vector<1x128xf32> to vector<1x1x128xf32>
      tpu.vector_store %arg12[%c0_32, %c0_33, %c0_34], %54 {strides = array<i32>} : memref<2x1x128xf32, #tpu.memory_space<vmem>>, vector<1x1x128xf32>,
    } else {
    }
    %c0_i32_4 = arith.constant 0 : i32
    %8 = arith.cmpi sgt, %arg0, %c0_i32_4 : i32
    %9 = arith.extui %8 : i1 to i32
    %cst = arith.constant 6.250000e-02 : f32
    %c0_i32_5 = arith.constant 0 : i32
    %10 = arith.cmpi ne, %9, %c0_i32_5 : i32
    scf.if %10 {
      %c0 = arith.constant 0 : index
      %c0_11 = arith.constant 0 : index
      %20 = vector.load %arg2[%c0, %c0_11] : memref<16x128xf32, #tpu.memory_space<vmem>>, vector<16x128xf32>
      %c0_12 = arith.constant 0 : index
      %c0_13 = arith.constant 0 : index
      %c0_14 = arith.constant 0 : index
      %21 = vector.load %arg3[%c0_12, %c0_13, %c0_14] : memref<2x128x128xf32, #tpu.memory_space<vmem>>, vector<1x128x128xf32>
      %22 = vector.shape_cast %21 : vector<1x128x128xf32> to vector<128x128xf32>
      %cst_15 = arith.constant dense<0.000000e+00> : vector<16x128xf32>
      %23 = tpu.matmul %20, %22, %cst_15 {dimension_numbers = #tpu.dot_dimension_numbers<[1], [0], [0], [1], [0, 0, 1, 1], [], []>} : vector<16x128xf32>, vector<128x128xf32>, vector<16x128xf32> -> vector<16x128xf32>
      %c0_16 = arith.constant 0 : index
      %c0_17 = arith.constant 0 : index
      %c0_18 = arith.constant 0 : index
      %24 = vector.load %arg4[%c0_16, %c0_17, %c0_18] : memref<2x1x128xf32, #tpu.memory_space<vmem>>, vector<1x1x128xf32>
      %25 = vector.shape_cast %24 : vector<1x1x128xf32> to vector<1x128xf32>
      %26 = vector.broadcast %25 : vector<1x128xf32> to vector<16x128xf32>
      %27 = arith.addf %23, %26 : vector<16x128xf32>
      %c0_19 = arith.constant 0 : index
      %c0_20 = arith.constant 0 : index
      %c0_21 = arith.constant 0 : index
      %28 = vector.load %arg11[%c0_19, %c0_20, %c0_21] : memref<2x1x128xf32, #tpu.memory_space<vmem>>, vector<1x1x128xf32>
      %29 = vector.shape_cast %28 : vector<1x1x128xf32> to vector<1x128xf32>
      %30 = vector.broadcast %cst : f32 to vector<1x128xf32>
      %31 = arith.mulf %29, %30 : vector<1x128xf32>
      %c0_22 = arith.constant 0 : index
      %c0_23 = arith.constant 0 : index
      %c0_24 = arith.constant 0 : index
      %32 = vector.load %arg12[%c0_22, %c0_23, %c0_24] : memref<2x1x128xf32, #tpu.memory_space<vmem>>, vector<1x1x128xf32>
      %33 = vector.shape_cast %32 : vector<1x1x128xf32> to vector<1x128xf32>
      %34 = vector.broadcast %cst : f32 to vector<1x128xf32>
      %35 = arith.mulf %33, %34 : vector<1x128xf32>
      %36 = arith.mulf %31, %31 : vector<1x128xf32>
      %37 = arith.subf %35, %36 : vector<1x128xf32>
      %cst_25 = arith.constant 0.000000e+00 : f32
      %38 = vector.broadcast %cst_25 : f32 to vector<1x128xf32>
      %39 = arith.maximumf %37, %38 : vector<1x128xf32>
      %cst_26 = arith.constant 9.99999974E-6 : f32
      %40 = vector.broadcast %cst_26 : f32 to vector<1x128xf32>
      %41 = arith.addf %39, %40 : vector<1x128xf32>
      %42 = math.rsqrt %41 : vector<1x128xf32>
      %c0_27 = arith.constant 0 : index
      %c0_28 = arith.constant 0 : index
      %c0_29 = arith.constant 0 : index
      %43 = vector.load %arg5[%c0_27, %c0_28, %c0_29] : memref<2x1x128xf32, #tpu.memory_space<vmem>>, vector<1x1x128xf32>
      %44 = vector.shape_cast %43 : vector<1x1x128xf32> to vector<1x128xf32>
      %45 = arith.mulf %42, %44 : vector<1x128xf32>
      %c0_30 = arith.constant 0 : index
      %c0_31 = arith.constant 0 : index
      %c0_32 = arith.constant 0 : index
      %46 = vector.load %arg6[%c0_30, %c0_31, %c0_32] : memref<2x1x128xf32, #tpu.memory_space<vmem>>, vector<1x1x128xf32>
      %47 = vector.shape_cast %46 : vector<1x1x128xf32> to vector<1x128xf32>
      %48 = arith.mulf %31, %45 : vector<1x128xf32>
      %49 = arith.subf %47, %48 : vector<1x128xf32>
      %50 = vector.broadcast %45 : vector<1x128xf32> to vector<16x128xf32>
      %51 = arith.mulf %27, %50 : vector<16x128xf32>
      %52 = vector.broadcast %49 : vector<1x128xf32> to vector<16x128xf32>
      %53 = arith.addf %51, %52 : vector<16x128xf32>
      %cst_33 = arith.constant 0.000000e+00 : f32
      %54 = vector.broadcast %cst_33 : f32 to vector<16x128xf32>
      %55 = arith.maximumf %53, %54 : vector<16x128xf32>
      %c0_34 = arith.constant 0 : index
      %c0_35 = arith.constant 0 : index
      %56 = vector.load %arg10[%c0_34, %c0_35] : memref<16x128xf32, #tpu.memory_space<vmem>>, vector<16x128xf32>
      tpu.vector_store %arg10[%c0_34, %c0_35], %55 {strides = array<i32>} : memref<16x128xf32, #tpu.memory_space<vmem>>, vector<16x128xf32>,
    } else {
    }
    %c1_i32 = arith.constant 1 : i32
    %11 = arith.cmpi eq, %arg0, %c1_i32 : i32
    %12 = arith.extui %11 : i1 to i32
    %c0_i32_6 = arith.constant 0 : i32
    %13 = arith.cmpi ne, %12, %c0_i32_6 : i32
    scf.if %13 {
      %c0 = arith.constant 0 : index
      %c0_11 = arith.constant 0 : index
      %20 = vector.load %arg10[%c0, %c0_11] : memref<16x128xf32, #tpu.memory_space<vmem>>, vector<16x128xf32>
      %c1 = arith.constant 1 : index
      %c0_12 = arith.constant 0 : index
      %c0_13 = arith.constant 0 : index
      %21 = vector.load %arg3[%c1, %c0_12, %c0_13] : memref<2x128x128xf32, #tpu.memory_space<vmem>>, vector<1x128x128xf32>
      %22 = vector.shape_cast %21 : vector<1x128x128xf32> to vector<128x128xf32>
      %cst_14 = arith.constant dense<0.000000e+00> : vector<16x128xf32>
      %23 = tpu.matmul %20, %22, %cst_14 {dimension_numbers = #tpu.dot_dimension_numbers<[1], [0], [0], [1], [0, 0, 1, 1], [], []>} : vector<16x128xf32>, vector<128x128xf32>, vector<16x128xf32> -> vector<16x128xf32>
      %c1_15 = arith.constant 1 : index
      %c0_16 = arith.constant 0 : index
      %c0_17 = arith.constant 0 : index
      %24 = vector.load %arg4[%c1_15, %c0_16, %c0_17] : memref<2x1x128xf32, #tpu.memory_space<vmem>>, vector<1x1x128xf32>
      %25 = vector.shape_cast %24 : vector<1x1x128xf32> to vector<1x128xf32>
      %26 = vector.broadcast %25 : vector<1x128xf32> to vector<16x128xf32>
      %27 = arith.addf %23, %26 : vector<16x128xf32>
      %c16_i32 = arith.constant 16 : i32
      %28 = arith.muli %arg1, %c16_i32 : i32
      %29 = tpu.iota {dimensions = array<i32: 0>} : vector<16x1xi32>
      %30 = vector.broadcast %28 : i32 to vector<16x1xi32>
      %31 = arith.addi %30, %29 : vector<16x1xi32>
      %c16_i32_18 = arith.constant 16 : i32
      %32 = vector.broadcast %c16_i32_18 : i32 to vector<16x1xi32>
      %33 = arith.cmpi slt, %31, %32 : vector<16x1xi32>
      %cst_19 = arith.constant 0.000000e+00 : f32
      %34 = vector.shape_cast %33 : vector<16x1xi1> to vector<16x1xi1>
      %35 = vector.broadcast %34 : vector<16x1xi1> to vector<16x128xi1>
      %36 = vector.broadcast %cst_19 : f32 to vector<16x128xf32>
      %37 = arith.select %35, %27, %36 : vector<16x128xi1>, vector<16x128xf32>
      %c1_20 = arith.constant 1 : index
      %c0_21 = arith.constant 0 : index
      %c0_22 = arith.constant 0 : index
      %38 = vector.load %arg11[%c1_20, %c0_21, %c0_22] : memref<2x1x128xf32, #tpu.memory_space<vmem>>, vector<1x1x128xf32>
      %39 = vector.shape_cast %38 : vector<1x1x128xf32> to vector<1x128xf32>
      %cst_23 = arith.constant dense<0.000000e+00> : vector<128xf32>
      %40 = vector.multi_reduction <add>, %37, %cst_23 [0] : vector<16x128xf32> to vector<128xf32>
      %41 = vector.shape_cast %40 : vector<128xf32> to vector<1x128xf32>
      %42 = arith.addf %39, %41 : vector<1x128xf32>
      %c1_24 = arith.constant 1 : index
      %c0_25 = arith.constant 0 : index
      %c0_26 = arith.constant 0 : index
      %43 = vector.load %arg11[%c1_24, %c0_25, %c0_26] : memref<2x1x128xf32, #tpu.memory_space<vmem>>, vector<1x1x128xf32>
      %44 = vector.shape_cast %43 : vector<1x1x128xf32> to vector<1x128xf32>
      %45 = vector.shape_cast %42 : vector<1x128xf32> to vector<1x1x128xf32>
      tpu.vector_store %arg11[%c1_24, %c0_25, %c0_26], %45 {strides = array<i32>} : memref<2x1x128xf32, #tpu.memory_space<vmem>>, vector<1x1x128xf32>,
      %c1_27 = arith.constant 1 : index
      %c0_28 = arith.constant 0 : index
      %c0_29 = arith.constant 0 : index
      %46 = vector.load %arg12[%c1_27, %c0_28, %c0_29] : memref<2x1x128xf32, #tpu.memory_space<vmem>>, vector<1x1x128xf32>
      %47 = vector.shape_cast %46 : vector<1x1x128xf32> to vector<1x128xf32>
      %48 = arith.mulf %37, %37 : vector<16x128xf32>
      %cst_30 = arith.constant dense<0.000000e+00> : vector<128xf32>
      %49 = vector.multi_reduction <add>, %48, %cst_30 [0] : vector<16x128xf32> to vector<128xf32>
      %50 = vector.shape_cast %49 : vector<128xf32> to vector<1x128xf32>
      %51 = arith.addf %47, %50 : vector<1x128xf32>
      %c1_31 = arith.constant 1 : index
      %c0_32 = arith.constant 0 : index
      %c0_33 = arith.constant 0 : index
      %52 = vector.load %arg12[%c1_31, %c0_32, %c0_33] : memref<2x1x128xf32, #tpu.memory_space<vmem>>, vector<1x1x128xf32>
      %53 = vector.shape_cast %52 : vector<1x1x128xf32> to vector<1x128xf32>
      %54 = vector.shape_cast %51 : vector<1x128xf32> to vector<1x1x128xf32>
      tpu.vector_store %arg12[%c1_31, %c0_32, %c0_33], %54 {strides = array<i32>} : memref<2x1x128xf32, #tpu.memory_space<vmem>>, vector<1x1x128xf32>,
    } else {
    }
    %c1_i32_7 = arith.constant 1 : i32
    %14 = arith.cmpi sgt, %arg0, %c1_i32_7 : i32
    %15 = arith.extui %14 : i1 to i32
    %cst_8 = arith.constant 6.250000e-02 : f32
    %c0_i32_9 = arith.constant 0 : i32
    %16 = arith.cmpi ne, %15, %c0_i32_9 : i32
    scf.if %16 {
      %c0 = arith.constant 0 : index
      %c0_11 = arith.constant 0 : index
      %20 = vector.load %arg10[%c0, %c0_11] : memref<16x128xf32, #tpu.memory_space<vmem>>, vector<16x128xf32>
      %c1 = arith.constant 1 : index
      %c0_12 = arith.constant 0 : index
      %c0_13 = arith.constant 0 : index
      %21 = vector.load %arg3[%c1, %c0_12, %c0_13] : memref<2x128x128xf32, #tpu.memory_space<vmem>>, vector<1x128x128xf32>
      %22 = vector.shape_cast %21 : vector<1x128x128xf32> to vector<128x128xf32>
      %cst_14 = arith.constant dense<0.000000e+00> : vector<16x128xf32>
      %23 = tpu.matmul %20, %22, %cst_14 {dimension_numbers = #tpu.dot_dimension_numbers<[1], [0], [0], [1], [0, 0, 1, 1], [], []>} : vector<16x128xf32>, vector<128x128xf32>, vector<16x128xf32> -> vector<16x128xf32>
      %c1_15 = arith.constant 1 : index
      %c0_16 = arith.constant 0 : index
      %c0_17 = arith.constant 0 : index
      %24 = vector.load %arg4[%c1_15, %c0_16, %c0_17] : memref<2x1x128xf32, #tpu.memory_space<vmem>>, vector<1x1x128xf32>
      %25 = vector.shape_cast %24 : vector<1x1x128xf32> to vector<1x128xf32>
      %26 = vector.broadcast %25 : vector<1x128xf32> to vector<16x128xf32>
      %27 = arith.addf %23, %26 : vector<16x128xf32>
      %c1_18 = arith.constant 1 : index
      %c0_19 = arith.constant 0 : index
      %c0_20 = arith.constant 0 : index
      %28 = vector.load %arg11[%c1_18, %c0_19, %c0_20] : memref<2x1x128xf32, #tpu.memory_space<vmem>>, vector<1x1x128xf32>
      %29 = vector.shape_cast %28 : vector<1x1x128xf32> to vector<1x128xf32>
      %30 = vector.broadcast %cst_8 : f32 to vector<1x128xf32>
      %31 = arith.mulf %29, %30 : vector<1x128xf32>
      %c1_21 = arith.constant 1 : index
      %c0_22 = arith.constant 0 : index
      %c0_23 = arith.constant 0 : index
      %32 = vector.load %arg12[%c1_21, %c0_22, %c0_23] : memref<2x1x128xf32, #tpu.memory_space<vmem>>, vector<1x1x128xf32>
      %33 = vector.shape_cast %32 : vector<1x1x128xf32> to vector<1x128xf32>
      %34 = vector.broadcast %cst_8 : f32 to vector<1x128xf32>
      %35 = arith.mulf %33, %34 : vector<1x128xf32>
      %36 = arith.mulf %31, %31 : vector<1x128xf32>
      %37 = arith.subf %35, %36 : vector<1x128xf32>
      %cst_24 = arith.constant 0.000000e+00 : f32
      %38 = vector.broadcast %cst_24 : f32 to vector<1x128xf32>
      %39 = arith.maximumf %37, %38 : vector<1x128xf32>
      %cst_25 = arith.constant 9.99999974E-6 : f32
      %40 = vector.broadcast %cst_25 : f32 to vector<1x128xf32>
      %41 = arith.addf %39, %40 : vector<1x128xf32>
      %42 = math.rsqrt %41 : vector<1x128xf32>
      %c1_26 = arith.constant 1 : index
      %c0_27 = arith.constant 0 : index
      %c0_28 = arith.constant 0 : index
      %43 = vector.load %arg5[%c1_26, %c0_27, %c0_28] : memref<2x1x128xf32, #tpu.memory_space<vmem>>, vector<1x1x128xf32>
      %44 = vector.shape_cast %43 : vector<1x1x128xf32> to vector<1x128xf32>
      %45 = arith.mulf %42, %44 : vector<1x128xf32>
      %c1_29 = arith.constant 1 : index
      %c0_30 = arith.constant 0 : index
      %c0_31 = arith.constant 0 : index
      %46 = vector.load %arg6[%c1_29, %c0_30, %c0_31] : memref<2x1x128xf32, #tpu.memory_space<vmem>>, vector<1x1x128xf32>
      %47 = vector.shape_cast %46 : vector<1x1x128xf32> to vector<1x128xf32>
      %48 = arith.mulf %31, %45 : vector<1x128xf32>
      %49 = arith.subf %47, %48 : vector<1x128xf32>
      %50 = vector.broadcast %45 : vector<1x128xf32> to vector<16x128xf32>
      %51 = arith.mulf %27, %50 : vector<16x128xf32>
      %52 = vector.broadcast %49 : vector<1x128xf32> to vector<16x128xf32>
      %53 = arith.addf %51, %52 : vector<16x128xf32>
      %cst_32 = arith.constant 0.000000e+00 : f32
      %54 = vector.broadcast %cst_32 : f32 to vector<16x128xf32>
      %55 = arith.maximumf %53, %54 : vector<16x128xf32>
      %c0_33 = arith.constant 0 : index
      %c0_34 = arith.constant 0 : index
      %56 = vector.load %arg10[%c0_33, %c0_34] : memref<16x128xf32, #tpu.memory_space<vmem>>, vector<16x128xf32>
      tpu.vector_store %arg10[%c0_33, %c0_34], %55 {strides = array<i32>} : memref<16x128xf32, #tpu.memory_space<vmem>>, vector<16x128xf32>,
    } else {
    }
    %c2_i32 = arith.constant 2 : i32
    %17 = arith.cmpi eq, %arg0, %c2_i32 : i32
    %18 = arith.extui %17 : i1 to i32
    %c0_i32_10 = arith.constant 0 : i32
    %19 = arith.cmpi ne, %18, %c0_i32_10 : i32
    scf.if %19 {
      %c0 = arith.constant 0 : index
      %c0_11 = arith.constant 0 : index
      %20 = vector.load %arg10[%c0, %c0_11] : memref<16x128xf32, #tpu.memory_space<vmem>>, vector<16x128xf32>
      %c0_12 = arith.constant 0 : index
      %c0_13 = arith.constant 0 : index
      %21 = vector.load %arg7[%c0_12, %c0_13] : memref<128x128xf32, #tpu.memory_space<vmem>>, vector<128x128xf32>
      %cst_14 = arith.constant dense<0.000000e+00> : vector<16x128xf32>
      %22 = tpu.matmul %20, %21, %cst_14 {dimension_numbers = #tpu.dot_dimension_numbers<[1], [0], [0], [1], [0, 0, 1, 1], [], []>} : vector<16x128xf32>, vector<128x128xf32>, vector<16x128xf32> -> vector<16x128xf32>
      %c0_15 = arith.constant 0 : index
      %c0_16 = arith.constant 0 : index
      %23 = vector.load %arg8[%c0_15, %c0_16] : memref<1x128xf32, #tpu.memory_space<vmem>>, vector<1x128xf32>
      %24 = vector.broadcast %23 : vector<1x128xf32> to vector<16x128xf32>
      %25 = arith.addf %22, %24 : vector<16x128xf32>
      %c0_17 = arith.constant 0 : index
      %c0_18 = arith.constant 0 : index
      %26 = vector.load %arg9[%c0_17, %c0_18] : memref<16x128xf32, #tpu.memory_space<vmem>>, vector<16x128xf32>
      tpu.vector_store %arg9[%c0_17, %c0_18], %25 {strides = array<i32>} : memref<16x128xf32, #tpu.memory_space<vmem>>, vector<16x128xf32>,
    } else {
    }
    return
  }
  func.func @transform_0(%arg0: i32, %arg1: i32) -> (i32, i32) {
    %c0_i32 = arith.constant 0 : i32
    %c0_i32_0 = arith.constant 0 : i32
    return %arg1, %c0_i32 : i32, i32
  }
  func.func @transform_1(%arg0: i32, %arg1: i32) -> (i32, i32, i32) {
    %c0_i32 = arith.constant 0 : i32
    %c0_i32_0 = arith.constant 0 : i32
    %c0_i32_1 = arith.constant 0 : i32
    %c0_i32_2 = arith.constant 0 : i32
    return %c0_i32, %c0_i32_0, %c0_i32_1 : i32, i32, i32
  }
  func.func @transform_2(%arg0: i32, %arg1: i32) -> (i32, i32, i32) {
    %c0_i32 = arith.constant 0 : i32
    %c0_i32_0 = arith.constant 0 : i32
    %c0_i32_1 = arith.constant 0 : i32
    %c0_i32_2 = arith.constant 0 : i32
    return %c0_i32, %c0_i32_0, %c0_i32_1 : i32, i32, i32
  }
  func.func @transform_3(%arg0: i32, %arg1: i32) -> (i32, i32, i32) {
    %c0_i32 = arith.constant 0 : i32
    %c0_i32_0 = arith.constant 0 : i32
    %c0_i32_1 = arith.constant 0 : i32
    %c0_i32_2 = arith.constant 0 : i32
    return %c0_i32, %c0_i32_0, %c0_i32_1 : i32, i32, i32
  }
  func.func @transform_4(%arg0: i32, %arg1: i32) -> (i32, i32, i32) {
    %c0_i32 = arith.constant 0 : i32
    %c0_i32_0 = arith.constant 0 : i32
    %c0_i32_1 = arith.constant 0 : i32
    %c0_i32_2 = arith.constant 0 : i32
    return %c0_i32, %c0_i32_0, %c0_i32_1 : i32, i32, i32
  }
  func.func @transform_5(%arg0: i32, %arg1: i32) -> (i32, i32) {
    %c0_i32 = arith.constant 0 : i32
    %c0_i32_0 = arith.constant 0 : i32
    %c0_i32_1 = arith.constant 0 : i32
    return %c0_i32, %c0_i32_0 : i32, i32
  }
  func.func @transform_6(%arg0: i32, %arg1: i32) -> (i32, i32) {
    %c0_i32 = arith.constant 0 : i32
    %c0_i32_0 = arith.constant 0 : i32
    %c0_i32_1 = arith.constant 0 : i32
    return %c0_i32, %c0_i32_0 : i32, i32
  }
  func.func @transform_7(%arg0: i32, %arg1: i32) -> (i32, i32) {
    %c2_i32 = arith.constant 2 : i32
    %0 = arith.cmpi eq, %arg0, %c2_i32 : i32
    %c0_i32 = arith.constant 0 : i32
    %1 = arith.select %0, %arg1, %c0_i32 : i32
    %c0_i32_0 = arith.constant 0 : i32
    %c0_i32_1 = arith.constant 0 : i32
    return %1, %c0_i32_0 : i32, i32
  }
}

</mosaic_0001>

<llo_original>
// kernel: _mlp_fused_pallas.1
$region0: #{_mlp_fused_pallas.1}
  #allocation0 [shape = 'u32[]', space=smem, size = 0x4, offset = 0x4, fixed_abs, tag = 'smem constant byte address 0x4 - core index']
  #allocation1 [shape = 'u32[144,128]{1,0:T(1,128)}', space=vmem, size = 0x12000, scoped, tag = 'internal scratch']
  #allocation2 [shape = 'f32[16,128]{1,0:T(8,128)}', space=vmem, size = 0x2000, scoped, tag = 'scratch operand']
  #allocation3 [shape = 'f32[2,1,128]{2,1,0:T(1,128)}', space=vmem, size = 0x400, scoped, tag = 'scratch operand']
  #allocation4 [shape = 'f32[2,1,128]{2,1,0:T(1,128)}', space=vmem, size = 0x400, scoped, tag = 'scratch operand']
  %s0 = inlined_call_operand.hbm [shape: f32[16,128], index: 0, kind: input, shape index: {}]
  %s1 = inlined_call_operand.hbm [shape: f32[2,128,128], index: 1, kind: input, shape index: {}]
  %s2 = inlined_call_operand.vmem [shape: f32[2,1,128], index: 2, kind: input, shape index: {}]
  %s3 = inlined_call_operand.vmem [shape: f32[2,1,128], index: 3, kind: input, shape index: {}]
  %s4 = inlined_call_operand.vmem [shape: f32[2,1,128], index: 4, kind: input, shape index: {}]
  %s5 = inlined_call_operand.hbm [shape: f32[128,128], index: 5, kind: input, shape index: {}]
  %s6 = inlined_call_operand.vmem [shape: f32[1,128], index: 6, kind: input, shape index: {}]
  %s7 = inlined_call_operand.hbm [shape: f32[16,128], index: 7, kind: output, shape index: {}]
  %s8 = sld [smem:[#allocation0]]
  $region97: #{_mlp_fused_pallas.1} parent=0
    _
  %s10 = ssub.s32 1, %s8
  %s11 = scalar_select 0, %s10, %s8
  $region1: #{_mlp_fused_pallas.1} parent=0
    #allocation5 [shape = 'u8[8192]{0}', space=vmem, size = 0x2000, scoped, tag = 'input window, operand 0, single buffered']
    #allocation6 [shape = 's32[2]{0}', space=sflag, size = 0x8, scoped, tag = 'scoped memory for _mlp_fused_pallas.1']
    #allocation7 [shape = 's32[2]{0}', space=sflag, size = 0x8, scoped, tag = 'scoped memory for _mlp_fused_pallas.1']
    #allocation8 [shape = 'u8[131072]{0}', space=vmem, size = 0x20000, scoped, tag = 'input window, operand 1, single buffered']
    #allocation9 [shape = 's32[1]{0}', space=sflag, size = 0x4, scoped, tag = 'scoped memory for _mlp_fused_pallas.1']
    #allocation10 [shape = 'u8[65536]{0}', space=vmem, size = 0x10000, scoped, tag = 'input window, operand 5, single buffered']
    #allocation11 [shape = 'u8[16384]{0}', space=vmem, size = 0x4000, scoped, tag = 'output window, operand 0']
    %12 = vsyncpa [#allocation6], 0
    %13 = vsyncpa [#allocation9], 0
    %14 = vsyncpa [#allocation7], 0
    %s15 = scalar_lea.sflag [#allocation7], 1
    %16 = vsyncpa %s15, 0
    loop: start=0, step=1, limit=5
    $region2: #{_mlp_fused_pallas.1} parent=1 // loop_pre_header
      _
    $region3: #{_mlp_fused_pallas.1} parent=1 // loop_header
      %s18 = sphi 0, %s22
      %p19 = scmp.ge.s32.totalorder %s18, 5
      %s25 = sphi 0, %s37
      %s26 = sphi 0, %s33
      %s27 = sphi 0, %s25
      %s28 = sphi 0, %s26
      %s29 = sphi 0, %s27
      %s30 = sphi 0, %s28
      %s40 = sphi 0, %s42
      %s43 = sphi 0, %s40
      %s44 = sphi 0, %s43
      %s60 = sphi 0, %s44
      %s64 = sphi 0, %s64
      %s66 = sphi 0, %s64
      %s67 = sphi 0, %s66
      %s81 = sphi 0, %s67
      %s85 = sphi 0, %s85
      %s87 = sphi 0, %s85
      %s88 = sphi 0, %s87
      %s102 = sphi 0, %s88
      %s106 = sphi 0, %s106
      %s108 = sphi 0, %s106
      %s109 = sphi 0, %s108
      %s123 = sphi 0, %s109
      %s127 = sphi 0, %s127
      %s129 = sphi 0, %s127
      %s130 = sphi 0, %s129
      %s144 = sphi 0, %s130
      %s148 = sphi 0, %s148
      %s150 = sphi 0, %s148
      %s151 = sphi 0, %s150
      %s165 = sphi 0, %s151
      %s169 = sphi 0, %s169
      %s171 = sphi 0, %s169
      %s172 = sphi 0, %s171
      %s186 = sphi 0, %s172
      %s196 = sphi 0, %s198
      %s199 = sphi 0, %s196
      %s200 = sphi 0, %s199
      %s216 = sphi 0, %s200
    $region4: #{_mlp_fused_pallas.1} parent=1 // loop_header_branch
      %21 = sbr.rel (%p19) target = $region8
    $region5: #{_mlp_fused_pallas.1} parent=1 // loop_body
      %s23 = ssub.s32 %s18, 1
      %s24 = ssub.s32 %s18, 2
      %s31 = sadd.s32 1, %s26
      %p32 = scmp.ge.s32.totalorder %s31, 1
      %s33 = scalar_select %p32, 0, %s31
      %s34 = sadd.s32 1, %s25
      %s35 = scalar_select %p32, %s34, %s25
      %p36 = scmp.ge.s32.totalorder %s35, 3
      %s37 = scalar_select %p36, 0, %s35
      %s38 = ssub.s32 %s26, %s33
      %p39 = scmp.eq.s32.totalorder %s38, 0
      %s41 = sadd.s32 %s40, 1
      %s42 = scalar_select %p39, %s40, %s41
      %p45 = pneg %p39
      %p46 = scmp.eq.s32.totalorder %s18, 2
      %p47 = por %p45, %p46
      %p48 = scmp.ne.s32.totalorder %s40, %s43
      %p49 = scmp.eq.s32.totalorder %s18, 0
      %p50 = por %p48, %p49
      %p51 = scmp.ne.s32.totalorder %s40, %s43
      %p52 = scmp.eq.s32.totalorder %s23, 2
      %p53 = por %p51, %p52
      %p54 = scmp.ne.s32.totalorder %s43, %s44
      %p55 = scmp.eq.s32.totalorder %s23, 0
      %p56 = por %p54, %p55
      %p57 = scmp.ne.s32.totalorder %s43, %s44
      %p58 = scmp.eq.s32.totalorder %s24, 2
      %p59 = por %p57, %p58
      %p61 = scmp.ne.s32.totalorder %s44, %s60
      %p62 = scmp.eq.s32.totalorder %s24, 0
      %p63 = por %p61, %p62
      %s65 = sadd.s32 %s64, 1
      %p68 = scmp.eq.s32.totalorder %s18, 2
      %p69 = scmp.ne.s32.totalorder %s64, %s66
      %p70 = scmp.eq.s32.totalorder %s18, 0
      %p71 = por %p69, %p70
      %p72 = scmp.ne.s32.totalorder %s64, %s66
      %p73 = scmp.eq.s32.totalorder %s23, 2
      %p74 = por %p72, %p73
      %p75 = scmp.ne.s32.totalorder %s66, %s67
      %p76 = scmp.eq.s32.totalorder %s23, 0
      %p77 = por %p75, %p76
      %p78 = scmp.ne.s32.totalorder %s66, %s67
      %p79 = scmp.eq.s32.totalorder %s24, 2
      %p80 = por %p78, %p79
      %p82 = scmp.ne.s32.totalorder %s67, %s81
      %p83 = scmp.eq.s32.totalorder %s24, 0
      %p84 = por %p82, %p83
      %s86 = sadd.s32 %s85, 1
      %p89 = scmp.eq.s32.totalorder %s18, 2
      %p90 = scmp.ne.s32.totalorder %s85, %s87
      %p91 = scmp.eq.s32.totalorder %s18, 0
      %p92 = por %p90, %p91
      %p93 = scmp.ne.s32.totalorder %s85, %s87
      %p94 = scmp.eq.s32.totalorder %s23, 2
      %p95 = por %p93, %p94
      %p96 = scmp.ne.s32.totalorder %s87, %s88
      %p97 = scmp.eq.s32.totalorder %s23, 0
      %p98 = por %p96, %p97
      %p99 = scmp.ne.s32.totalorder %s87, %s88
      %p100 = scmp.eq.s32.totalorder %s24, 2
      %p101 = por %p99, %p100
      %p103 = scmp.ne.s32.totalorder %s88, %s102
      %p104 = scmp.eq.s32.totalorder %s24, 0
      %p105 = por %p103, %p104
      %s107 = sadd.s32 %s106, 1
      %p110 = scmp.eq.s32.totalorder %s18, 2
      %p111 = scmp.ne.s32.totalorder %s106, %s108
      %p112 = scmp.eq.s32.totalorder %s18, 0
      %p113 = por %p111, %p112
      %p114 = scmp.ne.s32.totalorder %s106, %s108
      %p115 = scmp.eq.s32.totalorder %s23, 2
      %p116 = por %p114, %p115
      %p117 = scmp.ne.s32.totalorder %s108, %s109
      %p118 = scmp.eq.s32.totalorder %s23, 0
      %p119 = por %p117, %p118
      %p120 = scmp.ne.s32.totalorder %s108, %s109
      %p121 = scmp.eq.s32.totalorder %s24, 2
      %p122 = por %p120, %p121
      %p124 = scmp.ne.s32.totalorder %s109, %s123
      %p125 = scmp.eq.s32.totalorder %s24, 0
      %p126 = por %p124, %p125
      %s128 = sadd.s32 %s127, 1
      %p131 = scmp.eq.s32.totalorder %s18, 2
      %p132 = scmp.ne.s32.totalorder %s127, %s129
      %p133 = scmp.eq.s32.totalorder %s18, 0
      %p134 = por %p132, %p133
      %p135 = scmp.ne.s32.totalorder %s127, %s129
      %p136 = scmp.eq.s32.totalorder %s23, 2
      %p137 = por %p135, %p136
      %p138 = scmp.ne.s32.totalorder %s129, %s130
      %p139 = scmp.eq.s32.totalorder %s23, 0
      %p140 = por %p138, %p139
      %p141 = scmp.ne.s32.totalorder %s129, %s130
      %p142 = scmp.eq.s32.totalorder %s24, 2
      %p143 = por %p141, %p142
      %p145 = scmp.ne.s32.totalorder %s130, %s144
      %p146 = scmp.eq.s32.totalorder %s24, 0
      %p147 = por %p145, %p146
      %s149 = sadd.s32 %s148, 1
      %p152 = scmp.eq.s32.totalorder %s18, 2
      %p153 = scmp.ne.s32.totalorder %s148, %s150
      %p154 = scmp.eq.s32.totalorder %s18, 0
      %p155 = por %p153, %p154
      %p156 = scmp.ne.s32.totalorder %s148, %s150
      %p157 = scmp.eq.s32.totalorder %s23, 2
      %p158 = por %p156, %p157
      %p159 = scmp.ne.s32.totalorder %s150, %s151
      %p160 = scmp.eq.s32.totalorder %s23, 0
      %p161 = por %p159, %p160
      %p162 = scmp.ne.s32.totalorder %s150, %s151
      %p163 = scmp.eq.s32.totalorder %s24, 2
      %p164 = por %p162, %p163
      %p166 = scmp.ne.s32.totalorder %s151, %s165
      %p167 = scmp.eq.s32.totalorder %s24, 0
      %p168 = por %p166, %p167
      %s170 = sadd.s32 %s169, 1
      %p173 = scmp.eq.s32.totalorder %s18, 2
      %p174 = scmp.ne.s32.totalorder %s169, %s171
      %p175 = scmp.eq.s32.totalorder %s18, 0
      %p176 = por %p174, %p175
      %p177 = scmp.ne.s32.totalorder %s169, %s171
      %p178 = scmp.eq.s32.totalorder %s23, 2
      %p179 = por %p177, %p178
      %p180 = scmp.ne.s32.totalorder %s171, %s172
      %p181 = scmp.eq.s32.totalorder %s23, 0
      %p182 = por %p180, %p181
      %p183 = scmp.ne.s32.totalorder %s171, %s172
      %p184 = scmp.eq.s32.totalorder %s24, 2
      %p185 = por %p183, %p184
      %p187 = scmp.ne.s32.totalorder %s172, %s186
      %p188 = scmp.eq.s32.totalorder %s24, 0
      %p189 = por %p187, %p188
      %p190 = scmp.eq.s32.totalorder %s25, 2
      %s191 = scalar_select %p190, %s26, 0
      %p192 = scmp.eq.s32.totalorder %s37, 2
      %s193 = scalar_select %p192, %s33, 0
      %s194 = ssub.s32 %s191, %s193
      %p195 = scmp.eq.s32.totalorder %s194, 0
      %s197 = sadd.s32 %s196, 1
      %s198 = scalar_select %p195, %s196, %s197
      %p201 = pneg %p195
      %p202 = scmp.eq.s32.totalorder %s18, 2
      %p203 = por %p201, %p202
      %p204 = scmp.ne.s32.totalorder %s196, %s199
      %p205 = scmp.eq.s32.totalorder %s18, 0
      %p206 = por %p204, %p205
      %p207 = scmp.ne.s32.totalorder %s196, %s199
      %p208 = scmp.eq.s32.totalorder %s23, 2
      %p209 = por %p207, %p208
      %p210 = scmp.ne.s32.totalorder %s199, %s200
      %p211 = scmp.eq.s32.totalorder %s23, 0
      %p212 = por %p210, %p211
      %p213 = scmp.ne.s32.totalorder %s199, %s200
      %p214 = scmp.eq.s32.totalorder %s24, 2
      %p215 = por %p213, %p214
      %p217 = scmp.ne.s32.totalorder %s200, %s216
      %p218 = scmp.eq.s32.totalorder %s24, 0
      %p219 = por %p217, %p218
      %p220 = scmp.le.s32.totalorder 1, %s18
      %p221 = scmp.lt.s32.totalorder %s18, 4
      %p222 = pnand %p220, %p221
      %p223 = pneg %p222
      // Predicated region
      $region9: #{_mlp_fused_pallas.1} parent=5 // pred_check
        _
      $region10: #{_mlp_fused_pallas.1} parent=5 // pred_check_branch
        %225 = sbr.rel (%p222) target = $region12
      $region11: #{_mlp_fused_pallas.1} parent=5 // pred_region
        %s226 = ssub.s32 %s18, 1
        // Predicated region
        $region13: #{_mlp_fused_pallas.1} parent=11 // pred_check
          %p227 = pneg %p56
        $region14: #{_mlp_fused_pallas.1} parent=11 // pred_check_branch
          %229 = sbr.rel (%p227) target = $region16
        $region15: #{_mlp_fused_pallas.1} parent=11 // pred_region
          %s230 = smul.u32 2, %s28
          %s232 = ssub.s32 256, 256
          %233 = vsyncadd [#allocation6], %s232
          %s234 = smul.addr %s230, 128
          %s235 = scalar_lea.hbm %s0, %s234
          %s236 = sshll.u32 [#allocation5], 4
          %s237 = int_to_ptr.vmem [resolvable:$true] %s236
          %242 = dma.hbm_to_vmem [thread:$0]  %s235, 256, %s237, [#allocation6], 128, 128, 8
        $region16: #{_mlp_fused_pallas.1} parent=11 // pred_fallthru
          _
        // Predicated region
        $region17: #{_mlp_fused_pallas.1} parent=11 // pred_check
          %p243 = pneg %p77
        $region18: #{_mlp_fused_pallas.1} parent=11 // pred_check_branch
          %245 = sbr.rel (%p243) target = $region20
        $region19: #{_mlp_fused_pallas.1} parent=11 // pred_region
          %s247 = ssub.s32 4096, 4096
          %248 = vsyncadd [#allocation9], %s247
          %s249 = sshll.u32 [#allocation8], 4
          %s250 = int_to_ptr.vmem [resolvable:$true] %s249
          %255 = dma.hbm_to_vmem [thread:$0]  %s1, 4096, %s250, [#allocation9], 128, 128, 8
        $region20: #{_mlp_fused_pallas.1} parent=11 // pred_fallthru
          _
        // Predicated region
        $region21: #{_mlp_fused_pallas.1} parent=11 // pred_check
          %p256 = pneg %p98
        $region22: #{_mlp_fused_pallas.1} parent=11 // pred_check_branch
          %258 = sbr.rel (%p256) target = $region24
        $region23: #{_mlp_fused_pallas.1} parent=11 // pred_region
          _
        $region24: #{_mlp_fused_pallas.1} parent=11 // pred_fallthru
          _
        // Predicated region
        $region25: #{_mlp_fused_pallas.1} parent=11 // pred_check
          %p259 = pneg %p119
        $region26: #{_mlp_fused_pallas.1} parent=11 // pred_check_branch
          %261 = sbr.rel (%p259) target = $region28
        $region27: #{_mlp_fused_pallas.1} parent=11 // pred_region
          _
        $region28: #{_mlp_fused_pallas.1} parent=11 // pred_fallthru
          _
        // Predicated region
        $region29: #{_mlp_fused_pallas.1} parent=11 // pred_check
          %p262 = pneg %p140
        $region30: #{_mlp_fused_pallas.1} parent=11 // pred_check_branch
          %264 = sbr.rel (%p262) target = $region32
        $region31: #{_mlp_fused_pallas.1} parent=11 // pred_region
          _
        $region32: #{_mlp_fused_pallas.1} parent=11 // pred_fallthru
          _
        // Predicated region
        $region33: #{_mlp_fused_pallas.1} parent=11 // pred_check
          %p265 = pneg %p161
        $region34: #{_mlp_fused_pallas.1} parent=11 // pred_check_branch
          %267 = sbr.rel (%p265) target = $region36
        $region35: #{_mlp_fused_pallas.1} parent=11 // pred_region
          %s269 = ssub.s32 2048, 2048
          %270 = vsyncadd [#allocation9], %s269
          %s271 = sshll.u32 [#allocation10], 4
          %s272 = int_to_ptr.vmem [resolvable:$true] %s271
          %277 = dma.hbm_to_vmem [thread:$0]  %s5, 2048, %s272, [#allocation9], 128, 128, 8
        $region36: #{_mlp_fused_pallas.1} parent=11 // pred_fallthru
          _
        // Predicated region
        $region37: #{_mlp_fused_pallas.1} parent=11 // pred_check
          %p278 = pneg %p182
        $region38: #{_mlp_fused_pallas.1} parent=11 // pred_check_branch
          %280 = sbr.rel (%p278) target = $region40
        $region39: #{_mlp_fused_pallas.1} parent=11 // pred_region
          _
        $region40: #{_mlp_fused_pallas.1} parent=11 // pred_fallthru
          _
      $region12: #{_mlp_fused_pallas.1} parent=5 // pred_fallthru
        _
      %p281 = scmp.lt.s32.totalorder %s18, 3
      // Predicated region
      $region41: #{_mlp_fused_pallas.1} parent=5 // pred_check
        %p282 = pneg %p281
      $region42: #{_mlp_fused_pallas.1} parent=5 // pred_check_branch
        %284 = sbr.rel (%p282) target = $region44
      $region43: #{_mlp_fused_pallas.1} parent=5 // pred_region
        _
      $region44: #{_mlp_fused_pallas.1} parent=5 // pred_fallthru
        _
      %p285 = scmp.le.s32.totalorder 1, %s18
      %p286 = scmp.lt.s32.totalorder %s18, 4
      %p287 = pnand %p285, %p286
      %p288 = pneg %p287
      // Predicated region
      $region45: #{_mlp_fused_pallas.1} parent=5 // pred_check
        _
      $region46: #{_mlp_fused_pallas.1} parent=5 // pred_check_branch
        %290 = sbr.rel (%p287) target = $region48
      $region47: #{_mlp_fused_pallas.1} parent=5 // pred_region
        %s291 = ssub.s32 %s18, 1
        // Predicated region
        $region49: #{_mlp_fused_pallas.1} parent=47 // pred_check
          %p292 = pneg %p56
        $region50: #{_mlp_fused_pallas.1} parent=47 // pred_check_branch
          %294 = sbr.rel (%p292) target = $region52
        $region51: #{_mlp_fused_pallas.1} parent=47 // pred_region
          %295 = dma.done [#allocation6], 256
        $region52: #{_mlp_fused_pallas.1} parent=47 // pred_fallthru
          _
        // Predicated region
        $region53: #{_mlp_fused_pallas.1} parent=47 // pred_check
          %p296 = pneg %p77
        $region54: #{_mlp_fused_pallas.1} parent=47 // pred_check_branch
          %298 = sbr.rel (%p296) target = $region56
        $region55: #{_mlp_fused_pallas.1} parent=47 // pred_region
          %299 = dma.done [#allocation9], 4096
        $region56: #{_mlp_fused_pallas.1} parent=47 // pred_fallthru
          _
        // Predicated region
        $region57: #{_mlp_fused_pallas.1} parent=47 // pred_check
          %p300 = pneg %p161
        $region58: #{_mlp_fused_pallas.1} parent=47 // pred_check_branch
          %302 = sbr.rel (%p300) target = $region60
        $region59: #{_mlp_fused_pallas.1} parent=47 // pred_region
          %303 = dma.done [#allocation9], 2048
        $region60: #{_mlp_fused_pallas.1} parent=47 // pred_fallthru
          _
        %p304 = pneg %p56
        %p305 = pneg %p53
        %p306 = pneg %p77
        %p307 = pneg %p74
        %p308 = pneg %p98
        %p309 = pneg %p95
        %p310 = pneg %p119
        %p311 = pneg %p116
        %p312 = pneg %p140
        %p313 = pneg %p137
        %p314 = pneg %p161
        %p315 = pneg %p158
        %p316 = pneg %p182
        %p317 = pneg %p179
        %p318 = pneg %p212
        %p319 = pneg %p209
        %s320 = sand.u32 %s199, 1
        %s321 = scalar_lea.sflag [#allocation7], %s320
        %s322 = sand.u32 %s199, 1
        %s323 = smul.addr %s322, 16
        %s324 = scalar_lea.vmem [#allocation11], %s323
        %s325 = smul.u32 2, %s28
        %p326 = scmp.eq.s32.totalorder %s27, 2
        %s327 = scalar_select %p326, %s28, 0
        %s328 = smul.u32 2, %s327
        %p329 = scmp.eq.s32.totalorder %s27, 0
        %p330 = scmp.eq.s32.totalorder %s28, 0
        %p331 = pnand %p329, %p330
        %p332 = pneg %p331
        // Predicated region
        $region61: #{_mlp_fused_pallas.1} parent=47 // pred_check
          _
        $region62: #{_mlp_fused_pallas.1} parent=47 // pred_check_branch
          %334 = sbr.rel (%p331) target = $region64
        $region63: #{_mlp_fused_pallas.1} parent=47 // pred_region
          %335 = vst [vmem:[#allocation3] sm:$0x1] 0.0
          %336 = vst [vmem:[#allocation3 + $0x1] sm:$0x1] 0.0
          %337 = vst [vmem:[#allocation4] sm:$0x1] 0.0
          %338 = vst [vmem:[#allocation4 + $0x1] sm:$0x1] 0.0
          %339 = vst [vmem:[%s324] sm:$0xff] 0.0
          %340 = vst [vmem:[%s324 + $0x8] sm:$0xff] 0.0
        $region64: #{_mlp_fused_pallas.1} parent=47 // pred_fallthru
          _
        // Predicated region
        $region65: #{_mlp_fused_pallas.1} parent=47 // pred_check
          %p341 = pneg %p329
        $region66: #{_mlp_fused_pallas.1} parent=47 // pred_check_branch
          %343 = sbr.rel (%p341) target = $region68
        $region67: #{_mlp_fused_pallas.1} parent=47 // pred_region
          %v344 = vld [vmem:[#allocation5] sm:$0xff]
          %v345 = vld [vmem:[#allocation5 + $0x8] sm:$0xff]
          %v346 = vld [vmem:[#allocation8] sm:$0xff]
          %v347 = vld [vmem:[#allocation8 + $0x8] sm:$0xff]
          %v348 = vld [vmem:[#allocation8 + $0x10] sm:$0xff]
          %v349 = vld [vmem:[#allocation8 + $0x18] sm:$0xff]
          %v350 = vld [vmem:[#allocation8 + $0x20] sm:$0xff]
          %v351 = vld [vmem:[#allocation8 + $0x28] sm:$0xff]
          %v352 = vld [vmem:[#allocation8 + $0x30] sm:$0xff]
          %v353 = vld [vmem:[#allocation8 + $0x38] sm:$0xff]
          %v354 = vld [vmem:[#allocation8 + $0x40] sm:$0xff]
          %v355 = vld [vmem:[#allocation8 + $0x48] sm:$0xff]
          %v356 = vld [vmem:[#allocation8 + $0x50] sm:$0xff]
          %v357 = vld [vmem:[#allocation8 + $0x58] sm:$0xff]
          %v358 = vld [vmem:[#allocation8 + $0x60] sm:$0xff]
          %v359 = vld [vmem:[#allocation8 + $0x68] sm:$0xff]
          %v360 = vld [vmem:[#allocation8 + $0x70] sm:$0xff]
          %v361 = vld [vmem:[#allocation8 + $0x78] sm:$0xff]
          %v362 = vld [vmem:[%s2] sm:$0x1]
          %v364 = vlaneseq
          %v365 = vshrl.u32 %v364, 7
          %v366 = vsub.s32 0, %v365
          %v367 = vrot.slane %v362, %v366
          %369 = vmatprep.subr.mxu0 0.0
          %370 = vmatpush1.msra.mxu0 %v346
          %371 = vmatprep.subr.mxu0 0.0
          %372 = vmatpush1.msra.mxu0 %v347
          %373 = vmatprep.subr.mxu0 0.0
          %374 = vmatpush1.msra.mxu0 %v348
          %375 = vmatprep.subr.mxu0 0.0
          %376 = vmatpush1.msra.mxu0 %v349
          %377 = vmatprep.subr.mxu0 0.0
          %378 = vmatpush1.msra.mxu0 %v350
          %379 = vmatprep.subr.mxu0 0.0
          %380 = vmatpush1.msra.mxu0 %v351
          %381 = vmatprep.subr.mxu0 0.0
          %382 = vmatpush1.msra.mxu0 %v352
          %383 = vmatprep.subr.mxu0 0.0
          %384 = vmatpush1.msra.mxu0 %v353
          %385 = vmatprep.subr.mxu0 0.0
          %386 = vmatpush1.msra.mxu0 %v354
          %387 = vmatprep.subr.mxu0 0.0
          %388 = vmatpush1.msra.mxu0 %v355
          %389 = vmatprep.subr.mxu0 0.0
          %390 = vmatpush1.msra.mxu0 %v356
          %391 = vmatprep.subr.mxu0 0.0
          %392 = vmatpush1.msra.mxu0 %v357
          %393 = vmatprep.subr.mxu0 0.0
          %394 = vmatpush1.msra.mxu0 %v358
          %395 = vmatprep.subr.mxu0 0.0
          %396 = vmatpush1.msra.mxu0 %v359
          %397 = vmatprep.subr.mxu0 0.0
          %398 = vmatpush1.msra.mxu0 %v360
          %399 = vmatprep.subr.mxu0 0.0
          %400 = vmatpush1.msra.mxu0 %v361
          %401 = vmatprep.subr.mxu0 0.0
          %402 = vmatpush1.msra.mxu0 0.0
          %403 = vmatprep.subr.mxu0 0.0
          %404 = vmatpush1.msra.mxu0 0.0
          %405 = vmatprep.subr.mxu0 0.0
          %406 = vmatpush1.msra.mxu0 0.0
          %407 = vmatprep.subr.mxu0 0.0
          %408 = vmatpush1.msra.mxu0 0.0
          %409 = vmatprep.subr.mxu0 0.0
          %410 = vmatpush1.msra.mxu0 0.0
          %411 = vmatprep.subr.mxu0 0.0
          %412 = vmatpush1.msra.mxu0 0.0
          %413 = vmatprep.subr.mxu0 0.0
          %414 = vmatpush1.msra.mxu0 0.0
          %415 = vmatprep.subr.mxu0 0.0
          %416 = vmatpush1.msra.mxu0 0.0
          %417 = vmatprep.subr.mxu0 0.0
          %418 = vmatpush1.msra.mxu0 0.0
          %419 = vmatprep.subr.mxu0 0.0
          %420 = vmatpush1.msra.mxu0 0.0
          %421 = vmatprep.subr.mxu0 0.0
          %422 = vmatpush1.msra.mxu0 0.0
          %423 = vmatprep.subr.mxu0 0.0
          %424 = vmatpush1.msra.mxu0 0.0
          %425 = vmatprep.subr.mxu0 0.0
          %426 = vmatpush1.msra.mxu0 0.0
          %427 = vmatprep.subr.mxu0 0.0
          %428 = vmatpush1.msra.mxu0 0.0
          %429 = vmatprep.subr.mxu0 0.0
          %430 = vmatpush1.msra.mxu0 0.0
          %431 = vmatprep.subr.mxu0 0.0
          %432 = vmatpush1.msra.mxu0 0.0
          %433 = vmatprep.mubr.f32.mxu0 0.0
          %434 = vmatmul.mubr.f32.gmra.mrb[0].mxu0 %v344
          %v435 = vpop.f32.mrb[0].mxu0
          %v436 = vadd.f32 %v367, %v435
          %v437 = vpop.f32.mrb[0].mxu0
          %438 = vmatprep.mubr.f32.mxu0 0.0
          %439 = vmatmul.mubr.f32.gmra.mrb[0].mxu0 %v345
          %v440 = vpop.f32.mrb[0].mxu0
          %v441 = vadd.f32 %v367, %v440
          %v442 = vpop.f32.mrb[0].mxu0
          %443 = vdwg.mxu0
          %s444 = smul.u32 %s28, 16
          %v445 = vlaneseq
          %v446 = vshrl.u32 %v445, 7
          %v447 = vadd.s32 %v446, 8
          %v448 = vstv %s444
          %v449 = vadd.s32 %v448, %v446
          %v450 = vadd.s32 %v448, %v447
          %vm451 = vcmp.lt.s32.totalorder %v449, 16
          %vm452 = vcmp.lt.s32.totalorder %v450, 16
          %v453 = vsel %vm451, 1, 0
          %v454 = vsel %vm452, 1, 0
          %vm455 = vcmp.eq.s32.totalorder %v453, 1
          %vm456 = vcmp.eq.s32.totalorder %v454, 1
          %v457 = vsel %vm455, %v436, 0.0
          %v458 = vsel %vm456, %v441, 0.0
          %v459 = vld [vmem:[#allocation3] sm:$0x1]
          %v460 = vadd.f32 %v457, %v458
          %v461 = vrot.slane %v460, 4
          %v462 = vadd.f32 %v460, %v461
          %v463 = vrot.slane %v462, 2
          %v464 = vadd.f32 %v462, %v463
          %v465 = vrot.slane %v464, 1
          %v466 = vadd.f32 %v464, %v465
          %v467 = vadd.f32 %v459, %v466
          %468 = vst [vmem:[#allocation3] sm:$0x1] %v467
          %v469 = vld [vmem:[#allocation4] sm:$0x1]
          %v470 = vmul.f32 %v457, %v457
          %v471 = vmul.f32 %v458, %v458
          %v472 = vadd.f32 %v470, %v471
          %v473 = vrot.slane %v472, 4
          %v474 = vadd.f32 %v472, %v473
          %v475 = vrot.slane %v474, 2
          %v476 = vadd.f32 %v474, %v475
          %v477 = vrot.slane %v476, 1
          %v478 = vadd.f32 %v476, %v477
          %v479 = vadd.f32 %v469, %v478
          %480 = vst [vmem:[#allocation4] sm:$0x1] %v479
        $region68: #{_mlp_fused_pallas.1} parent=47 // pred_fallthru
          _
        %p481 = scmp.gt.s32.totalorder %s27, 0
        // Predicated region
        $region69: #{_mlp_fused_pallas.1} parent=47 // pred_check
          %p482 = pneg %p481
        $region70: #{_mlp_fused_pallas.1} parent=47 // pred_check_branch
          %484 = sbr.rel (%p482) target = $region72
        $region71: #{_mlp_fused_pallas.1} parent=47 // pred_region
          %v485 = vld [vmem:[#allocation5] sm:$0xff]
          %v486 = vld [vmem:[#allocation5 + $0x8] sm:$0xff]
          %v487 = vld [vmem:[#allocation8] sm:$0xff]
          %v488 = vld [vmem:[#allocation8 + $0x8] sm:$0xff]
          %v489 = vld [vmem:[#allocation8 + $0x10] sm:$0xff]
          %v490 = vld [vmem:[#allocation8 + $0x18] sm:$0xff]
          %v491 = vld [vmem:[#allocation8 + $0x20] sm:$0xff]
          %v492 = vld [vmem:[#allocation8 + $0x28] sm:$0xff]
          %v493 = vld [vmem:[#allocation8 + $0x30] sm:$0xff]
          %v494 = vld [vmem:[#allocation8 + $0x38] sm:$0xff]
          %v495 = vld [vmem:[#allocation8 + $0x40] sm:$0xff]
          %v496 = vld [vmem:[#allocation8 + $0x48] sm:$0xff]
          %v497 = vld [vmem:[#allocation8 + $0x50] sm:$0xff]
          %v498 = vld [vmem:[#allocation8 + $0x58] sm:$0xff]
          %v499 = vld [vmem:[#allocation8 + $0x60] sm:$0xff]
          %v500 = vld [vmem:[#allocation8 + $0x68] sm:$0xff]
          %v501 = vld [vmem:[#allocation8 + $0x70] sm:$0xff]
          %v502 = vld [vmem:[#allocation8 + $0x78] sm:$0xff]
          %v503 = vld [vmem:[%s2] sm:$0x1]
          %v505 = vlaneseq
          %v506 = vshrl.u32 %v505, 7
          %v507 = vsub.s32 0, %v506
          %v508 = vrot.slane %v503, %v507
          %510 = vmatprep.subr.mxu0 0.0
          %511 = vmatpush1.msra.mxu0 %v487
          %512 = vmatprep.subr.mxu0 0.0
          %513 = vmatpush1.msra.mxu0 %v488
          %514 = vmatprep.subr.mxu0 0.0
          %515 = vmatpush1.msra.mxu0 %v489
          %516 = vmatprep.subr.mxu0 0.0
          %517 = vmatpush1.msra.mxu0 %v490
          %518 = vmatprep.subr.mxu0 0.0
          %519 = vmatpush1.msra.mxu0 %v491
          %520 = vmatprep.subr.mxu0 0.0
          %521 = vmatpush1.msra.mxu0 %v492
          %522 = vmatprep.subr.mxu0 0.0
          %523 = vmatpush1.msra.mxu0 %v493
          %524 = vmatprep.subr.mxu0 0.0
          %525 = vmatpush1.msra.mxu0 %v494
          %526 = vmatprep.subr.mxu0 0.0
          %527 = vmatpush1.msra.mxu0 %v495
          %528 = vmatprep.subr.mxu0 0.0
          %529 = vmatpush1.msra.mxu0 %v496
          %530 = vmatprep.subr.mxu0 0.0
          %531 = vmatpush1.msra.mxu0 %v497
          %532 = vmatprep.subr.mxu0 0.0
          %533 = vmatpush1.msra.mxu0 %v498
          %534 = vmatprep.subr.mxu0 0.0
          %535 = vmatpush1.msra.mxu0 %v499
          %536 = vmatprep.subr.mxu0 0.0
          %537 = vmatpush1.msra.mxu0 %v500
          %538 = vmatprep.subr.mxu0 0.0
          %539 = vmatpush1.msra.mxu0 %v501
          %540 = vmatprep.subr.mxu0 0.0
          %541 = vmatpush1.msra.mxu0 %v502
          %542 = vmatprep.subr.mxu0 0.0
          %543 = vmatpush1.msra.mxu0 0.0
          %544 = vmatprep.subr.mxu0 0.0
          %545 = vmatpush1.msra.mxu0 0.0
          %546 = vmatprep.subr.mxu0 0.0
          %547 = vmatpush1.msra.mxu0 0.0
          %548 = vmatprep.subr.mxu0 0.0
          %549 = vmatpush1.msra.mxu0 0.0
          %550 = vmatprep.subr.mxu0 0.0
          %551 = vmatpush1.msra.mxu0 0.0
          %552 = vmatprep.subr.mxu0 0.0
          %553 = vmatpush1.msra.mxu0 0.0
          %554 = vmatprep.subr.mxu0 0.0
          %555 = vmatpush1.msra.mxu0 0.0
          %556 = vmatprep.subr.mxu0 0.0
          %557 = vmatpush1.msra.mxu0 0.0
          %558 = vmatprep.subr.mxu0 0.0
          %559 = vmatpush1.msra.mxu0 0.0
          %560 = vmatprep.subr.mxu0 0.0
          %561 = vmatpush1.msra.mxu0 0.0
          %562 = vmatprep.subr.mxu0 0.0
          %563 = vmatpush1.msra.mxu0 0.0
          %564 = vmatprep.subr.mxu0 0.0
          %565 = vmatpush1.msra.mxu0 0.0
          %566 = vmatprep.subr.mxu0 0.0
          %567 = vmatpush1.msra.mxu0 0.0
          %568 = vmatprep.subr.mxu0 0.0
          %569 = vmatpush1.msra.mxu0 0.0
          %570 = vmatprep.subr.mxu0 0.0
          %571 = vmatpush1.msra.mxu0 0.0
          %572 = vmatprep.subr.mxu0 0.0
          %573 = vmatpush1.msra.mxu0 0.0
          %574 = vmatprep.mubr.f32.mxu0 0.0
          %575 = vmatmul.mubr.f32.gmra.mrb[0].mxu0 %v485
          %v576 = vpop.f32.mrb[0].mxu0
          %v577 = vadd.f32 %v508, %v576
          %v578 = vpop.f32.mrb[0].mxu0
          %579 = vmatprep.mubr.f32.mxu0 0.0
          %580 = vmatmul.mubr.f32.gmra.mrb[0].mxu0 %v486
          %v581 = vpop.f32.mrb[0].mxu0
          %v582 = vadd.f32 %v508, %v581
          %v583 = vpop.f32.mrb[0].mxu0
          %584 = vdwg.mxu0
          %v585 = vld [vmem:[#allocation3] sm:$0x1]
          %v586 = vmul.f32 %v585, 0.0625
          %v587 = vld [vmem:[#allocation4] sm:$0x1]
          %v588 = vmul.f32 %v587, 0.0625
          %v589 = vmul.f32 %v586, %v586
          %v590 = vsub.f32 %v588, %v589
          %v591 = vmax.f32 %v590, 0.0
          %v592 = vadd.f32 %v591, 1e-05
          %v593 = vrsqrt.pop %v592
          %v594 = vld [vmem:[%s3] sm:$0x1]
          %v595 = vmul.f32 %v593, %v594
          %v596 = vld [vmem:[%s4] sm:$0x1]
          %v597 = vmul.f32 %v586, %v595
          %v598 = vsub.f32 %v596, %v597
          %v600 = vlaneseq
          %v601 = vshrl.u32 %v600, 7
          %v602 = vsub.s32 0, %v601
          %v603 = vrot.slane %v595, %v602
          %v605 = vmul.f32 %v577, %v603
          %v606 = vmul.f32 %v582, %v603
          %v608 = vlaneseq
          %v609 = vshrl.u32 %v608, 7
          %v610 = vsub.s32 0, %v609
          %v611 = vrot.slane %v598, %v610
          %v613 = vadd.f32 %v605, %v611
          %v614 = vadd.f32 %v606, %v611
          %v615 = vmax.f32 %v613, 0.0
          %v616 = vmax.f32 %v614, 0.0
          %617 = vst [vmem:[#allocation2] sm:$0xff] %v615
          %618 = vst [vmem:[#allocation2 + $0x8] sm:$0xff] %v616
        $region72: #{_mlp_fused_pallas.1} parent=47 // pred_fallthru
          _
        %p619 = scmp.eq.s32.totalorder %s27, 1
        // Predicated region
        $region73: #{_mlp_fused_pallas.1} parent=47 // pred_check
          %p620 = pneg %p619
        $region74: #{_mlp_fused_pallas.1} parent=47 // pred_check_branch
          %622 = sbr.rel (%p620) target = $region76
        $region75: #{_mlp_fused_pallas.1} parent=47 // pred_region
          %v623 = vld [vmem:[#allocation2] sm:$0xff]
          %v624 = vld [vmem:[#allocation2 + $0x8] sm:$0xff]
          %s625 = scalar_lea.vmem [#allocation8], 128
          %v626 = vld [vmem:[%s625] sm:$0xff]
          %v627 = vld [vmem:[%s625 + $0x8] sm:$0xff]
          %v628 = vld [vmem:[%s625 + $0x10] sm:$0xff]
          %v629 = vld [vmem:[%s625 + $0x18] sm:$0xff]
          %v630 = vld [vmem:[%s625 + $0x20] sm:$0xff]
          %v631 = vld [vmem:[%s625 + $0x28] sm:$0xff]
          %v632 = vld [vmem:[%s625 + $0x30] sm:$0xff]
          %v633 = vld [vmem:[%s625 + $0x38] sm:$0xff]
          %v634 = vld [vmem:[%s625 + $0x40] sm:$0xff]
          %v635 = vld [vmem:[%s625 + $0x48] sm:$0xff]
          %v636 = vld [vmem:[%s625 + $0x50] sm:$0xff]
          %v637 = vld [vmem:[%s625 + $0x58] sm:$0xff]
          %v638 = vld [vmem:[%s625 + $0x60] sm:$0xff]
          %v639 = vld [vmem:[%s625 + $0x68] sm:$0xff]
          %v640 = vld [vmem:[%s625 + $0x70] sm:$0xff]
          %v641 = vld [vmem:[%s625 + $0x78] sm:$0xff]
          %s642 = scalar_lea.vmem %s2, 1
          %v643 = vld [vmem:[%s642] sm:$0x1]
          %v645 = vlaneseq
          %v646 = vshrl.u32 %v645, 7
          %v647 = vsub.s32 0, %v646
          %v648 = vrot.slane %v643, %v647
          %650 = vmatprep.subr.mxu0 0.0
          %651 = vmatpush1.msra.mxu0 %v626
          %652 = vmatprep.subr.mxu0 0.0
          %653 = vmatpush1.msra.mxu0 %v627
          %654 = vmatprep.subr.mxu0 0.0
          %655 = vmatpush1.msra.mxu0 %v628
          %656 = vmatprep.subr.mxu0 0.0
          %657 = vmatpush1.msra.mxu0 %v629
          %658 = vmatprep.subr.mxu0 0.0
          %659 = vmatpush1.msra.mxu0 %v630
          %660 = vmatprep.subr.mxu0 0.0
          %661 = vmatpush1.msra.mxu0 %v631
          %662 = vmatprep.subr.mxu0 0.0
          %663 = vmatpush1.msra.mxu0 %v632
          %664 = vmatprep.subr.mxu0 0.0
          %665 = vmatpush1.msra.mxu0 %v633
          %666 = vmatprep.subr.mxu0 0.0
          %667 = vmatpush1.msra.mxu0 %v634
          %668 = vmatprep.subr.mxu0 0.0
          %669 = vmatpush1.msra.mxu0 %v635
          %670 = vmatprep.subr.mxu0 0.0
          %671 = vmatpush1.msra.mxu0 %v636
          %672 = vmatprep.subr.mxu0 0.0
          %673 = vmatpush1.msra.mxu0 %v637
          %674 = vmatprep.subr.mxu0 0.0
          %675 = vmatpush1.msra.mxu0 %v638
          %676 = vmatprep.subr.mxu0 0.0
          %677 = vmatpush1.msra.mxu0 %v639
          %678 = vmatprep.subr.mxu0 0.0
          %679 = vmatpush1.msra.mxu0 %v640
          %680 = vmatprep.subr.mxu0 0.0
          %681 = vmatpush1.msra.mxu0 %v641
          %682 = vmatprep.subr.mxu0 0.0
          %683 = vmatpush1.msra.mxu0 0.0
          %684 = vmatprep.subr.mxu0 0.0
          %685 = vmatpush1.msra.mxu0 0.0
          %686 = vmatprep.subr.mxu0 0.0
          %687 = vmatpush1.msra.mxu0 0.0
          %688 = vmatprep.subr.mxu0 0.0
          %689 = vmatpush1.msra.mxu0 0.0
          %690 = vmatprep.subr.mxu0 0.0
          %691 = vmatpush1.msra.mxu0 0.0
          %692 = vmatprep.subr.mxu0 0.0
          %693 = vmatpush1.msra.mxu0 0.0
          %694 = vmatprep.subr.mxu0 0.0
          %695 = vmatpush1.msra.mxu0 0.0
          %696 = vmatprep.subr.mxu0 0.0
          %697 = vmatpush1.msra.mxu0 0.0
          %698 = vmatprep.subr.mxu0 0.0
          %699 = vmatpush1.msra.mxu0 0.0
          %700 = vmatprep.subr.mxu0 0.0
          %701 = vmatpush1.msra.mxu0 0.0
          %702 = vmatprep.subr.mxu0 0.0
          %703 = vmatpush1.msra.mxu0 0.0
          %704 = vmatprep.subr.mxu0 0.0
          %705 = vmatpush1.msra.mxu0 0.0
          %706 = vmatprep.subr.mxu0 0.0
          %707 = vmatpush1.msra.mxu0 0.0
          %708 = vmatprep.subr.mxu0 0.0
          %709 = vmatpush1.msra.mxu0 0.0
          %710 = vmatprep.subr.mxu0 0.0
          %711 = vmatpush1.msra.mxu0 0.0
          %712 = vmatprep.subr.mxu0 0.0
          %713 = vmatpush1.msra.mxu0 0.0
          %714 = vmatprep.mubr.f32.mxu0 0.0
          %715 = vmatmul.mubr.f32.gmra.mrb[0].mxu0 %v623
          %v716 = vpop.f32.mrb[0].mxu0
          %v717 = vadd.f32 %v648, %v716
          %v718 = vpop.f32.mrb[0].mxu0
          %719 = vmatprep.mubr.f32.mxu0 0.0
          %720 = vmatmul.mubr.f32.gmra.mrb[0].mxu0 %v624
          %v721 = vpop.f32.mrb[0].mxu0
          %v722 = vadd.f32 %v648, %v721
          %v723 = vpop.f32.mrb[0].mxu0
          %724 = vdwg.mxu0
          %s725 = smul.u32 %s28, 16
          %v726 = vlaneseq
          %v727 = vshrl.u32 %v726, 7
          %v728 = vadd.s32 %v727, 8
          %v729 = vstv %s725
          %v730 = vadd.s32 %v729, %v727
          %v731 = vadd.s32 %v729, %v728
          %vm732 = vcmp.lt.s32.totalorder %v730, 16
          %vm733 = vcmp.lt.s32.totalorder %v731, 16
          %v734 = vsel %vm732, 1, 0
          %v735 = vsel %vm733, 1, 0
          %vm736 = vcmp.eq.s32.totalorder %v734, 1
          %vm737 = vcmp.eq.s32.totalorder %v735, 1
          %v738 = vsel %vm736, %v717, 0.0
          %v739 = vsel %vm737, %v722, 0.0
          %s740 = scalar_lea.vmem [#allocation3], 1
          %v741 = vld [vmem:[%s740] sm:$0x1]
          %v742 = vadd.f32 %v738, %v739
          %v743 = vrot.slane %v742, 4
          %v744 = vadd.f32 %v742, %v743
          %v745 = vrot.slane %v744, 2
          %v746 = vadd.f32 %v744, %v745
          %v747 = vrot.slane %v746, 1
          %v748 = vadd.f32 %v746, %v747
          %v749 = vadd.f32 %v741, %v748
          %750 = vst [vmem:[%s740] sm:$0x1] %v749
          %s751 = scalar_lea.vmem [#allocation4], 1
          %v752 = vld [vmem:[%s751] sm:$0x1]
          %v753 = vmul.f32 %v738, %v738
          %v754 = vmul.f32 %v739, %v739
          %v755 = vadd.f32 %v753, %v754
          %v756 = vrot.slane %v755, 4
          %v757 = vadd.f32 %v755, %v756
          %v758 = vrot.slane %v757, 2
          %v759 = vadd.f32 %v757, %v758
          %v760 = vrot.slane %v759, 1
          %v761 = vadd.f32 %v759, %v760
          %v762 = vadd.f32 %v752, %v761
          %763 = vst [vmem:[%s751] sm:$0x1] %v762
        $region76: #{_mlp_fused_pallas.1} parent=47 // pred_fallthru
          _
        %p764 = scmp.gt.s32.totalorder %s27, 1
        // Predicated region
        $region77: #{_mlp_fused_pallas.1} parent=47 // pred_check
          %p765 = pneg %p764
        $region78: #{_mlp_fused_pallas.1} parent=47 // pred_check_branch
          %767 = sbr.rel (%p765) target = $region80
        $region79: #{_mlp_fused_pallas.1} parent=47 // pred_region
          %v768 = vld [vmem:[#allocation2] sm:$0xff]
          %v769 = vld [vmem:[#allocation2 + $0x8] sm:$0xff]
          %s770 = scalar_lea.vmem [#allocation8], 128
          %v771 = vld [vmem:[%s770] sm:$0xff]
          %v772 = vld [vmem:[%s770 + $0x8] sm:$0xff]
          %v773 = vld [vmem:[%s770 + $0x10] sm:$0xff]
          %v774 = vld [vmem:[%s770 + $0x18] sm:$0xff]
          %v775 = vld [vmem:[%s770 + $0x20] sm:$0xff]
          %v776 = vld [vmem:[%s770 + $0x28] sm:$0xff]
          %v777 = vld [vmem:[%s770 + $0x30] sm:$0xff]
          %v778 = vld [vmem:[%s770 + $0x38] sm:$0xff]
          %v779 = vld [vmem:[%s770 + $0x40] sm:$0xff]
          %v780 = vld [vmem:[%s770 + $0x48] sm:$0xff]
          %v781 = vld [vmem:[%s770 + $0x50] sm:$0xff]
          %v782 = vld [vmem:[%s770 + $0x58] sm:$0xff]
          %v783 = vld [vmem:[%s770 + $0x60] sm:$0xff]
          %v784 = vld [vmem:[%s770 + $0x68] sm:$0xff]
          %v785 = vld [vmem:[%s770 + $0x70] sm:$0xff]
          %v786 = vld [vmem:[%s770 + $0x78] sm:$0xff]
          %s787 = scalar_lea.vmem %s2, 1
          %v788 = vld [vmem:[%s787] sm:$0x1]
          %v790 = vlaneseq
          %v791 = vshrl.u32 %v790, 7
          %v792 = vsub.s32 0, %v791
          %v793 = vrot.slane %v788, %v792
          %795 = vmatprep.subr.mxu0 0.0
          %796 = vmatpush1.msra.mxu0 %v771
          %797 = vmatprep.subr.mxu0 0.0
          %798 = vmatpush1.msra.mxu0 %v772
          %799 = vmatprep.subr.mxu0 0.0
          %800 = vmatpush1.msra.mxu0 %v773
          %801 = vmatprep.subr.mxu0 0.0
          %802 = vmatpush1.msra.mxu0 %v774
          %803 = vmatprep.subr.mxu0 0.0
          %804 = vmatpush1.msra.mxu0 %v775
          %805 = vmatprep.subr.mxu0 0.0
          %806 = vmatpush1.msra.mxu0 %v776
          %807 = vmatprep.subr.mxu0 0.0
          %808 = vmatpush1.msra.mxu0 %v777
          %809 = vmatprep.subr.mxu0 0.0
          %810 = vmatpush1.msra.mxu0 %v778
          %811 = vmatprep.subr.mxu0 0.0
          %812 = vmatpush1.msra.mxu0 %v779
          %813 = vmatprep.subr.mxu0 0.0
          %814 = vmatpush1.msra.mxu0 %v780
          %815 = vmatprep.subr.mxu0 0.0
          %816 = vmatpush1.msra.mxu0 %v781
          %817 = vmatprep.subr.mxu0 0.0
          %818 = vmatpush1.msra.mxu0 %v782
          %819 = vmatprep.subr.mxu0 0.0
          %820 = vmatpush1.msra.mxu0 %v783
          %821 = vmatprep.subr.mxu0 0.0
          %822 = vmatpush1.msra.mxu0 %v784
          %823 = vmatprep.subr.mxu0 0.0
          %824 = vmatpush1.msra.mxu0 %v785
          %825 = vmatprep.subr.mxu0 0.0
          %826 = vmatpush1.msra.mxu0 %v786
          %827 = vmatprep.subr.mxu0 0.0
          %828 = vmatpush1.msra.mxu0 0.0
          %829 = vmatprep.subr.mxu0 0.0
          %830 = vmatpush1.msra.mxu0 0.0
          %831 = vmatprep.subr.mxu0 0.0
          %832 = vmatpush1.msra.mxu0 0.0
          %833 = vmatprep.subr.mxu0 0.0
          %834 = vmatpush1.msra.mxu0 0.0
          %835 = vmatprep.subr.mxu0 0.0
          %836 = vmatpush1.msra.mxu0 0.0
          %837 = vmatprep.subr.mxu0 0.0
          %838 = vmatpush1.msra.mxu0 0.0
          %839 = vmatprep.subr.mxu0 0.0
          %840 = vmatpush1.msra.mxu0 0.0
          %841 = vmatprep.subr.mxu0 0.0
          %842 = vmatpush1.msra.mxu0 0.0
          %843 = vmatprep.subr.mxu0 0.0
          %844 = vmatpush1.msra.mxu0 0.0
          %845 = vmatprep.subr.mxu0 0.0
          %846 = vmatpush1.msra.mxu0 0.0
          %847 = vmatprep.subr.mxu0 0.0
          %848 = vmatpush1.msra.mxu0 0.0
          %849 = vmatprep.subr.mxu0 0.0
          %850 = vmatpush1.msra.mxu0 0.0
          %851 = vmatprep.subr.mxu0 0.0
          %852 = vmatpush1.msra.mxu0 0.0
          %853 = vmatprep.subr.mxu0 0.0
          %854 = vmatpush1.msra.mxu0 0.0
          %855 = vmatprep.subr.mxu0 0.0
          %856 = vmatpush1.msra.mxu0 0.0
          %857 = vmatprep.subr.mxu0 0.0
          %858 = vmatpush1.msra.mxu0 0.0
          %859 = vmatprep.mubr.f32.mxu0 0.0
          %860 = vmatmul.mubr.f32.gmra.mrb[0].mxu0 %v768
          %v861 = vpop.f32.mrb[0].mxu0
          %v862 = vadd.f32 %v793, %v861
          %v863 = vpop.f32.mrb[0].mxu0
          %864 = vmatprep.mubr.f32.mxu0 0.0
          %865 = vmatmul.mubr.f32.gmra.mrb[0].mxu0 %v769
          %v866 = vpop.f32.mrb[0].mxu0
          %v867 = vadd.f32 %v793, %v866
          %v868 = vpop.f32.mrb[0].mxu0
          %869 = vdwg.mxu0
          %s870 = scalar_lea.vmem [#allocation3], 1
          %v871 = vld [vmem:[%s870] sm:$0x1]
          %v872 = vmul.f32 %v871, 0.0625
          %s873 = scalar_lea.vmem [#allocation4], 1
          %v874 = vld [vmem:[%s873] sm:$0x1]
          %v875 = vmul.f32 %v874, 0.0625
          %v876 = vmul.f32 %v872, %v872
          %v877 = vsub.f32 %v875, %v876
          %v878 = vmax.f32 %v877, 0.0
          %v879 = vadd.f32 %v878, 1e-05
          %v880 = vrsqrt.pop %v879
          %s881 = scalar_lea.vmem %s3, 1
          %v882 = vld [vmem:[%s881] sm:$0x1]
          %v883 = vmul.f32 %v880, %v882
          %s884 = scalar_lea.vmem %s4, 1
          %v885 = vld [vmem:[%s884] sm:$0x1]
          %v886 = vmul.f32 %v872, %v883
          %v887 = vsub.f32 %v885, %v886
          %v889 = vlaneseq
          %v890 = vshrl.u32 %v889, 7
          %v891 = vsub.s32 0, %v890
          %v892 = vrot.slane %v883, %v891
          %v894 = vmul.f32 %v862, %v892
          %v895 = vmul.f32 %v867, %v892
          %v897 = vlaneseq
          %v898 = vshrl.u32 %v897, 7
          %v899 = vsub.s32 0, %v898
          %v900 = vrot.slane %v887, %v899
          %v902 = vadd.f32 %v894, %v900
          %v903 = vadd.f32 %v895, %v900
          %v904 = vmax.f32 %v902, 0.0
          %v905 = vmax.f32 %v903, 0.0
          %906 = vst [vmem:[#allocation2] sm:$0xff] %v904
          %907 = vst [vmem:[#allocation2 + $0x8] sm:$0xff] %v905
        $region80: #{_mlp_fused_pallas.1} parent=47 // pred_fallthru
          _
        %p908 = scmp.eq.s32.totalorder %s27, 2
        // Predicated region
        $region81: #{_mlp_fused_pallas.1} parent=47 // pred_check
          %p909 = pneg %p908
        $region82: #{_mlp_fused_pallas.1} parent=47 // pred_check_branch
          %911 = sbr.rel (%p909) target = $region84
        $region83: #{_mlp_fused_pallas.1} parent=47 // pred_region
          %v912 = vld [vmem:[#allocation2] sm:$0xff]
          %v913 = vld [vmem:[#allocation2 + $0x8] sm:$0xff]
          %v914 = vld [vmem:[#allocation10] sm:$0xff]
          %v915 = vld [vmem:[#allocation10 + $0x8] sm:$0xff]
          %v916 = vld [vmem:[#allocation10 + $0x10] sm:$0xff]
          %v917 = vld [vmem:[#allocation10 + $0x18] sm:$0xff]
          %v918 = vld [vmem:[#allocation10 + $0x20] sm:$0xff]
          %v919 = vld [vmem:[#allocation10 + $0x28] sm:$0xff]
          %v920 = vld [vmem:[#allocation10 + $0x30] sm:$0xff]
          %v921 = vld [vmem:[#allocation10 + $0x38] sm:$0xff]
          %v922 = vld [vmem:[#allocation10 + $0x40] sm:$0xff]
          %v923 = vld [vmem:[#allocation10 + $0x48] sm:$0xff]
          %v924 = vld [vmem:[#allocation10 + $0x50] sm:$0xff]
          %v925 = vld [vmem:[#allocation10 + $0x58] sm:$0xff]
          %v926 = vld [vmem:[#allocation10 + $0x60] sm:$0xff]
          %v927 = vld [vmem:[#allocation10 + $0x68] sm:$0xff]
          %v928 = vld [vmem:[#allocation10 + $0x70] sm:$0xff]
          %v929 = vld [vmem:[#allocation10 + $0x78] sm:$0xff]
          %v930 = vld [vmem:[%s6] sm:$0x1]
          %v932 = vlaneseq
          %v933 = vshrl.u32 %v932, 7
          %v934 = vsub.s32 0, %v933
          %v935 = vrot.slane %v930, %v934
          %937 = vmatprep.subr.mxu0 0.0
          %938 = vmatpush1.msra.mxu0 %v914
          %939 = vmatprep.subr.mxu0 0.0
          %940 = vmatpush1.msra.mxu0 %v915
          %941 = vmatprep.subr.mxu0 0.0
          %942 = vmatpush1.msra.mxu0 %v916
          %943 = vmatprep.subr.mxu0 0.0
          %944 = vmatpush1.msra.mxu0 %v917
          %945 = vmatprep.subr.mxu0 0.0
          %946 = vmatpush1.msra.mxu0 %v918
          %947 = vmatprep.subr.mxu0 0.0
          %948 = vmatpush1.msra.mxu0 %v919
          %949 = vmatprep.subr.mxu0 0.0
          %950 = vmatpush1.msra.mxu0 %v920
          %951 = vmatprep.subr.mxu0 0.0
          %952 = vmatpush1.msra.mxu0 %v921
          %953 = vmatprep.subr.mxu0 0.0
          %954 = vmatpush1.msra.mxu0 %v922
          %955 = vmatprep.subr.mxu0 0.0
          %956 = vmatpush1.msra.mxu0 %v923
          %957 = vmatprep.subr.mxu0 0.0
          %958 = vmatpush1.msra.mxu0 %v924
          %959 = vmatprep.subr.mxu0 0.0
          %960 = vmatpush1.msra.mxu0 %v925
          %961 = vmatprep.subr.mxu0 0.0
          %962 = vmatpush1.msra.mxu0 %v926
          %963 = vmatprep.subr.mxu0 0.0
          %964 = vmatpush1.msra.mxu0 %v927
          %965 = vmatprep.subr.mxu0 0.0
          %966 = vmatpush1.msra.mxu0 %v928
          %967 = vmatprep.subr.mxu0 0.0
          %968 = vmatpush1.msra.mxu0 %v929
          %969 = vmatprep.subr.mxu0 0.0
          %970 = vmatpush1.msra.mxu0 0.0
          %971 = vmatprep.subr.mxu0 0.0
          %972 = vmatpush1.msra.mxu0 0.0
          %973 = vmatprep.subr.mxu0 0.0
          %974 = vmatpush1.msra.mxu0 0.0
          %975 = vmatprep.subr.mxu0 0.0
          %976 = vmatpush1.msra.mxu0 0.0
          %977 = vmatprep.subr.mxu0 0.0
          %978 = vmatpush1.msra.mxu0 0.0
          %979 = vmatprep.subr.mxu0 0.0
          %980 = vmatpush1.msra.mxu0 0.0
          %981 = vmatprep.subr.mxu0 0.0
          %982 = vmatpush1.msra.mxu0 0.0
          %983 = vmatprep.subr.mxu0 0.0
          %984 = vmatpush1.msra.mxu0 0.0
          %985 = vmatprep.subr.mxu0 0.0
          %986 = vmatpush1.msra.mxu0 0.0
          %987 = vmatprep.subr.mxu0 0.0
          %988 = vmatpush1.msra.mxu0 0.0
          %989 = vmatprep.subr.mxu0 0.0
          %990 = vmatpush1.msra.mxu0 0.0
          %991 = vmatprep.subr.mxu0 0.0
          %992 = vmatpush1.msra.mxu0 0.0
          %993 = vmatprep.subr.mxu0 0.0
          %994 = vmatpush1.msra.mxu0 0.0
          %995 = vmatprep.subr.mxu0 0.0
          %996 = vmatpush1.msra.mxu0 0.0
          %997 = vmatprep.subr.mxu0 0.0
          %998 = vmatpush1.msra.mxu0 0.0
          %999 = vmatprep.subr.mxu0 0.0
          %1000 = vmatpush1.msra.mxu0 0.0
          %1001 = vmatprep.mubr.f32.mxu0 0.0
          %1002 = vmatmul.mubr.f32.gmra.mrb[0].mxu0 %v912
          %v1003 = vpop.f32.mrb[0].mxu0
          %v1004 = vadd.f32 %v935, %v1003
          %v1005 = vpop.f32.mrb[0].mxu0
          %1006 = vmatprep.mubr.f32.mxu0 0.0
          %1007 = vmatmul.mubr.f32.gmra.mrb[0].mxu0 %v913
          %v1008 = vpop.f32.mrb[0].mxu0
          %v1009 = vadd.f32 %v935, %v1008
          %v1010 = vpop.f32.mrb[0].mxu0
          %1011 = vdwg.mxu0
          %1012 = vst [vmem:[%s324] sm:$0xff] %v1004
          %1013 = vst [vmem:[%s324 + $0x8] sm:$0xff] %v1009
        $region84: #{_mlp_fused_pallas.1} parent=47 // pred_fallthru
          _
        %s1014 = sand.u32 %s199, 1
        %s1015 = scalar_lea.sflag [#allocation7], %s1014
        %s1016 = sand.u32 %s199, 1
        %s1017 = smul.addr %s1016, 16
        %s1018 = scalar_lea.vmem [#allocation11], %s1017
        // Predicated region
        $region85: #{_mlp_fused_pallas.1} parent=47 // pred_check
          %p1019 = pneg %p209
        $region86: #{_mlp_fused_pallas.1} parent=47 // pred_check_branch
          %1021 = sbr.rel (%p1019) target = $region88
        $region87: #{_mlp_fused_pallas.1} parent=47 // pred_region
          %p1022 = scmp.eq.s32.totalorder %s27, 2
          %s1023 = scalar_select %p1022, %s28, 0
          %s1024 = smul.u32 2, %s1023
          %s1026 = ssub.s32 256, 256
          %1027 = vsyncadd %s1015, %s1026
          %s1028 = smul.addr %s1024, 128
          %s1029 = scalar_lea.hbm %s7, %s1028
          %s1030 = sshll.u32 %s1018, 4
          %s1031 = int_to_ptr.vmem [resolvable:$true] %s1030
          %1036 = dma.vmem_to_hbm [thread:$0]  %s1031, 256, %s1029, %s1015, 128, 128, 8
        $region88: #{_mlp_fused_pallas.1} parent=47 // pred_fallthru
          _
      $region48: #{_mlp_fused_pallas.1} parent=5 // pred_fallthru
        _
      %p1037 = scmp.le.s32.totalorder 2, %s18
      // Predicated region
      $region89: #{_mlp_fused_pallas.1} parent=5 // pred_check
        %p1038 = pneg %p1037
      $region90: #{_mlp_fused_pallas.1} parent=5 // pred_check_branch
        %1040 = sbr.rel (%p1038) target = $region92
      $region91: #{_mlp_fused_pallas.1} parent=5 // pred_region
        %s1041 = ssub.s32 %s18, 2
        // Predicated region
        $region93: #{_mlp_fused_pallas.1} parent=91 // pred_check
          %p1042 = pneg %p215
        $region94: #{_mlp_fused_pallas.1} parent=91 // pred_check_branch
          %1044 = sbr.rel (%p1042) target = $region96
        $region95: #{_mlp_fused_pallas.1} parent=91 // pred_region
          %s1045 = sand.u32 %s200, 1
          %s1046 = scalar_lea.sflag [#allocation7], %s1045
          %s1047 = sand.u32 %s200, 1
          %s1048 = smul.addr %s1047, 16
          %s1049 = scalar_lea.vmem [#allocation11], %s1048
          %1050 = dma.done %s1046, 256
        $region96: #{_mlp_fused_pallas.1} parent=91 // pred_fallthru
          _
      $region92: #{_mlp_fused_pallas.1} parent=5 // pred_fallthru
        _
    $region6: #{_mlp_fused_pallas.1} parent=1 // loop_footer
      %s22 = sadd.s32 1, %s18
    $region7: #{_mlp_fused_pallas.1} parent=1 // loop_footer_branch
      %17 = sbr.rel target = $region3
    $region8: #{_mlp_fused_pallas.1} parent=1 // loop_exit
      _
    %1051 = vsyncpa [#allocation6], 1
    %s1052 = scalar_lea.sflag [#allocation6], 1
    %1053 = vsyncpa %s1052, 1
    %1054 = vsyncpa [#allocation9], 1
    %1055 = vsyncpa [#allocation7], 1
    %s1056 = scalar_lea.sflag [#allocation7], 1
    %1057 = vsyncpa %s1056, 1

// kernel: _mlp_fused_pallas.1
$region0: #{_mlp_fused_pallas.1}
  #allocation0 [shape = 'u32[]', space=smem, size = 0x4, offset = 0x4, fixed_abs, tag = 'smem constant byte address 0x4 - core index']
  #allocation1 [shape = 'u32[144,128]{1,0:T(1,128)}', space=vmem, size = 0x12000, scoped, tag = 'internal scratch']
  #allocation2 [shape = 'f32[16,128]{1,0:T(8,128)}', space=vmem, size = 0x2000, scoped, tag = 'scratch operand']
  #allocation3 [shape = 'f32[2,1,128]{2,1,0:T(1,128)}', space=vmem, size = 0x400, scoped, tag = 'scratch operand']
  #allocation4 [shape = 'f32[2,1,128]{2,1,0:T(1,128)}', space=vmem, size = 0x400, scoped, tag = 'scratch operand']
  %s0 = inlined_call_operand.hbm [shape: f32[16,128], index: 0, kind: input, shape index: {}]
  %s1 = inlined_call_operand.hbm [shape: f32[2,128,128], index: 1, kind: input, shape index: {}]
  %s2 = inlined_call_operand.vmem [shape: f32[2,1,128], index: 2, kind: input, shape index: {}]
  %s3 = inlined_call_operand.vmem [shape: f32[2,1,128], index: 3, kind: input, shape index: {}]
  %s4 = inlined_call_operand.vmem [shape: f32[2,1,128], index: 4, kind: input, shape index: {}]
  %s5 = inlined_call_operand.hbm [shape: f32[128,128], index: 5, kind: input, shape index: {}]
  %s6 = inlined_call_operand.vmem [shape: f32[1,128], index: 6, kind: input, shape index: {}]
  %s7 = inlined_call_operand.hbm [shape: f32[16,128], index: 7, kind: output, shape index: {}]
  %s8 = sld [smem:[#allocation0]]
  $region97: #{_mlp_fused_pallas.1} parent=0
    _
  %s10 = ssub.s32 1, %s8
  %s11 = scalar_select 0, %s10, %s8
  $region1: #{_mlp_fused_pallas.1} parent=0
    #allocation5 [shape = 'u8[8192]{0}', space=vmem, size = 0x2000, scoped, tag = 'input window, operand 0, single buffered']
    #allocation6 [shape = 's32[2]{0}', space=sflag, size = 0x8, scoped, tag = 'scoped memory for _mlp_fused_pallas.1']
    #allocation7 [shape = 's32[2]{0}', space=sflag, size = 0x8, scoped, tag = 'scoped memory for _mlp_fused_pallas.1']
    #allocation8 [shape = 'u8[131072]{0}', space=vmem, size = 0x20000, scoped, tag = 'input window, operand 1, single buffered']
    #allocation9 [shape = 's32[1]{0}', space=sflag, size = 0x4, scoped, tag = 'scoped memory for _mlp_fused_pallas.1']
    #allocation10 [shape = 'u8[65536]{0}', space=vmem, size = 0x10000, scoped, tag = 'input window, operand 5, single buffered']
    #allocation11 [shape = 'u8[16384]{0}', space=vmem, size = 0x4000, scoped, tag = 'output window, operand 0']
    %12 = vsyncpa [#allocation6], 0
    %13 = vsyncpa [#allocation9], 0
    %14 = vsyncpa [#allocation7], 0
    %s15 = scalar_lea.sflag [#allocation7], 1
    %16 = vsyncpa %s15, 0
    loop: start=0, step=1, limit=5
    $region2: #{_mlp_fused_pallas.1} parent=1 // loop_pre_header
      _
    $region3: #{_mlp_fused_pallas.1} parent=1 // loop_header
      %s18 = sphi 0, %s22
      %p19 = scmp.ge.s32.totalorder %s18, 5
      %s25 = sphi 0, %s37
      %s26 = sphi 0, %s33
      %s27 = sphi 0, %s25
      %s28 = sphi 0, %s26
      %s29 = sphi 0, %s27
      %s30 = sphi 0, %s28
      %s40 = sphi 0, %s42
      %s43 = sphi 0, %s40
      %s44 = sphi 0, %s43
      %s60 = sphi 0, %s44
      %s64 = sphi 0, %s64
      %s66 = sphi 0, %s64
      %s67 = sphi 0, %s66
      %s81 = sphi 0, %s67
      %s85 = sphi 0, %s85
      %s87 = sphi 0, %s85
      %s88 = sphi 0, %s87
      %s102 = sphi 0, %s88
      %s106 = sphi 0, %s106
      %s108 = sphi 0, %s106
      %s109 = sphi 0, %s108
      %s123 = sphi 0, %s109
      %s127 = sphi 0, %s127
      %s129 = sphi 0, %s127
      %s130 = sphi 0, %s129
      %s144 = sphi 0, %s130
      %s148 = sphi 0, %s148
      %s150 = sphi 0, %s148
      %s151 = sphi 0, %s150
      %s165 = sphi 0, %s151
      %s169 = sphi 0, %s169
      %s171 = sphi 0, %s169
      %s172 = sphi 0, %s171
      %s186 = sphi 0, %s172
      %s196 = sphi 0, %s198
      %s199 = sphi 0, %s196
      %s200 = sphi 0, %s199
      %s216 = sphi 0, %s200
    $region4: #{_mlp_fused_pallas.1} parent=1 // loop_header_branch
      %21 = sbr.rel (%p19) target = $region8
    $region5: #{_mlp_fused_pallas.1} parent=1 // loop_body
      %s23 = ssub.s32 %s18, 1
      %s24 = ssub.s32 %s18, 2
      %s31 = sadd.s32 1, %s26
      %p32 = scmp.ge.s32.totalorder %s31, 1
      %s33 = scalar_select %p32, 0, %s31
      %s34 = sadd.s32 1, %s25
      %s35 = scalar_select %p32, %s34, %s25
      %p36 = scmp.ge.s32.totalorder %s35, 3
      %s37 = scalar_select %p36, 0, %s35
      %s38 = ssub.s32 %s26, %s33
      %p39 = scmp.eq.s32.totalorder %s38, 0
      %s41 = sadd.s32 %s40, 1
      %s42 = scalar_select %p39, %s40, %s41
      %p45 = pneg %p39
      %p46 = scmp.eq.s32.totalorder %s18, 2
      %p47 = por %p45, %p46
      %p48 = scmp.ne.s32.totalorder %s40, %s43
      %p49 = scmp.eq.s32.totalorder %s18, 0
      %p50 = por %p48, %p49
      %p51 = scmp.ne.s32.totalorder %s40, %s43
      %p52 = scmp.eq.s32.totalorder %s23, 2
      %p53 = por %p51, %p52
      %p54 = scmp.ne.s32.totalorder %s43, %s44
      %p55 = scmp.eq.s32.totalorder %s23, 0
      %p56 = por %p54, %p55
      %p57 = scmp.ne.s32.totalorder %s43, %s44
      %p58 = scmp.eq.s32.totalorder %s24, 2
      %p59 = por %p57, %p58
      %p61 = scmp.ne.s32.totalorder %s44, %s60
      %p62 = scmp.eq.s32.totalorder %s24, 0
      %p63 = por %p61, %p62
      %s65 = sadd.s32 %s64, 1
      %p68 = scmp.eq.s32.totalorder %s18, 2
      %p69 = scmp.ne.s32.totalorder %s64, %s66
      %p70 = scmp.eq.s32.totalorder %s18, 0
      %p71 = por %p69, %p70
      %p72 = scmp.ne.s32.totalorder %s64, %s66
      %p73 = scmp.eq.s32.totalorder %s23, 2
      %p74 = por %p72, %p73
      %p75 = scmp.ne.s32.totalorder %s66, %s67
      %p76 = scmp.eq.s32.totalorder %s23, 0
      %p77 = por %p75, %p76
      %p78 = scmp.ne.s32.totalorder %s66, %s67
      %p79 = scmp.eq.s32.totalorder %s24, 2
      %p80 = por %p78, %p79
      %p82 = scmp.ne.s32.totalorder %s67, %s81
      %p83 = scmp.eq.s32.totalorder %s24, 0
      %p84 = por %p82, %p83
      %s86 = sadd.s32 %s85, 1
      %p89 = scmp.eq.s32.totalorder %s18, 2
      %p90 = scmp.ne.s32.totalorder %s85, %s87
      %p91 = scmp.eq.s32.totalorder %s18, 0
      %p92 = por %p90, %p91
      %p93 = scmp.ne.s32.totalorder %s85, %s87
      %p94 = scmp.eq.s32.totalorder %s23, 2
      %p95 = por %p93, %p94
      %p96 = scmp.ne.s32.totalorder %s87, %s88
      %p97 = scmp.eq.s32.totalorder %s23, 0
      %p98 = por %p96, %p97
      %p99 = scmp.ne.s32.totalorder %s87, %s88
      %p100 = scmp.eq.s32.totalorder %s24, 2
      %p101 = por %p99, %p100
      %p103 = scmp.ne.s32.totalorder %s88, %s102
      %p104 = scmp.eq.s32.totalorder %s24, 0
      %p105 = por %p103, %p104
      %s107 = sadd.s32 %s106, 1
      %p110 = scmp.eq.s32.totalorder %s18, 2
      %p111 = scmp.ne.s32.totalorder %s106, %s108
      %p112 = scmp.eq.s32.totalorder %s18, 0
      %p113 = por %p111, %p112
      %p114 = scmp.ne.s32.totalorder %s106, %s108
      %p115 = scmp.eq.s32.totalorder %s23, 2
      %p116 = por %p114, %p115
      %p117 = scmp.ne.s32.totalorder %s108, %s109
      %p118 = scmp.eq.s32.totalorder %s23, 0
      %p119 = por %p117, %p118
      %p120 = scmp.ne.s32.totalorder %s108, %s109
      %p121 = scmp.eq.s32.totalorder %s24, 2
      %p122 = por %p120, %p121
      %p124 = scmp.ne.s32.totalorder %s109, %s123
      %p125 = scmp.eq.s32.totalorder %s24, 0
      %p126 = por %p124, %p125
      %s128 = sadd.s32 %s127, 1
      %p131 = scmp.eq.s32.totalorder %s18, 2
      %p132 = scmp.ne.s32.totalorder %s127, %s129
      %p133 = scmp.eq.s32.totalorder %s18, 0
      %p134 = por %p132, %p133
      %p135 = scmp.ne.s32.totalorder %s127, %s129
      %p136 = scmp.eq.s32.totalorder %s23, 2
      %p137 = por %p135, %p136
      %p138 = scmp.ne.s32.totalorder %s129, %s130
      %p139 = scmp.eq.s32.totalorder %s23, 0
      %p140 = por %p138, %p139
      %p141 = scmp.ne.s32.totalorder %s129, %s130
      %p142 = scmp.eq.s32.totalorder %s24, 2
      %p143 = por %p141, %p142
      %p145 = scmp.ne.s32.totalorder %s130, %s144
      %p146 = scmp.eq.s32.totalorder %s24, 0
      %p147 = por %p145, %p146
      %s149 = sadd.s32 %s148, 1
      %p152 = scmp.eq.s32.totalorder %s18, 2
      %p153 = scmp.ne.s32.totalorder %s148, %s150
      %p154 = scmp.eq.s32.totalorder %s18, 0
      %p155 = por %p153, %p154
      %p156 = scmp.ne.s32.totalorder %s148, %s150
      %p157 = scmp.eq.s32.totalorder %s23, 2
      %p158 = por %p156, %p157
      %p159 = scmp.ne.s32.totalorder %s150, %s151
      %p160 = scmp.eq.s32.totalorder %s23, 0
      %p161 = por %p159, %p160
      %p162 = scmp.ne.s32.totalorder %s150, %s151
      %p163 = scmp.eq.s32.totalorder %s24, 2
      %p164 = por %p162, %p163
      %p166 = scmp.ne.s32.totalorder %s151, %s165
      %p167 = scmp.eq.s32.totalorder %s24, 0
      %p168 = por %p166, %p167
      %s170 = sadd.s32 %s169, 1
      %p173 = scmp.eq.s32.totalorder %s18, 2
      %p174 = scmp.ne.s32.totalorder %s169, %s171
      %p175 = scmp.eq.s32.totalorder %s18, 0
      %p176 = por %p174, %p175
      %p177 = scmp.ne.s32.totalorder %s169, %s171
      %p178 = scmp.eq.s32.totalorder %s23, 2
      %p179 = por %p177, %p178
      %p180 = scmp.ne.s32.totalorder %s171, %s172
      %p181 = scmp.eq.s32.totalorder %s23, 0
      %p182 = por %p180, %p181
      %p183 = scmp.ne.s32.totalorder %s171, %s172
      %p184 = scmp.eq.s32.totalorder %s24, 2
      %p185 = por %p183, %p184
      %p187 = scmp.ne.s32.totalorder %s172, %s186
      %p188 = scmp.eq.s32.totalorder %s24, 0
      %p189 = por %p187, %p188
      %p190 = scmp.eq.s32.totalorder %s25, 2
      %s191 = scalar_select %p190, %s26, 0
      %p192 = scmp.eq.s32.totalorder %s37, 2
      %s193 = scalar_select %p192, %s33, 0
      %s194 = ssub.s32 %s191, %s193
      %p195 = scmp.eq.s32.totalorder %s194, 0
      %s197 = sadd.s32 %s196, 1
      %s198 = scalar_select %p195, %s196, %s197
      %p201 = pneg %p195
      %p202 = scmp.eq.s32.totalorder %s18, 2
      %p203 = por %p201, %p202
      %p204 = scmp.ne.s32.totalorder %s196, %s199
      %p205 = scmp.eq.s32.totalorder %s18, 0
      %p206 = por %p204, %p205
      %p207 = scmp.ne.s32.totalorder %s196, %s199
      %p208 = scmp.eq.s32.totalorder %s23, 2
      %p209 = por %p207, %p208
      %p210 = scmp.ne.s32.totalorder %s199, %s200
      %p211 = scmp.eq.s32.totalorder %s23, 0
      %p212 = por %p210, %p211
      %p213 = scmp.ne.s32.totalorder %s199, %s200
      %p214 = scmp.eq.s32.totalorder %s24, 2
      %p215 = por %p213, %p214
      %p217 = scmp.ne.s32.totalorder %s200, %s216
      %p218 = scmp.eq.s32.totalorder %s24, 0
      %p219 = por %p217, %p218
      %p220 = scmp.le.s32.totalorder 1, %s18
      %p221 = scmp.lt.s32.totalorder %s18, 4
      %p222 = pnand %p220, %p221
      %p223 = pneg %p222
      // Predicated region
      $region9: #{_mlp_fused_pallas.1} parent=5 // pred_check
        _
      $region10: #{_mlp_fused_pallas.1} parent=5 // pred_check_branch
        %225 = sbr.rel (%p222) target = $region12
      $region11: #{_mlp_fused_pallas.1} parent=5 // pred_region
        %s226 = ssub.s32 %s18, 1
        // Predicated region
        $region13: #{_mlp_fused_pallas.1} parent=11 // pred_check
          %p227 = pneg %p56
        $region14: #{_mlp_fused_pallas.1} parent=11 // pred_check_branch
          %229 = sbr.rel (%p227) target = $region16
        $region15: #{_mlp_fused_pallas.1} parent=11 // pred_region
          %s230 = smul.u32 2, %s28
          %s232 = ssub.s32 256, 256
          %233 = vsyncadd [#allocation6], %s232
          %s234 = smul.addr %s230, 128
          %s235 = scalar_lea.hbm %s0, %s234
          %s236 = sshll.u32 [#allocation5], 4
          %s237 = int_to_ptr.vmem [resolvable:$true] %s236
          %242 = dma.hbm_to_vmem [thread:$0]  %s235, 256, %s237, [#allocation6], 128, 128, 8
        $region16: #{_mlp_fused_pallas.1} parent=11 // pred_fallthru
          _
        // Predicated region
        $region17: #{_mlp_fused_pallas.1} parent=11 // pred_check
          %p243 = pneg %p77
        $region18: #{_mlp_fused_pallas.1} parent=11 // pred_check_branch
          %245 = sbr.rel (%p243) target = $region20
        $region19: #{_mlp_fused_pallas.1} parent=11 // pred_region
          %s247 = ssub.s32 4096, 4096
          %248 = vsyncadd [#allocation9], %s247
          %s249 = sshll.u32 [#allocation8], 4
          %s250 = int_to_ptr.vmem [resolvable:$true] %s249
          %255 = dma.hbm_to_vmem [thread:$0]  %s1, 4096, %s250, [#allocation9], 128, 128, 8
        $region20: #{_mlp_fused_pallas.1} parent=11 // pred_fallthru
          _
        // Predicated region
        $region21: #{_mlp_fused_pallas.1} parent=11 // pred_check
          %p256 = pneg %p98
        $region22: #{_mlp_fused_pallas.1} parent=11 // pred_check_branch
          %258 = sbr.rel (%p256) target = $region24
        $region23: #{_mlp_fused_pallas.1} parent=11 // pred_region
          _
        $region24: #{_mlp_fused_pallas.1} parent=11 // pred_fallthru
          _
        // Predicated region
        $region25: #{_mlp_fused_pallas.1} parent=11 // pred_check
          %p259 = pneg %p119
        $region26: #{_mlp_fused_pallas.1} parent=11 // pred_check_branch
          %261 = sbr.rel (%p259) target = $region28
        $region27: #{_mlp_fused_pallas.1} parent=11 // pred_region
          _
        $region28: #{_mlp_fused_pallas.1} parent=11 // pred_fallthru
          _
        // Predicated region
        $region29: #{_mlp_fused_pallas.1} parent=11 // pred_check
          %p262 = pneg %p140
        $region30: #{_mlp_fused_pallas.1} parent=11 // pred_check_branch
          %264 = sbr.rel (%p262) target = $region32
        $region31: #{_mlp_fused_pallas.1} parent=11 // pred_region
          _
        $region32: #{_mlp_fused_pallas.1} parent=11 // pred_fallthru
          _
        // Predicated region
        $region33: #{_mlp_fused_pallas.1} parent=11 // pred_check
          %p265 = pneg %p161
        $region34: #{_mlp_fused_pallas.1} parent=11 // pred_check_branch
          %267 = sbr.rel (%p265) target = $region36
        $region35: #{_mlp_fused_pallas.1} parent=11 // pred_region
          %s269 = ssub.s32 2048, 2048
          %270 = vsyncadd [#allocation9], %s269
          %s271 = sshll.u32 [#allocation10], 4
          %s272 = int_to_ptr.vmem [resolvable:$true] %s271
          %277 = dma.hbm_to_vmem [thread:$0]  %s5, 2048, %s272, [#allocation9], 128, 128, 8
        $region36: #{_mlp_fused_pallas.1} parent=11 // pred_fallthru
          _
        // Predicated region
        $region37: #{_mlp_fused_pallas.1} parent=11 // pred_check
          %p278 = pneg %p182
        $region38: #{_mlp_fused_pallas.1} parent=11 // pred_check_branch
          %280 = sbr.rel (%p278) target = $region40
        $region39: #{_mlp_fused_pallas.1} parent=11 // pred_region
          _
        $region40: #{_mlp_fused_pallas.1} parent=11 // pred_fallthru
          _
      $region12: #{_mlp_fused_pallas.1} parent=5 // pred_fallthru
        _
      %p281 = scmp.lt.s32.totalorder %s18, 3
      // Predicated region
      $region41: #{_mlp_fused_pallas.1} parent=5 // pred_check
        %p282 = pneg %p281
      $region42: #{_mlp_fused_pallas.1} parent=5 // pred_check_branch
        %284 = sbr.rel (%p282) target = $region44
      $region43: #{_mlp_fused_pallas.1} parent=5 // pred_region
        _
      $region44: #{_mlp_fused_pallas.1} parent=5 // pred_fallthru
        _
      %p285 = scmp.le.s32.totalorder 1, %s18
      %p286 = scmp.lt.s32.totalorder %s18, 4
      %p287 = pnand %p285, %p286
      %p288 = pneg %p287
      // Predicated region
      $region45: #{_mlp_fused_pallas.1} parent=5 // pred_check
        _
      $region46: #{_mlp_fused_pallas.1} parent=5 // pred_check_branch
        %290 = sbr.rel (%p287) target = $region48
      $region47: #{_mlp_fused_pallas.1} parent=5 // pred_region
        %s291 = ssub.s32 %s18, 1
        // Predicated region
        $region49: #{_mlp_fused_pallas.1} parent=47 // pred_check
          %p292 = pneg %p56
        $region50: #{_mlp_fused_pallas.1} parent=47 // pred_check_branch
          %294 = sbr.rel (%p292) target = $region52
        $region51: #{_mlp_fused_pallas.1} parent=47 // pred_region
          %295 = dma.done [#allocation6], 256
        $region52: #{_mlp_fused_pallas.1} parent=47 // pred_fallthru
          _
        // Predicated region
        $region53: #{_mlp_fused_pallas.1} parent=47 // pred_check
          %p296 = pneg %p77
        $region54: #{_mlp_fused_pallas.1} parent=47 // pred_check_branch
          %298 = sbr.rel (%p296) target = $region56
        $region55: #{_mlp_fused_pallas.1} parent=47 // pred_region
          %299 = dma.done [#allocation9], 4096
        $region56: #{_mlp_fused_pallas.1} parent=47 // pred_fallthru
          _
        // Predicated region
        $region57: #{_mlp_fused_pallas.1} parent=47 // pred_check
          %p300 = pneg %p161
        $region58: #{_mlp_fused_pallas.1} parent=47 // pred_check_branch
          %302 = sbr.rel (%p300) target = $region60
        $region59: #{_mlp_fused_pallas.1} parent=47 // pred_region
          %303 = dma.done [#allocation9], 2048
        $region60: #{_mlp_fused_pallas.1} parent=47 // pred_fallthru
          _
        %p304 = pneg %p56
        %p305 = pneg %p53
        %p306 = pneg %p77
        %p307 = pneg %p74
        %p308 = pneg %p98
        %p309 = pneg %p95
        %p310 = pneg %p119
        %p311 = pneg %p116
        %p312 = pneg %p140
        %p313 = pneg %p137
        %p314 = pneg %p161
        %p315 = pneg %p158
        %p316 = pneg %p182
        %p317 = pneg %p179
        %p318 = pneg %p212
        %p319 = pneg %p209
        %s320 = sand.u32 %s199, 1
        %s321 = scalar_lea.sflag [#allocation7], %s320
        %s322 = sand.u32 %s199, 1
        %s323 = smul.addr %s322, 16
        %s324 = scalar_lea.vmem [#allocation11], %s323
        %s325 = smul.u32 2, %s28
        %p326 = scmp.eq.s32.totalorder %s27, 2
        %s327 = scalar_select %p326, %s28, 0
        %s328 = smul.u32 2, %s327
        %p329 = scmp.eq.s32.totalorder %s27, 0
        %p330 = scmp.eq.s32.totalorder %s28, 0
        %p331 = pnand %p329, %p330
        %p332 = pneg %p331
        // Predicated region
        $region61: #{_mlp_fused_pallas.1} parent=47 // pred_check
          _
        $region62: #{_mlp_fused_pallas.1} parent=47 // pred_check_branch
          %334 = sbr.rel (%p331) target = $region64
        $region63: #{_mlp_fused_pallas.1} parent=47 // pred_region
          %335 = vst [vmem:[#allocation3] sm:$0x1] 0.0
          %336 = vst [vmem:[#allocation3 + $0x1] sm:$0x1] 0.0
          %337 = vst [vmem:[#allocation4] sm:$0x1] 0.0
          %338 = vst [vmem:[#allocation4 + $0x1] sm:$0x1] 0.0
          %339 = vst [vmem:[%s324] sm:$0xff] 0.0
          %340 = vst [vmem:[%s324 + $0x8] sm:$0xff] 0.0
        $region64: #{_mlp_fused_pallas.1} parent=47 // pred_fallthru
          _
        // Predicated region
        $region65: #{_mlp_fused_pallas.1} parent=47 // pred_check
          %p341 = pneg %p329
        $region66: #{_mlp_fused_pallas.1} parent=47 // pred_check_branch
          %343 = sbr.rel (%p341) target = $region68
        $region67: #{_mlp_fused_pallas.1} parent=47 // pred_region
          %v344 = vld [vmem:[#allocation5] sm:$0xff]
          %v345 = vld [vmem:[#allocation5 + $0x8] sm:$0xff]
          %v346 = vld [vmem:[#allocation8] sm:$0xff]
          %v347 = vld [vmem:[#allocation8 + $0x8] sm:$0xff]
          %v348 = vld [vmem:[#allocation8 + $0x10] sm:$0xff]
          %v349 = vld [vmem:[#allocation8 + $0x18] sm:$0xff]
          %v350 = vld [vmem:[#allocation8 + $0x20] sm:$0xff]
          %v351 = vld [vmem:[#allocation8 + $0x28] sm:$0xff]
          %v352 = vld [vmem:[#allocation8 + $0x30] sm:$0xff]
          %v353 = vld [vmem:[#allocation8 + $0x38] sm:$0xff]
          %v354 = vld [vmem:[#allocation8 + $0x40] sm:$0xff]
          %v355 = vld [vmem:[#allocation8 + $0x48] sm:$0xff]
          %v356 = vld [vmem:[#allocation8 + $0x50] sm:$0xff]
          %v357 = vld [vmem:[#allocation8 + $0x58] sm:$0xff]
          %v358 = vld [vmem:[#allocation8 + $0x60] sm:$0xff]
          %v359 = vld [vmem:[#allocation8 + $0x68] sm:$0xff]
          %v360 = vld [vmem:[#allocation8 + $0x70] sm:$0xff]
          %v361 = vld [vmem:[#allocation8 + $0x78] sm:$0xff]
          %v362 = vld [vmem:[%s2] sm:$0x1]
          %v364 = vlaneseq
          %v365 = vshrl.u32 %v364, 7
          %v366 = vsub.s32 0, %v365
          %v367 = vrot.slane %v362, %v366
          %369 = vmatprep.subr.mxu0 0.0
          %370 = vmatpush1.msra.mxu0 %v346
          %371 = vmatprep.subr.mxu0 0.0
          %372 = vmatpush1.msra.mxu0 %v347
          %373 = vmatprep.subr.mxu0 0.0
          %374 = vmatpush1.msra.mxu0 %v348
          %375 = vmatprep.subr.mxu0 0.0
          %376 = vmatpush1.msra.mxu0 %v349
          %377 = vmatprep.subr.mxu0 0.0
          %378 = vmatpush1.msra.mxu0 %v350
          %379 = vmatprep.subr.mxu0 0.0
          %380 = vmatpush1.msra.mxu0 %v351
          %381 = vmatprep.subr.mxu0 0.0
          %382 = vmatpush1.msra.mxu0 %v352
          %383 = vmatprep.subr.mxu0 0.0
          %384 = vmatpush1.msra.mxu0 %v353
          %385 = vmatprep.subr.mxu0 0.0
          %386 = vmatpush1.msra.mxu0 %v354
          %387 = vmatprep.subr.mxu0 0.0
          %388 = vmatpush1.msra.mxu0 %v355
          %389 = vmatprep.subr.mxu0 0.0
          %390 = vmatpush1.msra.mxu0 %v356
          %391 = vmatprep.subr.mxu0 0.0
          %392 = vmatpush1.msra.mxu0 %v357
          %393 = vmatprep.subr.mxu0 0.0
          %394 = vmatpush1.msra.mxu0 %v358
          %395 = vmatprep.subr.mxu0 0.0
          %396 = vmatpush1.msra.mxu0 %v359
          %397 = vmatprep.subr.mxu0 0.0
          %398 = vmatpush1.msra.mxu0 %v360
          %399 = vmatprep.subr.mxu0 0.0
          %400 = vmatpush1.msra.mxu0 %v361
          %401 = vmatprep.subr.mxu0 0.0
          %402 = vmatpush1.msra.mxu0 0.0
          %403 = vmatprep.subr.mxu0 0.0
          %404 = vmatpush1.msra.mxu0 0.0
          %405 = vmatprep.subr.mxu0 0.0
          %406 = vmatpush1.msra.mxu0 0.0
          %407 = vmatprep.subr.mxu0 0.0
          %408 = vmatpush1.msra.mxu0 0.0
          %409 = vmatprep.subr.mxu0 0.0
          %410 = vmatpush1.msra.mxu0 0.0
          %411 = vmatprep.subr.mxu0 0.0
          %412 = vmatpush1.msra.mxu0 0.0
          %413 = vmatprep.subr.mxu0 0.0
          %414 = vmatpush1.msra.mxu0 0.0
          %415 = vmatprep.subr.mxu0 0.0
          %416 = vmatpush1.msra.mxu0 0.0
          %417 = vmatprep.subr.mxu0 0.0
          %418 = vmatpush1.msra.mxu0 0.0
          %419 = vmatprep.subr.mxu0 0.0
          %420 = vmatpush1.msra.mxu0 0.0
          %421 = vmatprep.subr.mxu0 0.0
          %422 = vmatpush1.msra.mxu0 0.0
          %423 = vmatprep.subr.mxu0 0.0
          %424 = vmatpush1.msra.mxu0 0.0
          %425 = vmatprep.subr.mxu0 0.0
          %426 = vmatpush1.msra.mxu0 0.0
          %427 = vmatprep.subr.mxu0 0.0
          %428 = vmatpush1.msra.mxu0 0.0
          %429 = vmatprep.subr.mxu0 0.0
          %430 = vmatpush1.msra.mxu0 0.0
          %431 = vmatprep.subr.mxu0 0.0
          %432 = vmatpush1.msra.mxu0 0.0
          %433 = vmatprep.mubr.f32.mxu0 0.0
          %434 = vmatmul.mubr.f32.gmra.mrb[0].mxu0 %v344
          %v435 = vpop.f32.mrb[0].mxu0
          %v436 = vadd.f32 %v367, %v435
          %v437 = vpop.f32.mrb[0].mxu0
          %438 = vmatprep.mubr.f32.mxu0 0.0
          %439 = vmatmul.mubr.f32.gmra.mrb[0].mxu0 %v345
          %v440 = vpop.f32.mrb[0].mxu0
          %v441 = vadd.f32 %v367, %v440
          %v442 = vpop.f32.mrb[0].mxu0
          %443 = vdwg.mxu0
          %s444 = smul.u32 %s28, 16
          %v445 = vlaneseq
          %v446 = vshrl.u32 %v445, 7
          %v447 = vadd.s32 %v446, 8
          %v448 = vstv %s444
          %v449 = vadd.s32 %v448, %v446
          %v450 = vadd.s32 %v448, %v447
          %vm451 = vcmp.lt.s32.totalorder %v449, 16
          %vm452 = vcmp.lt.s32.totalorder %v450, 16
          %v453 = vsel %vm451, 1, 0
          %v454 = vsel %vm452, 1, 0
          %vm455 = vcmp.eq.s32.totalorder %v453, 1
          %vm456 = vcmp.eq.s32.totalorder %v454, 1
          %v457 = vsel %vm455, %v436, 0.0
          %v458 = vsel %vm456, %v441, 0.0
          %v459 = vld [vmem:[#allocation3] sm:$0x1]
          %v460 = vadd.f32 %v457, %v458
          %v461 = vrot.slane %v460, 4
          %v462 = vadd.f32 %v460, %v461
          %v463 = vrot.slane %v462, 2
          %v464 = vadd.f32 %v462, %v463
          %v465 = vrot.slane %v464, 1
          %v466 = vadd.f32 %v464, %v465
          %v467 = vadd.f32 %v459, %v466
          %468 = vst [vmem:[#allocation3] sm:$0x1] %v467
          %v469 = vld [vmem:[#allocation4] sm:$0x1]
          %v470 = vmul.f32 %v457, %v457
          %v471 = vmul.f32 %v458, %v458
          %v472 = vadd.f32 %v470, %v471
          %v473 = vrot.slane %v472, 4
          %v474 = vadd.f32 %v472, %v473
          %v475 = vrot.slane %v474, 2
          %v476 = vadd.f32 %v474, %v475
          %v477 = vrot.slane %v476, 1
          %v478 = vadd.f32 %v476, %v477
          %v479 = vadd.f32 %v469, %v478
          %480 = vst [vmem:[#allocation4] sm:$0x1] %v479
        $region68: #{_mlp_fused_pallas.1} parent=47 // pred_fallthru
          _
        %p481 = scmp.gt.s32.totalorder %s27, 0
        // Predicated region
        $region69: #{_mlp_fused_pallas.1} parent=47 // pred_check
          %p482 = pneg %p481
        $region70: #{_mlp_fused_pallas.1} parent=47 // pred_check_branch
          %484 = sbr.rel (%p482) target = $region72
        $region71: #{_mlp_fused_pallas.1} parent=47 // pred_region
          %v485 = vld [vmem:[#allocation5] sm:$0xff]
          %v486 = vld [vmem:[#allocation5 + $0x8] sm:$0xff]
          %v487 = vld [vmem:[#allocation8] sm:$0xff]
          %v488 = vld [vmem:[#allocation8 + $0x8] sm:$0xff]
          %v489 = vld [vmem:[#allocation8 + $0x10] sm:$0xff]
          %v490 = vld [vmem:[#allocation8 + $0x18] sm:$0xff]
          %v491 = vld [vmem:[#allocation8 + $0x20] sm:$0xff]
          %v492 = vld [vmem:[#allocation8 + $0x28] sm:$0xff]
          %v493 = vld [vmem:[#allocation8 + $0x30] sm:$0xff]
          %v494 = vld [vmem:[#allocation8 + $0x38] sm:$0xff]
          %v495 = vld [vmem:[#allocation8 + $0x40] sm:$0xff]
          %v496 = vld [vmem:[#allocation8 + $0x48] sm:$0xff]
          %v497 = vld [vmem:[#allocation8 + $0x50] sm:$0xff]
          %v498 = vld [vmem:[#allocation8 + $0x58] sm:$0xff]
          %v499 = vld [vmem:[#allocation8 + $0x60] sm:$0xff]
          %v500 = vld [vmem:[#allocation8 + $0x68] sm:$0xff]
          %v501 = vld [vmem:[#allocation8 + $0x70] sm:$0xff]
          %v502 = vld [vmem:[#allocation8 + $0x78] sm:$0xff]
          %v503 = vld [vmem:[%s2] sm:$0x1]
          %v505 = vlaneseq
          %v506 = vshrl.u32 %v505, 7
          %v507 = vsub.s32 0, %v506
          %v508 = vrot.slane %v503, %v507
          %510 = vmatprep.subr.mxu0 0.0
          %511 = vmatpush1.msra.mxu0 %v487
          %512 = vmatprep.subr.mxu0 0.0
          %513 = vmatpush1.msra.mxu0 %v488
          %514 = vmatprep.subr.mxu0 0.0
          %515 = vmatpush1.msra.mxu0 %v489
          %516 = vmatprep.subr.mxu0 0.0
          %517 = vmatpush1.msra.mxu0 %v490
          %518 = vmatprep.subr.mxu0 0.0
          %519 = vmatpush1.msra.mxu0 %v491
          %520 = vmatprep.subr.mxu0 0.0
          %521 = vmatpush1.msra.mxu0 %v492
          %522 = vmatprep.subr.mxu0 0.0
          %523 = vmatpush1.msra.mxu0 %v493
          %524 = vmatprep.subr.mxu0 0.0
          %525 = vmatpush1.msra.mxu0 %v494
          %526 = vmatprep.subr.mxu0 0.0
          %527 = vmatpush1.msra.mxu0 %v495
          %528 = vmatprep.subr.mxu0 0.0
          %529 = vmatpush1.msra.mxu0 %v496
          %530 = vmatprep.subr.mxu0 0.0
          %531 = vmatpush1.msra.mxu0 %v497
          %532 = vmatprep.subr.mxu0 0.0
          %533 = vmatpush1.msra.mxu0 %v498
          %534 = vmatprep.subr.mxu0 0.0
          %535 = vmatpush1.msra.mxu0 %v499
          %536 = vmatprep.subr.mxu0 0.0
          %537 = vmatpush1.msra.mxu0 %v500
          %538 = vmatprep.subr.mxu0 0.0
          %539 = vmatpush1.msra.mxu0 %v501
          %540 = vmatprep.subr.mxu0 0.0
          %541 = vmatpush1.msra.mxu0 %v502
          %542 = vmatprep.subr.mxu0 0.0
          %543 = vmatpush1.msra.mxu0 0.0
          %544 = vmatprep.subr.mxu0 0.0
          %545 = vmatpush1.msra.mxu0 0.0
          %546 = vmatprep.subr.mxu0 0.0
          %547 = vmatpush1.msra.mxu0 0.0
          %548 = vmatprep.subr.mxu0 0.0
          %549 = vmatpush1.msra.mxu0 0.0
          %550 = vmatprep.subr.mxu0 0.0
          %551 = vmatpush1.msra.mxu0 0.0
          %552 = vmatprep.subr.mxu0 0.0
          %553 = vmatpush1.msra.mxu0 0.0
          %554 = vmatprep.subr.mxu0 0.0
          %555 = vmatpush1.msra.mxu0 0.0
          %556 = vmatprep.subr.mxu0 0.0
          %557 = vmatpush1.msra.mxu0 0.0
          %558 = vmatprep.subr.mxu0 0.0
          %559 = vmatpush1.msra.mxu0 0.0
          %560 = vmatprep.subr.mxu0 0.0
          %561 = vmatpush1.msra.mxu0 0.0
          %562 = vmatprep.subr.mxu0 0.0
          %563 = vmatpush1.msra.mxu0 0.0
          %564 = vmatprep.subr.mxu0 0.0
          %565 = vmatpush1.msra.mxu0 0.0
          %566 = vmatprep.subr.mxu0 0.0
          %567 = vmatpush1.msra.mxu0 0.0
          %568 = vmatprep.subr.mxu0 0.0
          %569 = vmatpush1.msra.mxu0 0.0
          %570 = vmatprep.subr.mxu0 0.0
          %571 = vmatpush1.msra.mxu0 0.0
          %572 = vmatprep.subr.mxu0 0.0
          %573 = vmatpush1.msra.mxu0 0.0
          %574 = vmatprep.mubr.f32.mxu0 0.0
          %575 = vmatmul.mubr.f32.gmra.mrb[0].mxu0 %v485
          %v576 = vpop.f32.mrb[0].mxu0
          %v577 = vadd.f32 %v508, %v576
          %v578 = vpop.f32.mrb[0].mxu0
          %579 = vmatprep.mubr.f32.mxu0 0.0
          %580 = vmatmul.mubr.f32.gmra.mrb[0].mxu0 %v486
          %v581 = vpop.f32.mrb[0].mxu0
          %v582 = vadd.f32 %v508, %v581
          %v583 = vpop.f32.mrb[0].mxu0
          %584 = vdwg.mxu0
          %v585 = vld [vmem:[#allocation3] sm:$0x1]
          %v586 = vmul.f32 %v585, 0.0625
          %v587 = vld [vmem:[#allocation4] sm:$0x1]
          %v588 = vmul.f32 %v587, 0.0625
          %v589 = vmul.f32 %v586, %v586
          %v590 = vsub.f32 %v588, %v589
          %v591 = vmax.f32 %v590, 0.0
          %v592 = vadd.f32 %v591, 1e-05
          %v593 = vrsqrt.pop %v592
          %v594 = vld [vmem:[%s3] sm:$0x1]
          %v595 = vmul.f32 %v593, %v594
          %v596 = vld [vmem:[%s4] sm:$0x1]
          %v597 = vmul.f32 %v586, %v595
          %v598 = vsub.f32 %v596, %v597
          %v600 = vlaneseq
          %v601 = vshrl.u32 %v600, 7
          %v602 = vsub.s32 0, %v601
          %v603 = vrot.slane %v595, %v602
          %v605 = vmul.f32 %v577, %v603
          %v606 = vmul.f32 %v582, %v603
          %v608 = vlaneseq
          %v609 = vshrl.u32 %v608, 7
          %v610 = vsub.s32 0, %v609
          %v611 = vrot.slane %v598, %v610
          %v613 = vadd.f32 %v605, %v611
          %v614 = vadd.f32 %v606, %v611
          %v615 = vmax.f32 %v613, 0.0
          %v616 = vmax.f32 %v614, 0.0
          %617 = vst [vmem:[#allocation2] sm:$0xff] %v615
          %618 = vst [vmem:[#allocation2 + $0x8] sm:$0xff] %v616
        $region72: #{_mlp_fused_pallas.1} parent=47 // pred_fallthru
          _
        %p619 = scmp.eq.s32.totalorder %s27, 1
        // Predicated region
        $region73: #{_mlp_fused_pallas.1} parent=47 // pred_check
          %p620 = pneg %p619
        $region74: #{_mlp_fused_pallas.1} parent=47 // pred_check_branch
          %622 = sbr.rel (%p620) target = $region76
        $region75: #{_mlp_fused_pallas.1} parent=47 // pred_region
          %v623 = vld [vmem:[#allocation2] sm:$0xff]
          %v624 = vld [vmem:[#allocation2 + $0x8] sm:$0xff]
          %s625 = scalar_lea.vmem [#allocation8], 128
          %v626 = vld [vmem:[%s625] sm:$0xff]
          %v627 = vld [vmem:[%s625 + $0x8] sm:$0xff]
          %v628 = vld [vmem:[%s625 + $0x10] sm:$0xff]
          %v629 = vld [vmem:[%s625 + $0x18] sm:$0xff]
          %v630 = vld [vmem:[%s625 + $0x20] sm:$0xff]
          %v631 = vld [vmem:[%s625 + $0x28] sm:$0xff]
          %v632 = vld [vmem:[%s625 + $0x30] sm:$0xff]
          %v633 = vld [vmem:[%s625 + $0x38] sm:$0xff]
          %v634 = vld [vmem:[%s625 + $0x40] sm:$0xff]
          %v635 = vld [vmem:[%s625 + $0x48] sm:$0xff]
          %v636 = vld [vmem:[%s625 + $0x50] sm:$0xff]
          %v637 = vld [vmem:[%s625 + $0x58] sm:$0xff]
          %v638 = vld [vmem:[%s625 + $0x60] sm:$0xff]
          %v639 = vld [vmem:[%s625 + $0x68] sm:$0xff]
          %v640 = vld [vmem:[%s625 + $0x70] sm:$0xff]
          %v641 = vld [vmem:[%s625 + $0x78] sm:$0xff]
          %s642 = scalar_lea.vmem %s2, 1
          %v643 = vld [vmem:[%s642] sm:$0x1]
          %v645 = vlaneseq
          %v646 = vshrl.u32 %v645, 7
          %v647 = vsub.s32 0, %v646
          %v648 = vrot.slane %v643, %v647
          %650 = vmatprep.subr.mxu0 0.0
          %651 = vmatpush1.msra.mxu0 %v626
          %652 = vmatprep.subr.mxu0 0.0
          %653 = vmatpush1.msra.mxu0 %v627
          %654 = vmatprep.subr.mxu0 0.0
          %655 = vmatpush1.msra.mxu0 %v628
          %656 = vmatprep.subr.mxu0 0.0
          %657 = vmatpush1.msra.mxu0 %v629
          %658 = vmatprep.subr.mxu0 0.0
          %659 = vmatpush1.msra.mxu0 %v630
          %660 = vmatprep.subr.mxu0 0.0
          %661 = vmatpush1.msra.mxu0 %v631
          %662 = vmatprep.subr.mxu0 0.0
          %663 = vmatpush1.msra.mxu0 %v632
          %664 = vmatprep.subr.mxu0 0.0
          %665 = vmatpush1.msra.mxu0 %v633
          %666 = vmatprep.subr.mxu0 0.0
          %667 = vmatpush1.msra.mxu0 %v634
          %668 = vmatprep.subr.mxu0 0.0
          %669 = vmatpush1.msra.mxu0 %v635
          %670 = vmatprep.subr.mxu0 0.0
          %671 = vmatpush1.msra.mxu0 %v636
          %672 = vmatprep.subr.mxu0 0.0
          %673 = vmatpush1.msra.mxu0 %v637
          %674 = vmatprep.subr.mxu0 0.0
          %675 = vmatpush1.msra.mxu0 %v638
          %676 = vmatprep.subr.mxu0 0.0
          %677 = vmatpush1.msra.mxu0 %v639
          %678 = vmatprep.subr.mxu0 0.0
          %679 = vmatpush1.msra.mxu0 %v640
          %680 = vmatprep.subr.mxu0 0.0
          %681 = vmatpush1.msra.mxu0 %v641
          %682 = vmatprep.subr.mxu0 0.0
          %683 = vmatpush1.msra.mxu0 0.0
          %684 = vmatprep.subr.mxu0 0.0
          %685 = vmatpush1.msra.mxu0 0.0
          %686 = vmatprep.subr.mxu0 0.0
          %687 = vmatpush1.msra.mxu0 0.0
          %688 = vmatprep.subr.mxu0 0.0
          %689 = vmatpush1.msra.mxu0 0.0
          %690 = vmatprep.subr.mxu0 0.0
          %691 = vmatpush1.msra.mxu0 0.0
          %692 = vmatprep.subr.mxu0 0.0
          %693 = vmatpush1.msra.mxu0 0.0
          %694 = vmatprep.subr.mxu0 0.0
          %695 = vmatpush1.msra.mxu0 0.0
          %696 = vmatprep.subr.mxu0 0.0
          %697 = vmatpush1.msra.mxu0 0.0
          %698 = vmatprep.subr.mxu0 0.0
          %699 = vmatpush1.msra.mxu0 0.0
          %700 = vmatprep.subr.mxu0 0.0
          %701 = vmatpush1.msra.mxu0 0.0
          %702 = vmatprep.subr.mxu0 0.0
          %703 = vmatpush1.msra.mxu0 0.0
          %704 = vmatprep.subr.mxu0 0.0
          %705 = vmatpush1.msra.mxu0 0.0
          %706 = vmatprep.subr.mxu0 0.0
          %707 = vmatpush1.msra.mxu0 0.0
          %708 = vmatprep.subr.mxu0 0.0
          %709 = vmatpush1.msra.mxu0 0.0
          %710 = vmatprep.subr.mxu0 0.0
          %711 = vmatpush1.msra.mxu0 0.0
          %712 = vmatprep.subr.mxu0 0.0
          %713 = vmatpush1.msra.mxu0 0.0
          %714 = vmatprep.mubr.f32.mxu0 0.0
          %715 = vmatmul.mubr.f32.gmra.mrb[0].mxu0 %v623
          %v716 = vpop.f32.mrb[0].mxu0
          %v717 = vadd.f32 %v648, %v716
          %v718 = vpop.f32.mrb[0].mxu0
          %719 = vmatprep.mubr.f32.mxu0 0.0
          %720 = vmatmul.mubr.f32.gmra.mrb[0].mxu0 %v624
          %v721 = vpop.f32.mrb[0].mxu0
          %v722 = vadd.f32 %v648, %v721
          %v723 = vpop.f32.mrb[0].mxu0
          %724 = vdwg.mxu0
          %s725 = smul.u32 %s28, 16
          %v726 = vlaneseq
          %v727 = vshrl.u32 %v726, 7
          %v728 = vadd.s32 %v727, 8
          %v729 = vstv %s725
          %v730 = vadd.s32 %v729, %v727
          %v731 = vadd.s32 %v729, %v728
          %vm732 = vcmp.lt.s32.totalorder %v730, 16
          %vm733 = vcmp.lt.s32.totalorder %v731, 16
          %v734 = vsel %vm732, 1, 0
          %v735 = vsel %vm733, 1, 0
          %vm736 = vcmp.eq.s32.totalorder %v734, 1
          %vm737 = vcmp.eq.s32.totalorder %v735, 1
          %v738 = vsel %vm736, %v717, 0.0
          %v739 = vsel %vm737, %v722, 0.0
          %s740 = scalar_lea.vmem [#allocation3], 1
          %v741 = vld [vmem:[%s740] sm:$0x1]
          %v742 = vadd.f32 %v738, %v739
          %v743 = vrot.slane %v742, 4
          %v744 = vadd.f32 %v742, %v743
          %v745 = vrot.slane %v744, 2
          %v746 = vadd.f32 %v744, %v745
          %v747 = vrot.slane %v746, 1
          %v748 = vadd.f32 %v746, %v747
          %v749 = vadd.f32 %v741, %v748
          %750 = vst [vmem:[%s740] sm:$0x1] %v749
          %s751 = scalar_lea.vmem [#allocation4], 1
          %v752 = vld [vmem:[%s751] sm:$0x1]
          %v753 = vmul.f32 %v738, %v738
          %v754 = vmul.f32 %v739, %v739
          %v755 = vadd.f32 %v753, %v754
          %v756 = vrot.slane %v755, 4
          %v757 = vadd.f32 %v755, %v756
          %v758 = vrot.slane %v757, 2
          %v759 = vadd.f32 %v757, %v758
          %v760 = vrot.slane %v759, 1
          %v761 = vadd.f32 %v759, %v760
          %v762 = vadd.f32 %v752, %v761
          %763 = vst [vmem:[%s751] sm:$0x1] %v762
        $region76: #{_mlp_fused_pallas.1} parent=47 // pred_fallthru
          _
        %p764 = scmp.gt.s32.totalorder %s27, 1
        // Predicated region
        $region77: #{_mlp_fused_pallas.1} parent=47 // pred_check
          %p765 = pneg %p764
        $region78: #{_mlp_fused_pallas.1} parent=47 // pred_check_branch
          %767 = sbr.rel (%p765) target = $region80
        $region79: #{_mlp_fused_pallas.1} parent=47 // pred_region
          %v768 = vld [vmem:[#allocation2] sm:$0xff]
          %v769 = vld [vmem:[#allocation2 + $0x8] sm:$0xff]
          %s770 = scalar_lea.vmem [#allocation8], 128
          %v771 = vld [vmem:[%s770] sm:$0xff]
          %v772 = vld [vmem:[%s770 + $0x8] sm:$0xff]
          %v773 = vld [vmem:[%s770 + $0x10] sm:$0xff]
          %v774 = vld [vmem:[%s770 + $0x18] sm:$0xff]
          %v775 = vld [vmem:[%s770 + $0x20] sm:$0xff]
          %v776 = vld [vmem:[%s770 + $0x28] sm:$0xff]
          %v777 = vld [vmem:[%s770 + $0x30] sm:$0xff]
          %v778 = vld [vmem:[%s770 + $0x38] sm:$0xff]
          %v779 = vld [vmem:[%s770 + $0x40] sm:$0xff]
          %v780 = vld [vmem:[%s770 + $0x48] sm:$0xff]
          %v781 = vld [vmem:[%s770 + $0x50] sm:$0xff]
          %v782 = vld [vmem:[%s770 + $0x58] sm:$0xff]
          %v783 = vld [vmem:[%s770 + $0x60] sm:$0xff]
          %v784 = vld [vmem:[%s770 + $0x68] sm:$0xff]
          %v785 = vld [vmem:[%s770 + $0x70] sm:$0xff]
          %v786 = vld [vmem:[%s770 + $0x78] sm:$0xff]
          %s787 = scalar_lea.vmem %s2, 1
          %v788 = vld [vmem:[%s787] sm:$0x1]
          %v790 = vlaneseq
          %v791 = vshrl.u32 %v790, 7
          %v792 = vsub.s32 0, %v791
          %v793 = vrot.slane %v788, %v792
          %795 = vmatprep.subr.mxu0 0.0
          %796 = vmatpush1.msra.mxu0 %v771
          %797 = vmatprep.subr.mxu0 0.0
          %798 = vmatpush1.msra.mxu0 %v772
          %799 = vmatprep.subr.mxu0 0.0
          %800 = vmatpush1.msra.mxu0 %v773
          %801 = vmatprep.subr.mxu0 0.0
          %802 = vmatpush1.msra.mxu0 %v774
          %803 = vmatprep.subr.mxu0 0.0
          %804 = vmatpush1.msra.mxu0 %v775
          %805 = vmatprep.subr.mxu0 0.0
          %806 = vmatpush1.msra.mxu0 %v776
          %807 = vmatprep.subr.mxu0 0.0
          %808 = vmatpush1.msra.mxu0 %v777
          %809 = vmatprep.subr.mxu0 0.0
          %810 = vmatpush1.msra.mxu0 %v778
          %811 = vmatprep.subr.mxu0 0.0
          %812 = vmatpush1.msra.mxu0 %v779
          %813 = vmatprep.subr.mxu0 0.0
          %814 = vmatpush1.msra.mxu0 %v780
          %815 = vmatprep.subr.mxu0 0.0
          %816 = vmatpush1.msra.mxu0 %v781
          %817 = vmatprep.subr.mxu0 0.0
          %818 = vmatpush1.msra.mxu0 %v782
          %819 = vmatprep.subr.mxu0 0.0
          %820 = vmatpush1.msra.mxu0 %v783
          %821 = vmatprep.subr.mxu0 0.0
          %822 = vmatpush1.msra.mxu0 %v784
          %823 = vmatprep.subr.mxu0 0.0
          %824 = vmatpush1.msra.mxu0 %v785
          %825 = vmatprep.subr.mxu0 0.0
          %826 = vmatpush1.msra.mxu0 %v786
          %827 = vmatprep.subr.mxu0 0.0
          %828 = vmatpush1.msra.mxu0 0.0
          %829 = vmatprep.subr.mxu0 0.0
          %830 = vmatpush1.msra.mxu0 0.0
          %831 = vmatprep.subr.mxu0 0.0
          %832 = vmatpush1.msra.mxu0 0.0
          %833 = vmatprep.subr.mxu0 0.0
          %834 = vmatpush1.msra.mxu0 0.0
          %835 = vmatprep.subr.mxu0 0.0
          %836 = vmatpush1.msra.mxu0 0.0
          %837 = vmatprep.subr.mxu0 0.0
          %838 = vmatpush1.msra.mxu0 0.0
          %839 = vmatprep.subr.mxu0 0.0
          %840 = vmatpush1.msra.mxu0 0.0
          %841 = vmatprep.subr.mxu0 0.0
          %842 = vmatpush1.msra.mxu0 0.0
          %843 = vmatprep.subr.mxu0 0.0
          %844 = vmatpush1.msra.mxu0 0.0
          %845 = vmatprep.subr.mxu0 0.0
          %846 = vmatpush1.msra.mxu0 0.0
          %847 = vmatprep.subr.mxu0 0.0
          %848 = vmatpush1.msra.mxu0 0.0
          %849 = vmatprep.subr.mxu0 0.0
          %850 = vmatpush1.msra.mxu0 0.0
          %851 = vmatprep.subr.mxu0 0.0
          %852 = vmatpush1.msra.mxu0 0.0
          %853 = vmatprep.subr.mxu0 0.0
          %854 = vmatpush1.msra.mxu0 0.0
          %855 = vmatprep.subr.mxu0 0.0
          %856 = vmatpush1.msra.mxu0 0.0
          %857 = vmatprep.subr.mxu0 0.0
          %858 = vmatpush1.msra.mxu0 0.0
          %859 = vmatprep.mubr.f32.mxu0 0.0
          %860 = vmatmul.mubr.f32.gmra.mrb[0].mxu0 %v768
          %v861 = vpop.f32.mrb[0].mxu0
          %v862 = vadd.f32 %v793, %v861
          %v863 = vpop.f32.mrb[0].mxu0
          %864 = vmatprep.mubr.f32.mxu0 0.0
          %865 = vmatmul.mubr.f32.gmra.mrb[0].mxu0 %v769
          %v866 = vpop.f32.mrb[0].mxu0
          %v867 = vadd.f32 %v793, %v866
          %v868 = vpop.f32.mrb[0].mxu0
          %869 = vdwg.mxu0
          %s870 = scalar_lea.vmem [#allocation3], 1
          %v871 = vld [vmem:[%s870] sm:$0x1]
          %v872 = vmul.f32 %v871, 0.0625
          %s873 = scalar_lea.vmem [#allocation4], 1
          %v874 = vld [vmem:[%s873] sm:$0x1]
          %v875 = vmul.f32 %v874, 0.0625
          %v876 = vmul.f32 %v872, %v872
          %v877 = vsub.f32 %v875, %v876
          %v878 = vmax.f32 %v877, 0.0
          %v879 = vadd.f32 %v878, 1e-05
          %v880 = vrsqrt.pop %v879
          %s881 = scalar_lea.vmem %s3, 1
          %v882 = vld [vmem:[%s881] sm:$0x1]
          %v883 = vmul.f32 %v880, %v882
          %s884 = scalar_lea.vmem %s4, 1
          %v885 = vld [vmem:[%s884] sm:$0x1]
          %v886 = vmul.f32 %v872, %v883
          %v887 = vsub.f32 %v885, %v886
          %v889 = vlaneseq
          %v890 = vshrl.u32 %v889, 7
          %v891 = vsub.s32 0, %v890
          %v892 = vrot.slane %v883, %v891
          %v894 = vmul.f32 %v862, %v892
          %v895 = vmul.f32 %v867, %v892
          %v897 = vlaneseq
          %v898 = vshrl.u32 %v897, 7
          %v899 = vsub.s32 0, %v898
          %v900 = vrot.slane %v887, %v899
          %v902 = vadd.f32 %v894, %v900
          %v903 = vadd.f32 %v895, %v900
          %v904 = vmax.f32 %v902, 0.0
          %v905 = vmax.f32 %v903, 0.0
          %906 = vst [vmem:[#allocation2] sm:$0xff] %v904
          %907 = vst [vmem:[#allocation2 + $0x8] sm:$0xff] %v905
        $region80: #{_mlp_fused_pallas.1} parent=47 // pred_fallthru
          _
        %p908 = scmp.eq.s32.totalorder %s27, 2
        // Predicated region
        $region81: #{_mlp_fused_pallas.1} parent=47 // pred_check
          %p909 = pneg %p908
        $region82: #{_mlp_fused_pallas.1} parent=47 // pred_check_branch
          %911 = sbr.rel (%p909) target = $region84
        $region83: #{_mlp_fused_pallas.1} parent=47 // pred_region
          %v912 = vld [vmem:[#allocation2] sm:$0xff]
          %v913 = vld [vmem:[#allocation2 + $0x8] sm:$0xff]
          %v914 = vld [vmem:[#allocation10] sm:$0xff]
          %v915 = vld [vmem:[#allocation10 + $0x8] sm:$0xff]
          %v916 = vld [vmem:[#allocation10 + $0x10] sm:$0xff]
          %v917 = vld [vmem:[#allocation10 + $0x18] sm:$0xff]
          %v918 = vld [vmem:[#allocation10 + $0x20] sm:$0xff]
          %v919 = vld [vmem:[#allocation10 + $0x28] sm:$0xff]
          %v920 = vld [vmem:[#allocation10 + $0x30] sm:$0xff]
          %v921 = vld [vmem:[#allocation10 + $0x38] sm:$0xff]
          %v922 = vld [vmem:[#allocation10 + $0x40] sm:$0xff]
          %v923 = vld [vmem:[#allocation10 + $0x48] sm:$0xff]
          %v924 = vld [vmem:[#allocation10 + $0x50] sm:$0xff]
          %v925 = vld [vmem:[#allocation10 + $0x58] sm:$0xff]
          %v926 = vld [vmem:[#allocation10 + $0x60] sm:$0xff]
          %v927 = vld [vmem:[#allocation10 + $0x68] sm:$0xff]
          %v928 = vld [vmem:[#allocation10 + $0x70] sm:$0xff]
          %v929 = vld [vmem:[#allocation10 + $0x78] sm:$0xff]
          %v930 = vld [vmem:[%s6] sm:$0x1]
          %v932 = vlaneseq
          %v933 = vshrl.u32 %v932, 7
          %v934 = vsub.s32 0, %v933
          %v935 = vrot.slane %v930, %v934
          %937 = vmatprep.subr.mxu0 0.0
          %938 = vmatpush1.msra.mxu0 %v914
          %939 = vmatprep.subr.mxu0 0.0
          %940 = vmatpush1.msra.mxu0 %v915
          %941 = vmatprep.subr.mxu0 0.0
          %942 = vmatpush1.msra.mxu0 %v916
          %943 = vmatprep.subr.mxu0 0.0
          %944 = vmatpush1.msra.mxu0 %v917
          %945 = vmatprep.subr.mxu0 0.0
          %946 = vmatpush1.msra.mxu0 %v918
          %947 = vmatprep.subr.mxu0 0.0
          %948 = vmatpush1.msra.mxu0 %v919
          %949 = vmatprep.subr.mxu0 0.0
          %950 = vmatpush1.msra.mxu0 %v920
          %951 = vmatprep.subr.mxu0 0.0
          %952 = vmatpush1.msra.mxu0 %v921
          %953 = vmatprep.subr.mxu0 0.0
          %954 = vmatpush1.msra.mxu0 %v922
          %955 = vmatprep.subr.mxu0 0.0
          %956 = vmatpush1.msra.mxu0 %v923
          %957 = vmatprep.subr.mxu0 0.0
          %958 = vmatpush1.msra.mxu0 %v924
          %959 = vmatprep.subr.mxu0 0.0
          %960 = vmatpush1.msra.mxu0 %v925
          %961 = vmatprep.subr.mxu0 0.0
          %962 = vmatpush1.msra.mxu0 %v926
          %963 = vmatprep.subr.mxu0 0.0
          %964 = vmatpush1.msra.mxu0 %v927
          %965 = vmatprep.subr.mxu0 0.0
          %966 = vmatpush1.msra.mxu0 %v928
          %967 = vmatprep.subr.mxu0 0.0
          %968 = vmatpush1.msra.mxu0 %v929
          %969 = vmatprep.subr.mxu0 0.0
          %970 = vmatpush1.msra.mxu0 0.0
          %971 = vmatprep.subr.mxu0 0.0
          %972 = vmatpush1.msra.mxu0 0.0
          %973 = vmatprep.subr.mxu0 0.0
          %974 = vmatpush1.msra.mxu0 0.0
          %975 = vmatprep.subr.mxu0 0.0
          %976 = vmatpush1.msra.mxu0 0.0
          %977 = vmatprep.subr.mxu0 0.0
          %978 = vmatpush1.msra.mxu0 0.0
          %979 = vmatprep.subr.mxu0 0.0
          %980 = vmatpush1.msra.mxu0 0.0
          %981 = vmatprep.subr.mxu0 0.0
          %982 = vmatpush1.msra.mxu0 0.0
          %983 = vmatprep.subr.mxu0 0.0
          %984 = vmatpush1.msra.mxu0 0.0
          %985 = vmatprep.subr.mxu0 0.0
          %986 = vmatpush1.msra.mxu0 0.0
          %987 = vmatprep.subr.mxu0 0.0
          %988 = vmatpush1.msra.mxu0 0.0
          %989 = vmatprep.subr.mxu0 0.0
          %990 = vmatpush1.msra.mxu0 0.0
          %991 = vmatprep.subr.mxu0 0.0
          %992 = vmatpush1.msra.mxu0 0.0
          %993 = vmatprep.subr.mxu0 0.0
          %994 = vmatpush1.msra.mxu0 0.0
          %995 = vmatprep.subr.mxu0 0.0
          %996 = vmatpush1.msra.mxu0 0.0
          %997 = vmatprep.subr.mxu0 0.0
          %998 = vmatpush1.msra.mxu0 0.0
          %999 = vmatprep.subr.mxu0 0.0
          %1000 = vmatpush1.msra.mxu0 0.0
          %1001 = vmatprep.mubr.f32.mxu0 0.0
          %1002 = vmatmul.mubr.f32.gmra.mrb[0].mxu0 %v912
          %v1003 = vpop.f32.mrb[0].mxu0
          %v1004 = vadd.f32 %v935, %v1003
          %v1005 = vpop.f32.mrb[0].mxu0
          %1006 = vmatprep.mubr.f32.mxu0 0.0
          %1007 = vmatmul.mubr.f32.gmra.mrb[0].mxu0 %v913
          %v1008 = vpop.f32.mrb[0].mxu0
          %v1009 = vadd.f32 %v935, %v1008
          %v1010 = vpop.f32.mrb[0].mxu0
          %1011 = vdwg.mxu0
          %1012 = vst [vmem:[%s324] sm:$0xff] %v1004
          %1013 = vst [vmem:[%s324 + $0x8] sm:$0xff] %v1009
        $region84: #{_mlp_fused_pallas.1} parent=47 // pred_fallthru
          _
        %s1014 = sand.u32 %s199, 1
        %s1015 = scalar_lea.sflag [#allocation7], %s1014
        %s1016 = sand.u32 %s199, 1
        %s1017 = smul.addr %s1016, 16
        %s1018 = scalar_lea.vmem [#allocation11], %s1017
        // Predicated region
        $region85: #{_mlp_fused_pallas.1} parent=47 // pred_check
          %p1019 = pneg %p209
        $region86: #{_mlp_fused_pallas.1} parent=47 // pred_check_branch
          %1021 = sbr.rel (%p1019) target = $region88
        $region87: #{_mlp_fused_pallas.1} parent=47 // pred_region
          %p1022 = scmp.eq.s32.totalorder %s27, 2
          %s1023 = scalar_select %p1022, %s28, 0
          %s1024 = smul.u32 2, %s1023
          %s1026 = ssub.s32 256, 256
          %1027 = vsyncadd %s1015, %s1026
          %s1028 = smul.addr %s1024, 128
          %s1029 = scalar_lea.hbm %s7, %s1028
          %s1030 = sshll.u32 %s1018, 4
          %s1031 = int_to_ptr.vmem [resolvable:$true] %s1030
          %1036 = dma.vmem_to_hbm [thread:$0]  %s1031, 256, %s1029, %s1015, 128, 128, 8
        $region88: #{_mlp_fused_pallas.1} parent=47 // pred_fallthru
          _
      $region48: #{_mlp_fused_pallas.1} parent=5 // pred_fallthru
        _
      %p1037 = scmp.le.s32.totalorder 2, %s18
      // Predicated region
      $region89: #{_mlp_fused_pallas.1} parent=5 // pred_check
        %p1038 = pneg %p1037
      $region90: #{_mlp_fused_pallas.1} parent=5 // pred_check_branch
        %1040 = sbr.rel (%p1038) target = $region92
      $region91: #{_mlp_fused_pallas.1} parent=5 // pred_region
        %s1041 = ssub.s32 %s18, 2
        // Predicated region
        $region93: #{_mlp_fused_pallas.1} parent=91 // pred_check
          %p1042 = pneg %p215
        $region94: #{_mlp_fused_pallas.1} parent=91 // pred_check_branch
          %1044 = sbr.rel (%p1042) target = $region96
        $region95: #{_mlp_fused_pallas.1} parent=91 // pred_region
          %s1045 = sand.u32 %s200, 1
          %s1046 = scalar_lea.sflag [#allocation7], %s1045
          %s1047 = sand.u32 %s200, 1
          %s1048 = smul.addr %s1047, 16
          %s1049 = scalar_lea.vmem [#allocation11], %s1048
          %1050 = dma.done %s1046, 256
        $region96: #{_mlp_fused_pallas.1} parent=91 // pred_fallthru
          _
      $region92: #{_mlp_fused_pallas.1} parent=5 // pred_fallthru
        _
    $region6: #{_mlp_fused_pallas.1} parent=1 // loop_footer
      %s22 = sadd.s32 1, %s18
    $region7: #{_mlp_fused_pallas.1} parent=1 // loop_footer_branch
      %17 = sbr.rel target = $region3
    $region8: #{_mlp_fused_pallas.1} parent=1 // loop_exit
      _
    %1051 = vsyncpa [#allocation6], 1
    %s1052 = scalar_lea.sflag [#allocation6], 1
    %1053 = vsyncpa %s1052, 1
    %1054 = vsyncpa [#allocation9], 1
    %1055 = vsyncpa [#allocation7], 1
    %s1056 = scalar_lea.sflag [#allocation7], 1
    %1057 = vsyncpa %s1056, 1

</llo_original>
